<compile_context>
chip_gen: v7x
topology: tpu7x:2x2x1
jax: 0.10.0
libtpu: 0.0.40
codegen_flags: <defaults>
</compile_context>

<pallas_src>
import jax
import jax.numpy as jnp
import numpy as np
from jax.experimental import pallas as pl
from jax.experimental.pallas import tpu as pltpu


# ----------------------------------------------------------------------------
# Fused kernel: folded nav_head -> ELU -> ResBlock x2 -> fc1 -> fc2
# ----------------------------------------------------------------------------
def nav_encoder_kernel(x_ref, e_ref, wbig_ref, w256_ref, w512_ref,
                       b256_ref, b512_ref, wf2e_ref, o_ref):
    """x_ref    : (B, 2304) bf16 flattened backbone feature map (flat NCHW order).
    e_ref    : (B, 5)    f32  = concat(speed_limit, stop, traffic_convention).
    wbig_ref : (2304,256) bf16 folded BN/Conv/BN/Flatten/Linear weight.
    w256_ref : (2048,256) bf16 slab  [r1w1|r1w3|r2w1|r2w3|wf1|wf2f] (row-concat).
    w512_ref : ( 512,512) bf16 slab  [r1w2|r2w2].
    b256_ref : (   8,256) f32  slab  [b_big|r1b1|r1b3|r2b1|r2b3|bf1|bf2|0].
    b512_ref : (   2,512) f32  slab  [r1b2|r2b2].
    wf2e_ref : (   5,256) f32  fc2 weight rows for the extras (VPU path).
    o_ref    : (B, 256)  f32."""

    def relu(v):
        return jnp.maximum(v, 0.0)

    def dot16(a, w):
        # bf16 x bf16 MXU matmul with f32 accumulation.
        return jnp.dot(a.astype(jnp.bfloat16), w, preferred_element_type=jnp.float32)

    b256 = b256_ref[...]                                   # (8, 256) f32
    b512 = b512_ref[...]                                    # (2, 512) f32

    # fc2 extras contribution on the VPU (f32): cat([h, e]) @ W2 ==
    # h @ W2[:256] + e @ W2[256:]; the K=5 part is 5 broadcast FMAs, no MXU.
    e = e_ref[...]                                          # (B, 5)  f32
    w2e = wf2e_ref[...]                                     # (5, 256) f32
    e_contrib = e[:, 0:1] * w2e[0:1, :]
    for k in range(1, 5):
        e_contrib = e_contrib + e[:, k:k + 1] * w2e[k:k + 1, :]

    # Folded nav_head: BN(576) + Conv1x1(576->24) + BN(24) + Flatten + Linear(96,256).
    h = jnp.dot(x_ref[...], wbig_ref[...], preferred_element_type=jnp.float32)
    h = h + b256[0:1, :]
    # ELU(alpha=1) with clamped exponent (EUP never sees large positives).
    h = jnp.where(h > 0.0, h, jnp.exp(jnp.minimum(h, 0.0)) - 1.0)

    def resblock(x, r1, b1, r2, b2, r3, b3):
        # r1/r3 index the 256-col slab, r2 the 512-col slab (static, 256-aligned).
        x = relu(dot16(x, w256_ref[r1[0]:r1[1], :]) + b1)
        identity = x
        x = relu(dot16(x, w512_ref[r2[0]:r2[1], :]) + b2)
        x = dot16(x, w256_ref[r3[0]:r3[1], :]) + b3 + identity
        return relu(x)

    h = resblock(h, (0, 256), b256[1:2, :], (0, 256), b512[0:1, :],
                 (256, 768), b256[2:3, :])
    h = resblock(h, (768, 1024), b256[3:4, :], (256, 512), b512[1:2, :],
                 (1024, 1536), b256[4:5, :])

    h = relu(dot16(h, w256_ref[1536:1792, :]) + b256[5:6, :])            # fc1 + ReLU
    out = dot16(h, w256_ref[1792:2048, :]) + e_contrib + b256[6:7, :]    # split fc2
    o_ref[...] = relu(out)                                               # + ReLU


# ----------------------------------------------------------------------------
# pallas_call wrapper (single fused, grid-free call; whole-array VMEM operands)
# ----------------------------------------------------------------------------
def nav_encoder_forward(nav_feat_nchw, speed_limit, stop, traffic_convention, FP):
    """nav_feat_nchw: (B, 576, H, W) backbone feature map (NCHW)."""
    B = nav_feat_nchw.shape[0]
    # Free row-major reshape; cast to bf16 host-side (half the activation DMA).
    x_flat = nav_feat_nchw.reshape(B, -1).astype(jnp.bfloat16)
    extras = jnp.concatenate([speed_limit, stop, traffic_convention], axis=1)

    args = (x_flat, extras,
            FP["w_big"], FP["w256"], FP["w512"],
            FP["b256"], FP["b512"], FP["wf2e"])

    in_specs = [pl.BlockSpec(memory_space=pltpu.MemorySpace.VMEM) for _ in args]
    out_spec = pl.BlockSpec(memory_space=pltpu.MemorySpace.VMEM)

    return pl.pallas_call(
        nav_encoder_kernel,
        out_shape=jax.ShapeDtypeStruct((B, 256), jnp.float32),
        in_specs=in_specs,
        out_specs=out_spec,
    )(*args)


# ----------------------------------------------------------------------------
# Host-side parameter folding + operand coalescing into slabs
# ----------------------------------------------------------------------------
def fold_params(P, H, W):
    HW = H * W
    s1, t1 = P["bn1_s"], P["bn1_b"]                    # (1, 576)
    s2, t2 = P["bn2_s"], P["bn2_b"]                    # (1, 24)
    wc, bc = P["wc"], P["bc"]                          # (576, 24), (1, 24)

    # Fold BN1 / BN2 (running stats) into the 1x1 conv.
    wc_f = (s1.reshape(-1, 1) * wc) * s2               # (576, 24)
    bc_f = (t1 @ wc + bc) * s2 + t2                    # (1, 24)

    # Fold conv + channel-major Flatten + Linear(96, 256) into one matmul over
    # the flat NCHW input index cin*HW + (h*W + w).
    wl3 = P["wl"].reshape(24, HW, 256)                 # wl3[c, p, j] = wl[c*HW+p, j]
    w_big = jnp.einsum("ic,cpj->ipj", wc_f, wl3).reshape(576 * HW, 256)
    b_big = jnp.einsum("c,cpj->j", bc_f.reshape(-1), wl3).reshape(1, 256) + P["bl"]

    bf16 = lambda a: a.astype(jnp.bfloat16)

    # Coalesced weight / bias slabs (row offsets are multiples of 256).
    w256 = jnp.concatenate([P["r1w1"], P["r1w3"], P["r2w1"], P["r2w3"],
                            P["wf1"], P["wf2f"]], axis=0)          # (2048, 256)
    w512 = jnp.concatenate([P["r1w2"], P["r2w2"]], axis=0)         # ( 512, 512)
    b256 = jnp.concatenate([b_big, P["r1b1"], P["r1b3"], P["r2b1"], P["r2b3"],
                            P["bf1"], P["bf2"],
                            jnp.zeros((1, 256), jnp.float32)], axis=0)  # (8, 256)
    b512 = jnp.concatenate([P["r1b2"], P["r2b2"]], axis=0)         # (2, 512)

    return {
        "w_big": bf16(w_big),
        "w256": bf16(w256),
        "w512": bf16(w512),
        "b256": b256.astype(jnp.float32),
        "b512": b512.astype(jnp.float32),
        "wf2e": P["wf2e"].astype(jnp.float32),          # stays f32 (VPU path)
    }


# ----------------------------------------------------------------------------
# Pure-JAX f32 reference (unfolded, mirrors the PyTorch module in eval mode)
# ----------------------------------------------------------------------------
def nav_encoder_reference(nav_feat_nchw, speed_limit, stop, traffic_convention, P):
    B = nav_feat_nchw.shape[0]
    x = jnp.transpose(nav_feat_nchw, (0, 2, 3, 1))     # B,H,W,576
    x = x * P["bn1_s"][0] + P["bn1_b"][0]
    y = x @ P["wc"] + P["bc"][0]
    y = y * P["bn2_s"][0] + P["bn2_b"][0]
    feat = jnp.transpose(y, (0, 3, 1, 2)).reshape(B, -1)   # (B, 96) channel-major
    h = feat @ P["wl"] + P["bl"][0]
    h = jnp.where(h > 0, h, jnp.exp(h) - 1.0)

    def rb(x, w1, b1, w2, b2, w3, b3):
        x = jnp.maximum(x @ w1 + b1[0], 0.0)
        idt = x
        x = jnp.maximum(x @ w2 + b2[0], 0.0)
        x = x @ w3 + b3[0] + idt
        return jnp.maximum(x, 0.0)

    h = rb(h, P["r1w1"], P["r1b1"], P["r1w2"], P["r1b2"], P["r1w3"], P["r1b3"])
    h = rb(h, P["r2w1"], P["r2b1"], P["r2w2"], P["r2b2"], P["r2w3"], P["r2b3"])
    h = jnp.maximum(h @ P["wf1"] + P["bf1"][0], 0.0)
    extras = jnp.concatenate([speed_limit, stop, traffic_convention], axis=1)
    out = h @ P["wf2f"] + extras @ P["wf2e"] + P["bf2"][0]
    return jnp.maximum(out, 0.0)


# ----------------------------------------------------------------------------
# Deterministic parameter construction (torch-layout, f32)
# ----------------------------------------------------------------------------
def make_raw_params(key):
    ks = iter(jax.random.split(key, 64))

    def w(shape, scale=0.05):
        return (scale * jax.random.normal(next(ks), shape)).astype(jnp.float32)

    def b(n, scale=0.01):
        return (scale * jax.random.normal(next(ks), (1, n))).astype(jnp.float32)

    def bn_affine(c):
        gamma = 1.0 + 0.05 * jax.random.normal(next(ks), (c,))
        beta = 0.02 * jax.random.normal(next(ks), (c,))
        mean = 0.05 * jax.random.normal(next(ks), (c,))
        var = 0.5 + jax.random.uniform(next(ks), (c,))
        scale = gamma / jnp.sqrt(var + 1e-5)
        shift = beta - mean * scale
        return (scale.reshape(1, c).astype(jnp.float32),
                shift.reshape(1, c).astype(jnp.float32))

    P = {}
    P["bn1_s"], P["bn1_b"] = bn_affine(576)
    P["wc"] = w((576, 24))                 # Conv2d(576, 24, 1) as matmul
    P["bc"] = b(24)
    P["bn2_s"], P["bn2_b"] = bn_affine(24)
    P["wl"], P["bl"] = w((96, 256)), b(256)        # Linear(96, 256)

    for name in ("r1", "r2"):                       # ResBlock(256, 512, 256)
        P[name + "w1"], P[name + "b1"] = w((256, 256)), b(256)
        P[name + "w2"], P[name + "b2"] = w((256, 512)), b(512)
        P[name + "w3"], P[name + "b3"] = w((512, 256)), b(256)

    P["wf1"], P["bf1"] = w((256, 256)), b(256)      # fc1: Linear(256, 256)
    # fc2: Linear(256 + 1 + 2 + 2, 256) split into feature / extras parts,
    # in the exact concat order (features, speed_limit, stop, traffic_convention).
    P["wf2f"] = w((256, 256))
    P["wf2e"] = w((5, 256))
    P["bf2"] = b(256)
    return P


# ----------------------------------------------------------------------------
if __name__ == "__main__":
    key = jax.random.PRNGKey(0)
    k_in, k_sp, k_st, k_tc, k_par = jax.random.split(key, 5)

    B, H, W = 2, 2, 2
    # Backbone (mobilenet_v3_small.features) output feature map: (B, 576, 2, 2)
    nav_feat = jax.random.normal(k_in, (B, 576, H, W), dtype=jnp.float32)
    speed_limit = jax.random.normal(k_sp, (B, 1), dtype=jnp.float32)
    stop = jax.random.normal(k_st, (B, 2), dtype=jnp.float32)
    traffic_convention = jax.random.normal(k_tc, (B, 2), dtype=jnp.float32)

    raw = make_raw_params(k_par)
    fused = fold_params(raw, H, W)

    out = nav_encoder_forward(nav_feat, speed_limit, stop, traffic_convention,
                              fused)
    out = jax.block_until_ready(out)

    ref = nav_encoder_reference(nav_feat, speed_limit, stop, traffic_convention,
                                raw)
    # bf16 weights / bf16 matmul inputs with f32 accumulation -> loosened tol.
    np.testing.assert_allclose(np.asarray(out), np.asarray(ref),
                               rtol=5e-2, atol=5e-2)

    assert out.shape == (B, 256) and out.dtype == jnp.float32
    print("KERNEL_OK")
</pallas_src>

<mosaic_0001>
module attributes {stable_mosaic.version = 11 : i64} {
  func.func @nav_encoder_kernel(%arg0: memref<2x2304xbf16, #tpu.memory_space<vmem>>, %arg1: memref<2x5xf32, #tpu.memory_space<vmem>>, %arg2: memref<2304x256xbf16, #tpu.memory_space<vmem>>, %arg3: memref<2048x256xbf16, #tpu.memory_space<vmem>>, %arg4: memref<512x512xbf16, #tpu.memory_space<vmem>>, %arg5: memref<8x256xf32, #tpu.memory_space<vmem>>, %arg6: memref<2x512xf32, #tpu.memory_space<vmem>>, %arg7: memref<5x256xf32, #tpu.memory_space<vmem>>, %arg8: memref<2x256xf32, #tpu.memory_space<vmem>>) attributes {dimension_semantics = [], scalar_prefetch = 0 : i64, scratch_operands = 0 : i64, tpu.core_type = #tpu.core_type<tc>} {
    %c0 = arith.constant 0 : index
    %c0_0 = arith.constant 0 : index
    %0 = vector.load %arg5[%c0, %c0_0] : memref<8x256xf32, #tpu.memory_space<vmem>>, vector<8x256xf32>
    %c0_1 = arith.constant 0 : index
    %c0_2 = arith.constant 0 : index
    %1 = vector.load %arg6[%c0_1, %c0_2] : memref<2x512xf32, #tpu.memory_space<vmem>>, vector<2x512xf32>
    %c0_3 = arith.constant 0 : index
    %c0_4 = arith.constant 0 : index
    %2 = vector.load %arg1[%c0_3, %c0_4] : memref<2x5xf32, #tpu.memory_space<vmem>>, vector<2x5xf32>
    %c0_5 = arith.constant 0 : index
    %c0_6 = arith.constant 0 : index
    %3 = vector.load %arg7[%c0_5, %c0_6] : memref<5x256xf32, #tpu.memory_space<vmem>>, vector<5x256xf32>
    %4 = vector.extract_strided_slice %2 {offsets = [0, 0], sizes = [2, 1], strides = [1, 1]} : vector<2x5xf32> to vector<2x1xf32>
    %5 = vector.extract_strided_slice %3 {offsets = [0, 0], sizes = [1, 256], strides = [1, 1]} : vector<5x256xf32> to vector<1x256xf32>
    %6 = vector.broadcast %4 : vector<2x1xf32> to vector<2x256xf32>
    %7 = vector.broadcast %5 : vector<1x256xf32> to vector<2x256xf32>
    %8 = arith.mulf %6, %7 : vector<2x256xf32>
    %9 = vector.extract_strided_slice %2 {offsets = [0, 1], sizes = [2, 1], strides = [1, 1]} : vector<2x5xf32> to vector<2x1xf32>
    %10 = vector.extract_strided_slice %3 {offsets = [1, 0], sizes = [1, 256], strides = [1, 1]} : vector<5x256xf32> to vector<1x256xf32>
    %11 = vector.broadcast %9 : vector<2x1xf32> to vector<2x256xf32>
    %12 = vector.broadcast %10 : vector<1x256xf32> to vector<2x256xf32>
    %13 = arith.mulf %11, %12 : vector<2x256xf32>
    %14 = arith.addf %8, %13 : vector<2x256xf32>
    %15 = vector.extract_strided_slice %2 {offsets = [0, 2], sizes = [2, 1], strides = [1, 1]} : vector<2x5xf32> to vector<2x1xf32>
    %16 = vector.extract_strided_slice %3 {offsets = [2, 0], sizes = [1, 256], strides = [1, 1]} : vector<5x256xf32> to vector<1x256xf32>
    %17 = vector.broadcast %15 : vector<2x1xf32> to vector<2x256xf32>
    %18 = vector.broadcast %16 : vector<1x256xf32> to vector<2x256xf32>
    %19 = arith.mulf %17, %18 : vector<2x256xf32>
    %20 = arith.addf %14, %19 : vector<2x256xf32>
    %21 = vector.extract_strided_slice %2 {offsets = [0, 3], sizes = [2, 1], strides = [1, 1]} : vector<2x5xf32> to vector<2x1xf32>
    %22 = vector.extract_strided_slice %3 {offsets = [3, 0], sizes = [1, 256], strides = [1, 1]} : vector<5x256xf32> to vector<1x256xf32>
    %23 = vector.broadcast %21 : vector<2x1xf32> to vector<2x256xf32>
    %24 = vector.broadcast %22 : vector<1x256xf32> to vector<2x256xf32>
    %25 = arith.mulf %23, %24 : vector<2x256xf32>
    %26 = arith.addf %20, %25 : vector<2x256xf32>
    %27 = vector.extract_strided_slice %2 {offsets = [0, 4], sizes = [2, 1], strides = [1, 1]} : vector<2x5xf32> to vector<2x1xf32>
    %28 = vector.extract_strided_slice %3 {offsets = [4, 0], sizes = [1, 256], strides = [1, 1]} : vector<5x256xf32> to vector<1x256xf32>
    %29 = vector.broadcast %27 : vector<2x1xf32> to vector<2x256xf32>
    %30 = vector.broadcast %28 : vector<1x256xf32> to vector<2x256xf32>
    %31 = arith.mulf %29, %30 : vector<2x256xf32>
    %32 = arith.addf %26, %31 : vector<2x256xf32>
    %c0_7 = arith.constant 0 : index
    %c0_8 = arith.constant 0 : index
    %33 = vector.load %arg0[%c0_7, %c0_8] : memref<2x2304xbf16, #tpu.memory_space<vmem>>, vector<2x2304xbf16>
    %c0_9 = arith.constant 0 : index
    %c0_10 = arith.constant 0 : index
    %34 = vector.load %arg2[%c0_9, %c0_10] : memref<2304x256xbf16, #tpu.memory_space<vmem>>, vector<2304x256xbf16>
    %cst = arith.constant dense<0.000000e+00> : vector<2x256xf32>
    %35 = tpu.matmul %33, %34, %cst {dimension_numbers = #tpu.dot_dimension_numbers<[1], [0], [0], [1], [0, 0, 1, 1], [], []>} : vector<2x2304xbf16>, vector<2304x256xbf16>, vector<2x256xf32> -> vector<2x256xf32>
    %36 = vector.extract_strided_slice %0 {offsets = [0, 0], sizes = [1, 256], strides = [1, 1]} : vector<8x256xf32> to vector<1x256xf32>
    %37 = vector.broadcast %36 : vector<1x256xf32> to vector<2x256xf32>
    %38 = arith.addf %35, %37 : vector<2x256xf32>
    %cst_11 = arith.constant 0.000000e+00 : f32
    %39 = vector.broadcast %cst_11 : f32 to vector<2x256xf32>
    %40 = arith.cmpf ogt, %38, %39 : vector<2x256xf32>
    %cst_12 = arith.constant 0.000000e+00 : f32
    %41 = vector.broadcast %cst_12 : f32 to vector<2x256xf32>
    %42 = arith.minimumf %38, %41 : vector<2x256xf32>
    %43 = math.exp %42 : vector<2x256xf32>
    %cst_13 = arith.constant 1.000000e+00 : f32
    %44 = vector.broadcast %cst_13 : f32 to vector<2x256xf32>
    %45 = arith.subf %43, %44 : vector<2x256xf32>
    %46 = arith.select %40, %38, %45 : vector<2x256xi1>, vector<2x256xf32>
    %47 = vector.extract_strided_slice %0 {offsets = [1, 0], sizes = [1, 256], strides = [1, 1]} : vector<8x256xf32> to vector<1x256xf32>
    %48 = vector.extract_strided_slice %1 {offsets = [0, 0], sizes = [1, 512], strides = [1, 1]} : vector<2x512xf32> to vector<1x512xf32>
    %49 = vector.extract_strided_slice %0 {offsets = [2, 0], sizes = [1, 256], strides = [1, 1]} : vector<8x256xf32> to vector<1x256xf32>
    %c0_14 = arith.constant 0 : index
    %c0_15 = arith.constant 0 : index
    %50 = vector.load %arg3[%c0_14, %c0_15] : memref<2048x256xbf16, #tpu.memory_space<vmem>>, vector<256x256xbf16>
    %51 = arith.truncf %46 : vector<2x256xf32> to vector<2x256xbf16>
    %cst_16 = arith.constant dense<0.000000e+00> : vector<2x256xf32>
    %52 = tpu.matmul %51, %50, %cst_16 {dimension_numbers = #tpu.dot_dimension_numbers<[1], [0], [0], [1], [0, 0, 1, 1], [], []>} : vector<2x256xbf16>, vector<256x256xbf16>, vector<2x256xf32> -> vector<2x256xf32>
    %53 = vector.broadcast %47 : vector<1x256xf32> to vector<2x256xf32>
    %54 = arith.addf %52, %53 : vector<2x256xf32>
    %cst_17 = arith.constant 0.000000e+00 : f32
    %55 = vector.broadcast %cst_17 : f32 to vector<2x256xf32>
    %56 = arith.maximumf %54, %55 : vector<2x256xf32>
    %c0_18 = arith.constant 0 : index
    %c0_19 = arith.constant 0 : index
    %57 = vector.load %arg4[%c0_18, %c0_19] : memref<512x512xbf16, #tpu.memory_space<vmem>>, vector<256x512xbf16>
    %58 = arith.truncf %56 : vector<2x256xf32> to vector<2x256xbf16>
    %cst_20 = arith.constant dense<0.000000e+00> : vector<2x512xf32>
    %59 = tpu.matmul %58, %57, %cst_20 {dimension_numbers = #tpu.dot_dimension_numbers<[1], [0], [0], [1], [0, 0, 1, 1], [], []>} : vector<2x256xbf16>, vector<256x512xbf16>, vector<2x512xf32> -> vector<2x512xf32>
    %60 = vector.broadcast %48 : vector<1x512xf32> to vector<2x512xf32>
    %61 = arith.addf %59, %60 : vector<2x512xf32>
    %cst_21 = arith.constant 0.000000e+00 : f32
    %62 = vector.broadcast %cst_21 : f32 to vector<2x512xf32>
    %63 = arith.maximumf %61, %62 : vector<2x512xf32>
    %c256 = arith.constant 256 : index
    %c0_22 = arith.constant 0 : index
    %64 = vector.load %arg3[%c256, %c0_22] : memref<2048x256xbf16, #tpu.memory_space<vmem>>, vector<512x256xbf16>
    %65 = arith.truncf %63 : vector<2x512xf32> to vector<2x512xbf16>
    %cst_23 = arith.constant dense<0.000000e+00> : vector<2x256xf32>
    %66 = tpu.matmul %65, %64, %cst_23 {dimension_numbers = #tpu.dot_dimension_numbers<[1], [0], [0], [1], [0, 0, 1, 1], [], []>} : vector<2x512xbf16>, vector<512x256xbf16>, vector<2x256xf32> -> vector<2x256xf32>
    %67 = vector.broadcast %49 : vector<1x256xf32> to vector<2x256xf32>
    %68 = arith.addf %66, %67 : vector<2x256xf32>
    %69 = arith.addf %68, %56 : vector<2x256xf32>
    %cst_24 = arith.constant 0.000000e+00 : f32
    %70 = vector.broadcast %cst_24 : f32 to vector<2x256xf32>
    %71 = arith.maximumf %69, %70 : vector<2x256xf32>
    %72 = vector.extract_strided_slice %0 {offsets = [3, 0], sizes = [1, 256], strides = [1, 1]} : vector<8x256xf32> to vector<1x256xf32>
    %73 = vector.extract_strided_slice %1 {offsets = [1, 0], sizes = [1, 512], strides = [1, 1]} : vector<2x512xf32> to vector<1x512xf32>
    %74 = vector.extract_strided_slice %0 {offsets = [4, 0], sizes = [1, 256], strides = [1, 1]} : vector<8x256xf32> to vector<1x256xf32>
    %c768 = arith.constant 768 : index
    %c0_25 = arith.constant 0 : index
    %75 = vector.load %arg3[%c768, %c0_25] : memref<2048x256xbf16, #tpu.memory_space<vmem>>, vector<256x256xbf16>
    %76 = arith.truncf %71 : vector<2x256xf32> to vector<2x256xbf16>
    %cst_26 = arith.constant dense<0.000000e+00> : vector<2x256xf32>
    %77 = tpu.matmul %76, %75, %cst_26 {dimension_numbers = #tpu.dot_dimension_numbers<[1], [0], [0], [1], [0, 0, 1, 1], [], []>} : vector<2x256xbf16>, vector<256x256xbf16>, vector<2x256xf32> -> vector<2x256xf32>
    %78 = vector.broadcast %72 : vector<1x256xf32> to vector<2x256xf32>
    %79 = arith.addf %77, %78 : vector<2x256xf32>
    %cst_27 = arith.constant 0.000000e+00 : f32
    %80 = vector.broadcast %cst_27 : f32 to vector<2x256xf32>
    %81 = arith.maximumf %79, %80 : vector<2x256xf32>
    %c256_28 = arith.constant 256 : index
    %c0_29 = arith.constant 0 : index
    %82 = vector.load %arg4[%c256_28, %c0_29] : memref<512x512xbf16, #tpu.memory_space<vmem>>, vector<256x512xbf16>
    %83 = arith.truncf %81 : vector<2x256xf32> to vector<2x256xbf16>
    %cst_30 = arith.constant dense<0.000000e+00> : vector<2x512xf32>
    %84 = tpu.matmul %83, %82, %cst_30 {dimension_numbers = #tpu.dot_dimension_numbers<[1], [0], [0], [1], [0, 0, 1, 1], [], []>} : vector<2x256xbf16>, vector<256x512xbf16>, vector<2x512xf32> -> vector<2x512xf32>
    %85 = vector.broadcast %73 : vector<1x512xf32> to vector<2x512xf32>
    %86 = arith.addf %84, %85 : vector<2x512xf32>
    %cst_31 = arith.constant 0.000000e+00 : f32
    %87 = vector.broadcast %cst_31 : f32 to vector<2x512xf32>
    %88 = arith.maximumf %86, %87 : vector<2x512xf32>
    %c1024 = arith.constant 1024 : index
    %c0_32 = arith.constant 0 : index
    %89 = vector.load %arg3[%c1024, %c0_32] : memref<2048x256xbf16, #tpu.memory_space<vmem>>, vector<512x256xbf16>
    %90 = arith.truncf %88 : vector<2x512xf32> to vector<2x512xbf16>
    %cst_33 = arith.constant dense<0.000000e+00> : vector<2x256xf32>
    %91 = tpu.matmul %90, %89, %cst_33 {dimension_numbers = #tpu.dot_dimension_numbers<[1], [0], [0], [1], [0, 0, 1, 1], [], []>} : vector<2x512xbf16>, vector<512x256xbf16>, vector<2x256xf32> -> vector<2x256xf32>
    %92 = vector.broadcast %74 : vector<1x256xf32> to vector<2x256xf32>
    %93 = arith.addf %91, %92 : vector<2x256xf32>
    %94 = arith.addf %93, %81 : vector<2x256xf32>
    %cst_34 = arith.constant 0.000000e+00 : f32
    %95 = vector.broadcast %cst_34 : f32 to vector<2x256xf32>
    %96 = arith.maximumf %94, %95 : vector<2x256xf32>
    %c1536 = arith.constant 1536 : index
    %c0_35 = arith.constant 0 : index
    %97 = vector.load %arg3[%c1536, %c0_35] : memref<2048x256xbf16, #tpu.memory_space<vmem>>, vector<256x256xbf16>
    %98 = arith.truncf %96 : vector<2x256xf32> to vector<2x256xbf16>
    %cst_36 = arith.constant dense<0.000000e+00> : vector<2x256xf32>
    %99 = tpu.matmul %98, %97, %cst_36 {dimension_numbers = #tpu.dot_dimension_numbers<[1], [0], [0], [1], [0, 0, 1, 1], [], []>} : vector<2x256xbf16>, vector<256x256xbf16>, vector<2x256xf32> -> vector<2x256xf32>
    %100 = vector.extract_strided_slice %0 {offsets = [5, 0], sizes = [1, 256], strides = [1, 1]} : vector<8x256xf32> to vector<1x256xf32>
    %101 = vector.broadcast %100 : vector<1x256xf32> to vector<2x256xf32>
    %102 = arith.addf %99, %101 : vector<2x256xf32>
    %cst_37 = arith.constant 0.000000e+00 : f32
    %103 = vector.broadcast %cst_37 : f32 to vector<2x256xf32>
    %104 = arith.maximumf %102, %103 : vector<2x256xf32>
    %c1792 = arith.constant 1792 : index
    %c0_38 = arith.constant 0 : index
    %105 = vector.load %arg3[%c1792, %c0_38] : memref<2048x256xbf16, #tpu.memory_space<vmem>>, vector<256x256xbf16>
    %106 = arith.truncf %104 : vector<2x256xf32> to vector<2x256xbf16>
    %cst_39 = arith.constant dense<0.000000e+00> : vector<2x256xf32>
    %107 = tpu.matmul %106, %105, %cst_39 {dimension_numbers = #tpu.dot_dimension_numbers<[1], [0], [0], [1], [0, 0, 1, 1], [], []>} : vector<2x256xbf16>, vector<256x256xbf16>, vector<2x256xf32> -> vector<2x256xf32>
    %108 = arith.addf %107, %32 : vector<2x256xf32>
    %109 = vector.extract_strided_slice %0 {offsets = [6, 0], sizes = [1, 256], strides = [1, 1]} : vector<8x256xf32> to vector<1x256xf32>
    %110 = vector.broadcast %109 : vector<1x256xf32> to vector<2x256xf32>
    %111 = arith.addf %108, %110 : vector<2x256xf32>
    %cst_40 = arith.constant 0.000000e+00 : f32
    %112 = vector.broadcast %cst_40 : f32 to vector<2x256xf32>
    %113 = arith.maximumf %111, %112 : vector<2x256xf32>
    %c0_41 = arith.constant 0 : index
    %c0_42 = arith.constant 0 : index
    %114 = vector.load %arg8[%c0_41, %c0_42] : memref<2x256xf32, #tpu.memory_space<vmem>>, vector<2x256xf32>
    tpu.vector_store %arg8[%c0_41, %c0_42], %113 {strides = array<i32>} : memref<2x256xf32, #tpu.memory_space<vmem>>, vector<2x256xf32>,
    return
  }
}

</mosaic_0001>

<llo_original>
// kernel: tpu_custom_call.1
$region0: #{tpu_custom_call.1}
  #allocation0 [shape = 'u32[]', space=smem, size = 0x4, offset = 0x4, fixed_abs, tag = 'smem constant byte address 0x4 - core index']
  #allocation1 [shape = 'u32[144,128]{1,0:T(1,128)}', space=vmem, size = 0x12000, scoped, tag = 'internal scratch']
  %s0 = inlined_call_operand.hbm [shape: bf16[2,2304], index: 0, kind: input, shape index: {}]
  %s1 = inlined_call_operand.hbm [shape: f32[2,5], index: 1, kind: input, shape index: {}]
  %s2 = inlined_call_operand.hbm [shape: bf16[2304,256], index: 2, kind: input, shape index: {}]
  %s3 = inlined_call_operand.hbm [shape: bf16[2048,256], index: 3, kind: input, shape index: {}]
  %s4 = inlined_call_operand.hbm [shape: bf16[512,512], index: 4, kind: input, shape index: {}]
  %s5 = inlined_call_operand.hbm [shape: f32[8,256], index: 5, kind: input, shape index: {}]
  %s6 = inlined_call_operand.hbm [shape: f32[2,512], index: 6, kind: input, shape index: {}]
  %s7 = inlined_call_operand.hbm [shape: f32[5,256], index: 7, kind: input, shape index: {}]
  %s8 = inlined_call_operand.hbm [shape: f32[2,256], index: 8, kind: output, shape index: {}]
  %s9 = sld [smem:[#allocation0]]
  $region74: #{tpu_custom_call.1} parent=0
    _
  %s11 = ssub.s32 1, %s9
  %s12 = scalar_select 0, %s11, %s9
  $region1: #{tpu_custom_call.1} parent=0
    #allocation2 [shape = 'u8[9216]{0}', space=vmem, size = 0x2400, scoped, tag = 'input window, operand 0, single buffered']
    #allocation3 [shape = 's32[1]{0}', space=sflag, size = 0x4, scoped, tag = 'scoped memory for tpu_custom_call.1']
    #allocation4 [shape = 's32[1]{0}', space=sflag, size = 0x4, scoped, tag = 'scoped memory for tpu_custom_call.1']
    #allocation5 [shape = 'u8[1024]{0}', space=vmem, size = 0x400, scoped, tag = 'input window, operand 1, single buffered']
    #allocation6 [shape = 's32[1]{0}', space=sflag, size = 0x4, scoped, tag = 'scoped memory for tpu_custom_call.1']
    #allocation7 [shape = 'u8[1179648]{0}', space=vmem, size = 0x120000, scoped, tag = 'input window, operand 2, single buffered']
    #allocation8 [shape = 'u8[1048576]{0}', space=vmem, size = 0x100000, scoped, tag = 'input window, operand 3, single buffered']
    #allocation9 [shape = 's32[1]{0}', space=sflag, size = 0x4, scoped, tag = 'scoped memory for tpu_custom_call.1']
    #allocation10 [shape = 'u8[524288]{0}', space=vmem, size = 0x80000, scoped, tag = 'input window, operand 4, single buffered']
    #allocation11 [shape = 'u8[8192]{0}', space=vmem, size = 0x2000, scoped, tag = 'input window, operand 5, single buffered']
    #allocation12 [shape = 's32[1]{0}', space=sflag, size = 0x4, scoped, tag = 'scoped memory for tpu_custom_call.1']
    #allocation13 [shape = 'u8[4096]{0}', space=vmem, size = 0x1000, scoped, tag = 'input window, operand 6, single buffered']
    #allocation14 [shape = 'u8[8192]{0}', space=vmem, size = 0x2000, scoped, tag = 'input window, operand 7, single buffered']
    #allocation15 [shape = 's32[1]{0}', space=sflag, size = 0x4, scoped, tag = 'scoped memory for tpu_custom_call.1']
    #allocation16 [shape = 'u8[2048]{0}', space=vmem, size = 0x800, scoped, tag = 'output window, operand 0, single buffered']
    %13 = vsyncpa [#allocation3], 0
    %14 = vsyncpa [#allocation6], 0
    %15 = vsyncpa [#allocation9], 0
    %16 = vsyncpa [#allocation12], 0
    %17 = vsyncpa [#allocation15], 0
    %18 = vsyncpa [#allocation4], 0
    // Predicated region
    $region2: #{tpu_custom_call.1} parent=1 // pred_check
      _
    $region3: #{tpu_custom_call.1} parent=1 // pred_check_branch
      %20 = sbr.rel (0) target = $region5
    $region4: #{tpu_custom_call.1} parent=1 // pred_region
      %s22 = ssub.s32 288, 288
      %23 = vsyncadd [#allocation3], %s22
      %s25 = sshll.u32 [#allocation2], 4
      %s26 = int_to_ptr.vmem [resolvable:$true] %s25
      %28 = dma.hbm_to_vmem [thread:$0]  %s0, 288, %s26, [#allocation3]
    $region5: #{tpu_custom_call.1} parent=1 // pred_fallthru
      _
    // Predicated region
    $region6: #{tpu_custom_call.1} parent=1 // pred_check
      _
    $region7: #{tpu_custom_call.1} parent=1 // pred_check_branch
      %30 = sbr.rel (0) target = $region9
    $region8: #{tpu_custom_call.1} parent=1 // pred_region
      %s32 = ssub.s32 32, 32
      %33 = vsyncadd [#allocation6], %s32
      %s35 = sshll.u32 [#allocation5], 4
      %s36 = int_to_ptr.vmem [resolvable:$true] %s35
      %38 = dma.hbm_to_vmem [thread:$0]  %s1, 32, %s36, [#allocation6]
    $region9: #{tpu_custom_call.1} parent=1 // pred_fallthru
      _
    // Predicated region
    $region10: #{tpu_custom_call.1} parent=1 // pred_check
      _
    $region11: #{tpu_custom_call.1} parent=1 // pred_check_branch
      %40 = sbr.rel (0) target = $region13
    $region12: #{tpu_custom_call.1} parent=1 // pred_region
      %s42 = ssub.s32 36864, 36864
      %43 = vsyncadd [#allocation6], %s42
      %s44 = sshll.u32 [#allocation7], 4
      %s45 = int_to_ptr.vmem [resolvable:$true] %s44
      %50 = dma.hbm_to_vmem [thread:$0]  %s2, 36864, %s45, [#allocation6], 128, 128, 8
    $region13: #{tpu_custom_call.1} parent=1 // pred_fallthru
      _
    // Predicated region
    $region14: #{tpu_custom_call.1} parent=1 // pred_check
      _
    $region15: #{tpu_custom_call.1} parent=1 // pred_check_branch
      %52 = sbr.rel (0) target = $region17
    $region16: #{tpu_custom_call.1} parent=1 // pred_region
      %s54 = ssub.s32 32768, 32768
      %55 = vsyncadd [#allocation9], %s54
      %s56 = sshll.u32 [#allocation8], 4
      %s57 = int_to_ptr.vmem [resolvable:$true] %s56
      %62 = dma.hbm_to_vmem [thread:$0]  %s3, 32768, %s57, [#allocation9], 128, 128, 8
    $region17: #{tpu_custom_call.1} parent=1 // pred_fallthru
      _
    // Predicated region
    $region18: #{tpu_custom_call.1} parent=1 // pred_check
      _
    $region19: #{tpu_custom_call.1} parent=1 // pred_check_branch
      %64 = sbr.rel (0) target = $region21
    $region20: #{tpu_custom_call.1} parent=1 // pred_region
      %s66 = ssub.s32 16384, 16384
      %67 = vsyncadd [#allocation9], %s66
      %s68 = sshll.u32 [#allocation10], 4
      %s69 = int_to_ptr.vmem [resolvable:$true] %s68
      %74 = dma.hbm_to_vmem [thread:$0]  %s4, 16384, %s69, [#allocation9], 256, 256, 16
    $region21: #{tpu_custom_call.1} parent=1 // pred_fallthru
      _
    // Predicated region
    $region22: #{tpu_custom_call.1} parent=1 // pred_check
      _
    $region23: #{tpu_custom_call.1} parent=1 // pred_check_branch
      %76 = sbr.rel (0) target = $region25
    $region24: #{tpu_custom_call.1} parent=1 // pred_region
      %s78 = ssub.s32 256, 256
      %79 = vsyncadd [#allocation12], %s78
      %s81 = sshll.u32 [#allocation11], 4
      %s82 = int_to_ptr.vmem [resolvable:$true] %s81
      %84 = dma.hbm_to_vmem [thread:$0]  %s5, 256, %s82, [#allocation12]
    $region25: #{tpu_custom_call.1} parent=1 // pred_fallthru
      _
    // Predicated region
    $region26: #{tpu_custom_call.1} parent=1 // pred_check
      _
    $region27: #{tpu_custom_call.1} parent=1 // pred_check_branch
      %86 = sbr.rel (0) target = $region29
    $region28: #{tpu_custom_call.1} parent=1 // pred_region
      %s88 = ssub.s32 128, 128
      %89 = vsyncadd [#allocation12], %s88
      %s91 = sshll.u32 [#allocation13], 4
      %s92 = int_to_ptr.vmem [resolvable:$true] %s91
      %94 = dma.hbm_to_vmem [thread:$0]  %s6, 128, %s92, [#allocation12]
    $region29: #{tpu_custom_call.1} parent=1 // pred_fallthru
      _
    // Predicated region
    $region30: #{tpu_custom_call.1} parent=1 // pred_check
      _
    $region31: #{tpu_custom_call.1} parent=1 // pred_check_branch
      %96 = sbr.rel (0) target = $region33
    $region32: #{tpu_custom_call.1} parent=1 // pred_region
      %s98 = ssub.s32 256, 256
      %99 = vsyncadd [#allocation15], %s98
      %s101 = sshll.u32 [#allocation14], 4
      %s102 = int_to_ptr.vmem [resolvable:$true] %s101
      %104 = dma.hbm_to_vmem [thread:$0]  %s7, 256, %s102, [#allocation15]
    $region33: #{tpu_custom_call.1} parent=1 // pred_fallthru
      _
    // Predicated region
    $region34: #{tpu_custom_call.1} parent=1 // pred_check
      _
    $region35: #{tpu_custom_call.1} parent=1 // pred_check_branch
      %106 = sbr.rel (0) target = $region37
    $region36: #{tpu_custom_call.1} parent=1 // pred_region
      %107 = dma.done [#allocation3], 288
    $region37: #{tpu_custom_call.1} parent=1 // pred_fallthru
      _
    // Predicated region
    $region38: #{tpu_custom_call.1} parent=1 // pred_check
      _
    $region39: #{tpu_custom_call.1} parent=1 // pred_check_branch
      %109 = sbr.rel (0) target = $region41
    $region40: #{tpu_custom_call.1} parent=1 // pred_region
      %110 = dma.done [#allocation6], 32
    $region41: #{tpu_custom_call.1} parent=1 // pred_fallthru
      _
    // Predicated region
    $region42: #{tpu_custom_call.1} parent=1 // pred_check
      _
    $region43: #{tpu_custom_call.1} parent=1 // pred_check_branch
      %112 = sbr.rel (0) target = $region45
    $region44: #{tpu_custom_call.1} parent=1 // pred_region
      %113 = dma.done [#allocation6], 36864
    $region45: #{tpu_custom_call.1} parent=1 // pred_fallthru
      _
    // Predicated region
    $region46: #{tpu_custom_call.1} parent=1 // pred_check
      _
    $region47: #{tpu_custom_call.1} parent=1 // pred_check_branch
      %115 = sbr.rel (0) target = $region49
    $region48: #{tpu_custom_call.1} parent=1 // pred_region
      %116 = dma.done [#allocation9], 32768
    $region49: #{tpu_custom_call.1} parent=1 // pred_fallthru
      _
    // Predicated region
    $region50: #{tpu_custom_call.1} parent=1 // pred_check
      _
    $region51: #{tpu_custom_call.1} parent=1 // pred_check_branch
      %118 = sbr.rel (0) target = $region53
    $region52: #{tpu_custom_call.1} parent=1 // pred_region
      %119 = dma.done [#allocation9], 16384
    $region53: #{tpu_custom_call.1} parent=1 // pred_fallthru
      _
    // Predicated region
    $region54: #{tpu_custom_call.1} parent=1 // pred_check
      _
    $region55: #{tpu_custom_call.1} parent=1 // pred_check_branch
      %121 = sbr.rel (0) target = $region57
    $region56: #{tpu_custom_call.1} parent=1 // pred_region
      %122 = dma.done [#allocation12], 256
    $region57: #{tpu_custom_call.1} parent=1 // pred_fallthru
      _
    // Predicated region
    $region58: #{tpu_custom_call.1} parent=1 // pred_check
      _
    $region59: #{tpu_custom_call.1} parent=1 // pred_check_branch
      %124 = sbr.rel (0) target = $region61
    $region60: #{tpu_custom_call.1} parent=1 // pred_region
      %125 = dma.done [#allocation12], 128
    $region61: #{tpu_custom_call.1} parent=1 // pred_fallthru
      _
    // Predicated region
    $region62: #{tpu_custom_call.1} parent=1 // pred_check
      _
    $region63: #{tpu_custom_call.1} parent=1 // pred_check_branch
      %127 = sbr.rel (0) target = $region65
    $region64: #{tpu_custom_call.1} parent=1 // pred_region
      %128 = dma.done [#allocation15], 256
    $region65: #{tpu_custom_call.1} parent=1 // pred_fallthru
      _
    %v129 = vld [vmem:[#allocation11] sm:$0xff]
    %v130 = vld [vmem:[#allocation11 + $0x8] sm:$0xff]
    %v131 = vld [vmem:[#allocation13] sm:$0xff]
    %v132 = vld [vmem:[#allocation5] sm:$0x3]
    %v133 = vld [vmem:[#allocation14] sm:$0x1f]
    %v134 = vld [vmem:[#allocation14 + $0x8] sm:$0x1f]
    %136 = vset.pattern.permute.xlu0 0
    %137 = vperm.xlu0 %136, %v132
    %v138 = vpop.permute.xlu0 %137
    %v140 = vlaneseq
    %v141 = vshrl.u32 %v140, 7
    %v142 = vsub.s32 0, %v141
    %v143 = vrot.slane %v133, %v142
    %v144 = vlaneseq
    %v145 = vshrl.u32 %v144, 7
    %v146 = vsub.s32 0, %v145
    %v147 = vrot.slane %v134, %v146
    %v148 = vmul.f32 %v138, %v143
    %v149 = vmul.f32 %v138, %v147
    %150 = vset.pattern.permute.xlu0 1
    %151 = vperm.xlu0 %150, %v132
    %v152 = vpop.permute.xlu0 %151
    %v154 = vlaneseq
    %v155 = vshrl.u32 %v154, 7
    %v156 = vsub.s32 1, %v155
    %v157 = vrot.slane %v133, %v156
    %v158 = vlaneseq
    %v159 = vshrl.u32 %v158, 7
    %v160 = vsub.s32 1, %v159
    %v161 = vrot.slane %v134, %v160
    %v162 = vmul.f32 %v152, %v157
    %v163 = vmul.f32 %v152, %v161
    %v164 = vadd.f32 %v148, %v162
    %v165 = vadd.f32 %v149, %v163
    %166 = vset.pattern.permute.xlu0 2
    %167 = vperm.xlu0 %166, %v132
    %v168 = vpop.permute.xlu0 %167
    %v170 = vlaneseq
    %v171 = vshrl.u32 %v170, 7
    %v172 = vsub.s32 2, %v171
    %v173 = vrot.slane %v133, %v172
    %v174 = vlaneseq
    %v175 = vshrl.u32 %v174, 7
    %v176 = vsub.s32 2, %v175
    %v177 = vrot.slane %v134, %v176
    %v178 = vmul.f32 %v168, %v173
    %v179 = vmul.f32 %v168, %v177
    %v180 = vadd.f32 %v164, %v178
    %v181 = vadd.f32 %v165, %v179
    %182 = vset.pattern.permute.xlu0 3
    %183 = vperm.xlu0 %182, %v132
    %v184 = vpop.permute.xlu0 %183
    %v186 = vlaneseq
    %v187 = vshrl.u32 %v186, 7
    %v188 = vsub.s32 3, %v187
    %v189 = vrot.slane %v133, %v188
    %v190 = vlaneseq
    %v191 = vshrl.u32 %v190, 7
    %v192 = vsub.s32 3, %v191
    %v193 = vrot.slane %v134, %v192
    %v194 = vmul.f32 %v184, %v189
    %v195 = vmul.f32 %v184, %v193
    %v196 = vadd.f32 %v180, %v194
    %v197 = vadd.f32 %v181, %v195
    %198 = vset.pattern.permute.xlu0 4
    %199 = vperm.xlu0 %198, %v132
    %v200 = vpop.permute.xlu0 %199
    %v202 = vlaneseq
    %v203 = vshrl.u32 %v202, 7
    %v204 = vsub.s32 4, %v203
    %v205 = vrot.slane %v133, %v204
    %v206 = vlaneseq
    %v207 = vshrl.u32 %v206, 7
    %v208 = vsub.s32 4, %v207
    %v209 = vrot.slane %v134, %v208
    %v210 = vmul.f32 %v200, %v205
    %v211 = vmul.f32 %v200, %v209
    %v212 = vadd.f32 %v196, %v210
    %v213 = vadd.f32 %v197, %v211
    %v214 = vld [vmem:[#allocation2] sm:$0xff]
    %v215 = vld [vmem:[#allocation2 + $0x8] sm:$0xff]
    %v216 = vld [vmem:[#allocation2 + $0x10] sm:$0x3]
    %v217 = vld [vmem:[#allocation7] sm:$0xff]
    %v218 = vld [vmem:[#allocation7 + $0x8] sm:$0xff]
    %v219 = vld [vmem:[#allocation7 + $0x10] sm:$0xff]
    %v220 = vld [vmem:[#allocation7 + $0x18] sm:$0xff]
    %v221 = vld [vmem:[#allocation7 + $0x20] sm:$0xff]
    %v222 = vld [vmem:[#allocation7 + $0x28] sm:$0xff]
    %v223 = vld [vmem:[#allocation7 + $0x30] sm:$0xff]
    %v224 = vld [vmem:[#allocation7 + $0x38] sm:$0xff]
    %v225 = vld [vmem:[#allocation7 + $0x40] sm:$0xff]
    %v226 = vld [vmem:[#allocation7 + $0x48] sm:$0xff]
    %v227 = vld [vmem:[#allocation7 + $0x50] sm:$0xff]
    %v228 = vld [vmem:[#allocation7 + $0x58] sm:$0xff]
    %v229 = vld [vmem:[#allocation7 + $0x60] sm:$0xff]
    %v230 = vld [vmem:[#allocation7 + $0x68] sm:$0xff]
    %v231 = vld [vmem:[#allocation7 + $0x70] sm:$0xff]
    %v232 = vld [vmem:[#allocation7 + $0x78] sm:$0xff]
    %v233 = vld [vmem:[#allocation7 + $0x80] sm:$0xff]
    %v234 = vld [vmem:[#allocation7 + $0x88] sm:$0xff]
    %v235 = vld [vmem:[#allocation7 + $0x90] sm:$0xff]
    %v236 = vld [vmem:[#allocation7 + $0x98] sm:$0xff]
    %v237 = vld [vmem:[#allocation7 + $0xa0] sm:$0xff]
    %v238 = vld [vmem:[#allocation7 + $0xa8] sm:$0xff]
    %v239 = vld [vmem:[#allocation7 + $0xb0] sm:$0xff]
    %v240 = vld [vmem:[#allocation7 + $0xb8] sm:$0xff]
    %v241 = vld [vmem:[#allocation7 + $0xc0] sm:$0xff]
    %v242 = vld [vmem:[#allocation7 + $0xc8] sm:$0xff]
    %v243 = vld [vmem:[#allocation7 + $0xd0] sm:$0xff]
    %v244 = vld [vmem:[#allocation7 + $0xd8] sm:$0xff]
    %v245 = vld [vmem:[#allocation7 + $0xe0] sm:$0xff]
    %v246 = vld [vmem:[#allocation7 + $0xe8] sm:$0xff]
    %v247 = vld [vmem:[#allocation7 + $0xf0] sm:$0xff]
    %v248 = vld [vmem:[#allocation7 + $0xf8] sm:$0xff]
    %v249 = vld [vmem:[#allocation7 + $0x100] sm:$0xff]
    %v250 = vld [vmem:[#allocation7 + $0x108] sm:$0xff]
    %v251 = vld [vmem:[#allocation7 + $0x110] sm:$0xff]
    %v252 = vld [vmem:[#allocation7 + $0x118] sm:$0xff]
    %v253 = vld [vmem:[#allocation7 + $0x120] sm:$0xff]
    %v254 = vld [vmem:[#allocation7 + $0x128] sm:$0xff]
    %v255 = vld [vmem:[#allocation7 + $0x130] sm:$0xff]
    %v256 = vld [vmem:[#allocation7 + $0x138] sm:$0xff]
    %v257 = vld [vmem:[#allocation7 + $0x140] sm:$0xff]
    %v258 = vld [vmem:[#allocation7 + $0x148] sm:$0xff]
    %v259 = vld [vmem:[#allocation7 + $0x150] sm:$0xff]
    %v260 = vld [vmem:[#allocation7 + $0x158] sm:$0xff]
    %v261 = vld [vmem:[#allocation7 + $0x160] sm:$0xff]
    %v262 = vld [vmem:[#allocation7 + $0x168] sm:$0xff]
    %v263 = vld [vmem:[#allocation7 + $0x170] sm:$0xff]
    %v264 = vld [vmem:[#allocation7 + $0x178] sm:$0xff]
    %v265 = vld [vmem:[#allocation7 + $0x180] sm:$0xff]
    %v266 = vld [vmem:[#allocation7 + $0x188] sm:$0xff]
    %v267 = vld [vmem:[#allocation7 + $0x190] sm:$0xff]
    %v268 = vld [vmem:[#allocation7 + $0x198] sm:$0xff]
    %v269 = vld [vmem:[#allocation7 + $0x1a0] sm:$0xff]
    %v270 = vld [vmem:[#allocation7 + $0x1a8] sm:$0xff]
    %v271 = vld [vmem:[#allocation7 + $0x1b0] sm:$0xff]
    %v272 = vld [vmem:[#allocation7 + $0x1b8] sm:$0xff]
    %v273 = vld [vmem:[#allocation7 + $0x1c0] sm:$0xff]
    %v274 = vld [vmem:[#allocation7 + $0x1c8] sm:$0xff]
    %v275 = vld [vmem:[#allocation7 + $0x1d0] sm:$0xff]
    %v276 = vld [vmem:[#allocation7 + $0x1d8] sm:$0xff]
    %v277 = vld [vmem:[#allocation7 + $0x1e0] sm:$0xff]
    %v278 = vld [vmem:[#allocation7 + $0x1e8] sm:$0xff]
    %v279 = vld [vmem:[#allocation7 + $0x1f0] sm:$0xff]
    %v280 = vld [vmem:[#allocation7 + $0x1f8] sm:$0xff]
    %v281 = vld [vmem:[#allocation7 + $0x200] sm:$0xff]
    %v282 = vld [vmem:[#allocation7 + $0x208] sm:$0xff]
    %v283 = vld [vmem:[#allocation7 + $0x210] sm:$0xff]
    %v284 = vld [vmem:[#allocation7 + $0x218] sm:$0xff]
    %v285 = vld [vmem:[#allocation7 + $0x220] sm:$0xff]
    %v286 = vld [vmem:[#allocation7 + $0x228] sm:$0xff]
    %v287 = vld [vmem:[#allocation7 + $0x230] sm:$0xff]
    %v288 = vld [vmem:[#allocation7 + $0x238] sm:$0xff]
    %v289 = vld [vmem:[#allocation7 + $0x240] sm:$0xff]
    %v290 = vld [vmem:[#allocation7 + $0x248] sm:$0xff]
    %v291 = vld [vmem:[#allocation7 + $0x250] sm:$0xff]
    %v292 = vld [vmem:[#allocation7 + $0x258] sm:$0xff]
    %v293 = vld [vmem:[#allocation7 + $0x260] sm:$0xff]
    %v294 = vld [vmem:[#allocation7 + $0x268] sm:$0xff]
    %v295 = vld [vmem:[#allocation7 + $0x270] sm:$0xff]
    %v296 = vld [vmem:[#allocation7 + $0x278] sm:$0xff]
    %v297 = vld [vmem:[#allocation7 + $0x280] sm:$0xff]
    %v298 = vld [vmem:[#allocation7 + $0x288] sm:$0xff]
    %v299 = vld [vmem:[#allocation7 + $0x290] sm:$0xff]
    %v300 = vld [vmem:[#allocation7 + $0x298] sm:$0xff]
    %v301 = vld [vmem:[#allocation7 + $0x2a0] sm:$0xff]
    %v302 = vld [vmem:[#allocation7 + $0x2a8] sm:$0xff]
    %v303 = vld [vmem:[#allocation7 + $0x2b0] sm:$0xff]
    %v304 = vld [vmem:[#allocation7 + $0x2b8] sm:$0xff]
    %v305 = vld [vmem:[#allocation7 + $0x2c0] sm:$0xff]
    %v306 = vld [vmem:[#allocation7 + $0x2c8] sm:$0xff]
    %v307 = vld [vmem:[#allocation7 + $0x2d0] sm:$0xff]
    %v308 = vld [vmem:[#allocation7 + $0x2d8] sm:$0xff]
    %v309 = vld [vmem:[#allocation7 + $0x2e0] sm:$0xff]
    %v310 = vld [vmem:[#allocation7 + $0x2e8] sm:$0xff]
    %v311 = vld [vmem:[#allocation7 + $0x2f0] sm:$0xff]
    %v312 = vld [vmem:[#allocation7 + $0x2f8] sm:$0xff]
    %v313 = vld [vmem:[#allocation7 + $0x300] sm:$0xff]
    %v314 = vld [vmem:[#allocation7 + $0x308] sm:$0xff]
    %v315 = vld [vmem:[#allocation7 + $0x310] sm:$0xff]
    %v316 = vld [vmem:[#allocation7 + $0x318] sm:$0xff]
    %v317 = vld [vmem:[#allocation7 + $0x320] sm:$0xff]
    %v318 = vld [vmem:[#allocation7 + $0x328] sm:$0xff]
    %v319 = vld [vmem:[#allocation7 + $0x330] sm:$0xff]
    %v320 = vld [vmem:[#allocation7 + $0x338] sm:$0xff]
    %v321 = vld [vmem:[#allocation7 + $0x340] sm:$0xff]
    %v322 = vld [vmem:[#allocation7 + $0x348] sm:$0xff]
    %v323 = vld [vmem:[#allocation7 + $0x350] sm:$0xff]
    %v324 = vld [vmem:[#allocation7 + $0x358] sm:$0xff]
    %v325 = vld [vmem:[#allocation7 + $0x360] sm:$0xff]
    %v326 = vld [vmem:[#allocation7 + $0x368] sm:$0xff]
    %v327 = vld [vmem:[#allocation7 + $0x370] sm:$0xff]
    %v328 = vld [vmem:[#allocation7 + $0x378] sm:$0xff]
    %v329 = vld [vmem:[#allocation7 + $0x380] sm:$0xff]
    %v330 = vld [vmem:[#allocation7 + $0x388] sm:$0xff]
    %v331 = vld [vmem:[#allocation7 + $0x390] sm:$0xff]
    %v332 = vld [vmem:[#allocation7 + $0x398] sm:$0xff]
    %v333 = vld [vmem:[#allocation7 + $0x3a0] sm:$0xff]
    %v334 = vld [vmem:[#allocation7 + $0x3a8] sm:$0xff]
    %v335 = vld [vmem:[#allocation7 + $0x3b0] sm:$0xff]
    %v336 = vld [vmem:[#allocation7 + $0x3b8] sm:$0xff]
    %v337 = vld [vmem:[#allocation7 + $0x3c0] sm:$0xff]
    %v338 = vld [vmem:[#allocation7 + $0x3c8] sm:$0xff]
    %v339 = vld [vmem:[#allocation7 + $0x3d0] sm:$0xff]
    %v340 = vld [vmem:[#allocation7 + $0x3d8] sm:$0xff]
    %v341 = vld [vmem:[#allocation7 + $0x3e0] sm:$0xff]
    %v342 = vld [vmem:[#allocation7 + $0x3e8] sm:$0xff]
    %v343 = vld [vmem:[#allocation7 + $0x3f0] sm:$0xff]
    %v344 = vld [vmem:[#allocation7 + $0x3f8] sm:$0xff]
    %v345 = vld [vmem:[#allocation7 + $0x400] sm:$0xff]
    %v346 = vld [vmem:[#allocation7 + $0x408] sm:$0xff]
    %v347 = vld [vmem:[#allocation7 + $0x410] sm:$0xff]
    %v348 = vld [vmem:[#allocation7 + $0x418] sm:$0xff]
    %v349 = vld [vmem:[#allocation7 + $0x420] sm:$0xff]
    %v350 = vld [vmem:[#allocation7 + $0x428] sm:$0xff]
    %v351 = vld [vmem:[#allocation7 + $0x430] sm:$0xff]
    %v352 = vld [vmem:[#allocation7 + $0x438] sm:$0xff]
    %v353 = vld [vmem:[#allocation7 + $0x440] sm:$0xff]
    %v354 = vld [vmem:[#allocation7 + $0x448] sm:$0xff]
    %v355 = vld [vmem:[#allocation7 + $0x450] sm:$0xff]
    %v356 = vld [vmem:[#allocation7 + $0x458] sm:$0xff]
    %v357 = vld [vmem:[#allocation7 + $0x460] sm:$0xff]
    %v358 = vld [vmem:[#allocation7 + $0x468] sm:$0xff]
    %v359 = vld [vmem:[#allocation7 + $0x470] sm:$0xff]
    %v360 = vld [vmem:[#allocation7 + $0x478] sm:$0xff]
    %v361 = vld [vmem:[#allocation7 + $0x480] sm:$0xff]
    %v362 = vld [vmem:[#allocation7 + $0x488] sm:$0xff]
    %v363 = vld [vmem:[#allocation7 + $0x490] sm:$0xff]
    %v364 = vld [vmem:[#allocation7 + $0x498] sm:$0xff]
    %v365 = vld [vmem:[#allocation7 + $0x4a0] sm:$0xff]
    %v366 = vld [vmem:[#allocation7 + $0x4a8] sm:$0xff]
    %v367 = vld [vmem:[#allocation7 + $0x4b0] sm:$0xff]
    %v368 = vld [vmem:[#allocation7 + $0x4b8] sm:$0xff]
    %v369 = vld [vmem:[#allocation7 + $0x4c0] sm:$0xff]
    %v370 = vld [vmem:[#allocation7 + $0x4c8] sm:$0xff]
    %v371 = vld [vmem:[#allocation7 + $0x4d0] sm:$0xff]
    %v372 = vld [vmem:[#allocation7 + $0x4d8] sm:$0xff]
    %v373 = vld [vmem:[#allocation7 + $0x4e0] sm:$0xff]
    %v374 = vld [vmem:[#allocation7 + $0x4e8] sm:$0xff]
    %v375 = vld [vmem:[#allocation7 + $0x4f0] sm:$0xff]
    %v376 = vld [vmem:[#allocation7 + $0x4f8] sm:$0xff]
    %v377 = vld [vmem:[#allocation7 + $0x500] sm:$0xff]
    %v378 = vld [vmem:[#allocation7 + $0x508] sm:$0xff]
    %v379 = vld [vmem:[#allocation7 + $0x510] sm:$0xff]
    %v380 = vld [vmem:[#allocation7 + $0x518] sm:$0xff]
    %v381 = vld [vmem:[#allocation7 + $0x520] sm:$0xff]
    %v382 = vld [vmem:[#allocation7 + $0x528] sm:$0xff]
    %v383 = vld [vmem:[#allocation7 + $0x530] sm:$0xff]
    %v384 = vld [vmem:[#allocation7 + $0x538] sm:$0xff]
    %v385 = vld [vmem:[#allocation7 + $0x540] sm:$0xff]
    %v386 = vld [vmem:[#allocation7 + $0x548] sm:$0xff]
    %v387 = vld [vmem:[#allocation7 + $0x550] sm:$0xff]
    %v388 = vld [vmem:[#allocation7 + $0x558] sm:$0xff]
    %v389 = vld [vmem:[#allocation7 + $0x560] sm:$0xff]
    %v390 = vld [vmem:[#allocation7 + $0x568] sm:$0xff]
    %v391 = vld [vmem:[#allocation7 + $0x570] sm:$0xff]
    %v392 = vld [vmem:[#allocation7 + $0x578] sm:$0xff]
    %v393 = vld [vmem:[#allocation7 + $0x580] sm:$0xff]
    %v394 = vld [vmem:[#allocation7 + $0x588] sm:$0xff]
    %v395 = vld [vmem:[#allocation7 + $0x590] sm:$0xff]
    %v396 = vld [vmem:[#allocation7 + $0x598] sm:$0xff]
    %v397 = vld [vmem:[#allocation7 + $0x5a0] sm:$0xff]
    %v398 = vld [vmem:[#allocation7 + $0x5a8] sm:$0xff]
    %v399 = vld [vmem:[#allocation7 + $0x5b0] sm:$0xff]
    %v400 = vld [vmem:[#allocation7 + $0x5b8] sm:$0xff]
    %v401 = vld [vmem:[#allocation7 + $0x5c0] sm:$0xff]
    %v402 = vld [vmem:[#allocation7 + $0x5c8] sm:$0xff]
    %v403 = vld [vmem:[#allocation7 + $0x5d0] sm:$0xff]
    %v404 = vld [vmem:[#allocation7 + $0x5d8] sm:$0xff]
    %v405 = vld [vmem:[#allocation7 + $0x5e0] sm:$0xff]
    %v406 = vld [vmem:[#allocation7 + $0x5e8] sm:$0xff]
    %v407 = vld [vmem:[#allocation7 + $0x5f0] sm:$0xff]
    %v408 = vld [vmem:[#allocation7 + $0x5f8] sm:$0xff]
    %v409 = vld [vmem:[#allocation7 + $0x600] sm:$0xff]
    %v410 = vld [vmem:[#allocation7 + $0x608] sm:$0xff]
    %v411 = vld [vmem:[#allocation7 + $0x610] sm:$0xff]
    %v412 = vld [vmem:[#allocation7 + $0x618] sm:$0xff]
    %v413 = vld [vmem:[#allocation7 + $0x620] sm:$0xff]
    %v414 = vld [vmem:[#allocation7 + $0x628] sm:$0xff]
    %v415 = vld [vmem:[#allocation7 + $0x630] sm:$0xff]
    %v416 = vld [vmem:[#allocation7 + $0x638] sm:$0xff]
    %v417 = vld [vmem:[#allocation7 + $0x640] sm:$0xff]
    %v418 = vld [vmem:[#allocation7 + $0x648] sm:$0xff]
    %v419 = vld [vmem:[#allocation7 + $0x650] sm:$0xff]
    %v420 = vld [vmem:[#allocation7 + $0x658] sm:$0xff]
    %v421 = vld [vmem:[#allocation7 + $0x660] sm:$0xff]
    %v422 = vld [vmem:[#allocation7 + $0x668] sm:$0xff]
    %v423 = vld [vmem:[#allocation7 + $0x670] sm:$0xff]
    %v424 = vld [vmem:[#allocation7 + $0x678] sm:$0xff]
    %v425 = vld [vmem:[#allocation7 + $0x680] sm:$0xff]
    %v426 = vld [vmem:[#allocation7 + $0x688] sm:$0xff]
    %v427 = vld [vmem:[#allocation7 + $0x690] sm:$0xff]
    %v428 = vld [vmem:[#allocation7 + $0x698] sm:$0xff]
    %v429 = vld [vmem:[#allocation7 + $0x6a0] sm:$0xff]
    %v430 = vld [vmem:[#allocation7 + $0x6a8] sm:$0xff]
    %v431 = vld [vmem:[#allocation7 + $0x6b0] sm:$0xff]
    %v432 = vld [vmem:[#allocation7 + $0x6b8] sm:$0xff]
    %v433 = vld [vmem:[#allocation7 + $0x6c0] sm:$0xff]
    %v434 = vld [vmem:[#allocation7 + $0x6c8] sm:$0xff]
    %v435 = vld [vmem:[#allocation7 + $0x6d0] sm:$0xff]
    %v436 = vld [vmem:[#allocation7 + $0x6d8] sm:$0xff]
    %v437 = vld [vmem:[#allocation7 + $0x6e0] sm:$0xff]
    %v438 = vld [vmem:[#allocation7 + $0x6e8] sm:$0xff]
    %v439 = vld [vmem:[#allocation7 + $0x6f0] sm:$0xff]
    %v440 = vld [vmem:[#allocation7 + $0x6f8] sm:$0xff]
    %v441 = vld [vmem:[#allocation7 + $0x700] sm:$0xff]
    %v442 = vld [vmem:[#allocation7 + $0x708] sm:$0xff]
    %v443 = vld [vmem:[#allocation7 + $0x710] sm:$0xff]
    %v444 = vld [vmem:[#allocation7 + $0x718] sm:$0xff]
    %v445 = vld [vmem:[#allocation7 + $0x720] sm:$0xff]
    %v446 = vld [vmem:[#allocation7 + $0x728] sm:$0xff]
    %v447 = vld [vmem:[#allocation7 + $0x730] sm:$0xff]
    %v448 = vld [vmem:[#allocation7 + $0x738] sm:$0xff]
    %v449 = vld [vmem:[#allocation7 + $0x740] sm:$0xff]
    %v450 = vld [vmem:[#allocation7 + $0x748] sm:$0xff]
    %v451 = vld [vmem:[#allocation7 + $0x750] sm:$0xff]
    %v452 = vld [vmem:[#allocation7 + $0x758] sm:$0xff]
    %v453 = vld [vmem:[#allocation7 + $0x760] sm:$0xff]
    %v454 = vld [vmem:[#allocation7 + $0x768] sm:$0xff]
    %v455 = vld [vmem:[#allocation7 + $0x770] sm:$0xff]
    %v456 = vld [vmem:[#allocation7 + $0x778] sm:$0xff]
    %v457 = vld [vmem:[#allocation7 + $0x780] sm:$0xff]
    %v458 = vld [vmem:[#allocation7 + $0x788] sm:$0xff]
    %v459 = vld [vmem:[#allocation7 + $0x790] sm:$0xff]
    %v460 = vld [vmem:[#allocation7 + $0x798] sm:$0xff]
    %v461 = vld [vmem:[#allocation7 + $0x7a0] sm:$0xff]
    %v462 = vld [vmem:[#allocation7 + $0x7a8] sm:$0xff]
    %v463 = vld [vmem:[#allocation7 + $0x7b0] sm:$0xff]
    %v464 = vld [vmem:[#allocation7 + $0x7b8] sm:$0xff]
    %v465 = vld [vmem:[#allocation7 + $0x7c0] sm:$0xff]
    %v466 = vld [vmem:[#allocation7 + $0x7c8] sm:$0xff]
    %v467 = vld [vmem:[#allocation7 + $0x7d0] sm:$0xff]
    %v468 = vld [vmem:[#allocation7 + $0x7d8] sm:$0xff]
    %v469 = vld [vmem:[#allocation7 + $0x7e0] sm:$0xff]
    %v470 = vld [vmem:[#allocation7 + $0x7e8] sm:$0xff]
    %v471 = vld [vmem:[#allocation7 + $0x7f0] sm:$0xff]
    %v472 = vld [vmem:[#allocation7 + $0x7f8] sm:$0xff]
    %v473 = vld [vmem:[#allocation7 + $0x800] sm:$0xff]
    %v474 = vld [vmem:[#allocation7 + $0x808] sm:$0xff]
    %v475 = vld [vmem:[#allocation7 + $0x810] sm:$0xff]
    %v476 = vld [vmem:[#allocation7 + $0x818] sm:$0xff]
    %v477 = vld [vmem:[#allocation7 + $0x820] sm:$0xff]
    %v478 = vld [vmem:[#allocation7 + $0x828] sm:$0xff]
    %v479 = vld [vmem:[#allocation7 + $0x830] sm:$0xff]
    %v480 = vld [vmem:[#allocation7 + $0x838] sm:$0xff]
    %v481 = vld [vmem:[#allocation7 + $0x840] sm:$0xff]
    %v482 = vld [vmem:[#allocation7 + $0x848] sm:$0xff]
    %v483 = vld [vmem:[#allocation7 + $0x850] sm:$0xff]
    %v484 = vld [vmem:[#allocation7 + $0x858] sm:$0xff]
    %v485 = vld [vmem:[#allocation7 + $0x860] sm:$0xff]
    %v486 = vld [vmem:[#allocation7 + $0x868] sm:$0xff]
    %v487 = vld [vmem:[#allocation7 + $0x870] sm:$0xff]
    %v488 = vld [vmem:[#allocation7 + $0x878] sm:$0xff]
    %v489 = vld [vmem:[#allocation7 + $0x880] sm:$0xff]
    %v490 = vld [vmem:[#allocation7 + $0x888] sm:$0xff]
    %v491 = vld [vmem:[#allocation7 + $0x890] sm:$0xff]
    %v492 = vld [vmem:[#allocation7 + $0x898] sm:$0xff]
    %v493 = vld [vmem:[#allocation7 + $0x8a0] sm:$0xff]
    %v494 = vld [vmem:[#allocation7 + $0x8a8] sm:$0xff]
    %v495 = vld [vmem:[#allocation7 + $0x8b0] sm:$0xff]
    %v496 = vld [vmem:[#allocation7 + $0x8b8] sm:$0xff]
    %v497 = vld [vmem:[#allocation7 + $0x8c0] sm:$0xff]
    %v498 = vld [vmem:[#allocation7 + $0x8c8] sm:$0xff]
    %v499 = vld [vmem:[#allocation7 + $0x8d0] sm:$0xff]
    %v500 = vld [vmem:[#allocation7 + $0x8d8] sm:$0xff]
    %v501 = vld [vmem:[#allocation7 + $0x8e0] sm:$0xff]
    %v502 = vld [vmem:[#allocation7 + $0x8e8] sm:$0xff]
    %v503 = vld [vmem:[#allocation7 + $0x8f0] sm:$0xff]
    %v504 = vld [vmem:[#allocation7 + $0x8f8] sm:$0xff]
    %v505 = vlaneseq
    %v506 = vshrl.u32 %v505, 7
    %v507 = vsub.s32 0, %v506
    %v508 = vrot.slane %v129, %v507
    %v509 = vlaneseq
    %v510 = vshrl.u32 %v509, 7
    %v511 = vsub.s32 0, %v510
    %v512 = vrot.slane %v130, %v511
    %v516 = vcombine.high %v214, %v214
    %v518 = vunpack.c.l.s4 1966171168
    %v519 = vunpack.c.0.s8 %v518
    %v520 = vlaneseq
    %v521 = vshrl.u32 %v520, 7
    %v522 = vsub.s32 %v519, %v521
    %v523 = vrot.slane %v214, %v522
    %v525 = vunpack.c.l.s4 1966171168
    %v526 = vunpack.c.0.s8 %v525
    %v527 = vlaneseq
    %v528 = vshrl.u32 %v527, 7
    %v529 = vsub.s32 %v526, %v528
    %v530 = vrot.slane %v516, %v529
    %v531 = vcombine.high %v523, %v523
    %v532 = vcombine.high %v530, %v530
    %v534 = vunpack.c.l.s4 1966171168
    %v535 = vunpack.c.0.s8 %v534
    %v536 = vlaneseq
    %v537 = vshrl.u32 %v536, 7
    %v538 = vsub.s32 %v535, %v537
    %v539 = vrot.slane %v523, %v538
    %v541 = vunpack.c.l.s4 1966171168
    %v542 = vunpack.c.0.s8 %v541
    %v543 = vlaneseq
    %v544 = vshrl.u32 %v543, 7
    %v545 = vsub.s32 %v542, %v544
    %v546 = vrot.slane %v530, %v545
    %v548 = vunpack.c.l.s4 1966171168
    %v549 = vunpack.c.0.s8 %v548
    %v550 = vlaneseq
    %v551 = vshrl.u32 %v550, 7
    %v552 = vsub.s32 %v549, %v551
    %v553 = vrot.slane %v531, %v552
    %v555 = vunpack.c.l.s4 1966171168
    %v556 = vunpack.c.0.s8 %v555
    %v557 = vlaneseq
    %v558 = vshrl.u32 %v557, 7
    %v559 = vsub.s32 %v556, %v558
    %v560 = vrot.slane %v532, %v559
    %v561 = vcombine.high %v539, %v539
    %v562 = vcombine.high %v546, %v546
    %v563 = vcombine.high %v553, %v553
    %v564 = vcombine.high %v560, %v560
    %v565 = vcombine.high %v215, %v215
    %v567 = vunpack.c.l.s4 1966171168
    %v568 = vunpack.c.0.s8 %v567
    %v569 = vlaneseq
    %v570 = vshrl.u32 %v569, 7
    %v571 = vsub.s32 %v568, %v570
    %v572 = vrot.slane %v215, %v571
    %v574 = vunpack.c.l.s4 1966171168
    %v575 = vunpack.c.0.s8 %v574
    %v576 = vlaneseq
    %v577 = vshrl.u32 %v576, 7
    %v578 = vsub.s32 %v575, %v577
    %v579 = vrot.slane %v565, %v578
    %v580 = vcombine.high %v572, %v572
    %v581 = vcombine.high %v579, %v579
    %v583 = vunpack.c.l.s4 1966171168
    %v584 = vunpack.c.0.s8 %v583
    %v585 = vlaneseq
    %v586 = vshrl.u32 %v585, 7
    %v587 = vsub.s32 %v584, %v586
    %v588 = vrot.slane %v572, %v587
    %v590 = vunpack.c.l.s4 1966171168
    %v591 = vunpack.c.0.s8 %v590
    %v592 = vlaneseq
    %v593 = vshrl.u32 %v592, 7
    %v594 = vsub.s32 %v591, %v593
    %v595 = vrot.slane %v579, %v594
    %v597 = vunpack.c.l.s4 1966171168
    %v598 = vunpack.c.0.s8 %v597
    %v599 = vlaneseq
    %v600 = vshrl.u32 %v599, 7
    %v601 = vsub.s32 %v598, %v600
    %v602 = vrot.slane %v580, %v601
    %v604 = vunpack.c.l.s4 1966171168
    %v605 = vunpack.c.0.s8 %v604
    %v606 = vlaneseq
    %v607 = vshrl.u32 %v606, 7
    %v608 = vsub.s32 %v605, %v607
    %v609 = vrot.slane %v581, %v608
    %v610 = vcombine.high %v588, %v588
    %v611 = vcombine.high %v595, %v595
    %v612 = vcombine.high %v602, %v602
    %v613 = vcombine.high %v609, %v609
    %v615 = vunpack.c.l.s4 1966171168
    %v616 = vunpack.c.0.s8 %v615
    %v617 = vlaneseq
    %v618 = vshrl.u32 %v617, 7
    %v619 = vsub.s32 %v616, %v618
    %v620 = vrot.slane %v216, %v619
    %v621 = vcombine.high %v620, %v620
    %v623 = vunpack.c.l.s4 1966171168
    %v624 = vunpack.c.0.s8 %v623
    %v625 = vlaneseq
    %v626 = vshrl.u32 %v625, 7
    %v627 = vsub.s32 %v624, %v626
    %v628 = vrot.slane %v620, %v627
    %v630 = vunpack.c.l.s4 1966171168
    %v631 = vunpack.c.0.s8 %v630
    %v632 = vlaneseq
    %v633 = vshrl.u32 %v632, 7
    %v634 = vsub.s32 %v631, %v633
    %v635 = vrot.slane %v621, %v634
    %v942 = vunpack.c.l.b16 %v217
    %v943 = vunpack.c.h.b16 %v217
    %v944 = vunpack.c.l.b16 %v218
    %v945 = vunpack.c.h.b16 %v218
    %v946 = vunpack.c.l.b16 %v219
    %v947 = vunpack.c.h.b16 %v219
    %v948 = vunpack.c.l.b16 %v220
    %v949 = vunpack.c.h.b16 %v220
    %v950 = vunpack.c.l.b16 %v221
    %v951 = vunpack.c.h.b16 %v221
    %v952 = vunpack.c.l.b16 %v222
    %v953 = vunpack.c.h.b16 %v222
    %v954 = vunpack.c.l.b16 %v223
    %v955 = vunpack.c.h.b16 %v223
    %v956 = vunpack.c.l.b16 %v224
    %v957 = vunpack.c.h.b16 %v224
    %v958 = vunpack.c.l.b16 %v225
    %v959 = vunpack.c.h.b16 %v225
    %v960 = vunpack.c.l.b16 %v226
    %v961 = vunpack.c.h.b16 %v226
    %v962 = vunpack.c.l.b16 %v227
    %v963 = vunpack.c.h.b16 %v227
    %v964 = vunpack.c.l.b16 %v228
    %v965 = vunpack.c.h.b16 %v228
    %v966 = vunpack.c.l.b16 %v229
    %v967 = vunpack.c.h.b16 %v229
    %v968 = vunpack.c.l.b16 %v230
    %v969 = vunpack.c.h.b16 %v230
    %v970 = vunpack.c.l.b16 %v231
    %v971 = vunpack.c.h.b16 %v231
    %v972 = vunpack.c.l.b16 %v232
    %v973 = vunpack.c.h.b16 %v232
    %v974 = vunpack.c.l.b16 %v233
    %v975 = vunpack.c.h.b16 %v233
    %v976 = vunpack.c.l.b16 %v234
    %v977 = vunpack.c.h.b16 %v234
    %v978 = vunpack.c.l.b16 %v235
    %v979 = vunpack.c.h.b16 %v235
    %v980 = vunpack.c.l.b16 %v236
    %v981 = vunpack.c.h.b16 %v236
    %v982 = vunpack.c.l.b16 %v237
    %v983 = vunpack.c.h.b16 %v237
    %v984 = vunpack.c.l.b16 %v238
    %v985 = vunpack.c.h.b16 %v238
    %v986 = vunpack.c.l.b16 %v239
    %v987 = vunpack.c.h.b16 %v239
    %v988 = vunpack.c.l.b16 %v240
    %v989 = vunpack.c.h.b16 %v240
    %v990 = vunpack.c.l.b16 %v241
    %v991 = vunpack.c.h.b16 %v241
    %v992 = vunpack.c.l.b16 %v242
    %v993 = vunpack.c.h.b16 %v242
    %v994 = vunpack.c.l.b16 %v243
    %v995 = vunpack.c.h.b16 %v243
    %v996 = vunpack.c.l.b16 %v244
    %v997 = vunpack.c.h.b16 %v244
    %v998 = vunpack.c.l.b16 %v245
    %v999 = vunpack.c.h.b16 %v245
    %v1000 = vunpack.c.l.b16 %v246
    %v1001 = vunpack.c.h.b16 %v246
    %v1002 = vunpack.c.l.b16 %v247
    %v1003 = vunpack.c.h.b16 %v247
    %v1004 = vunpack.c.l.b16 %v248
    %v1005 = vunpack.c.h.b16 %v248
    %v1006 = vunpack.c.l.b16 %v249
    %v1007 = vunpack.c.h.b16 %v249
    %v1008 = vunpack.c.l.b16 %v250
    %v1009 = vunpack.c.h.b16 %v250
    %v1010 = vunpack.c.l.b16 %v251
    %v1011 = vunpack.c.h.b16 %v251
    %v1012 = vunpack.c.l.b16 %v252
    %v1013 = vunpack.c.h.b16 %v252
    %v1014 = vunpack.c.l.b16 %v253
    %v1015 = vunpack.c.h.b16 %v253
    %v1016 = vunpack.c.l.b16 %v254
    %v1017 = vunpack.c.h.b16 %v254
    %v1018 = vunpack.c.l.b16 %v255
    %v1019 = vunpack.c.h.b16 %v255
    %v1020 = vunpack.c.l.b16 %v256
    %v1021 = vunpack.c.h.b16 %v256
    %v1022 = vunpack.c.l.b16 %v257
    %v1023 = vunpack.c.h.b16 %v257
    %v1024 = vunpack.c.l.b16 %v258
    %v1025 = vunpack.c.h.b16 %v258
    %v1026 = vunpack.c.l.b16 %v259
    %v1027 = vunpack.c.h.b16 %v259
    %v1028 = vunpack.c.l.b16 %v260
    %v1029 = vunpack.c.h.b16 %v260
    %v1030 = vunpack.c.l.b16 %v261
    %v1031 = vunpack.c.h.b16 %v261
    %v1032 = vunpack.c.l.b16 %v262
    %v1033 = vunpack.c.h.b16 %v262
    %v1034 = vunpack.c.l.b16 %v263
    %v1035 = vunpack.c.h.b16 %v263
    %v1036 = vunpack.c.l.b16 %v264
    %v1037 = vunpack.c.h.b16 %v264
    %v1038 = vunpack.c.l.b16 %v265
    %v1039 = vunpack.c.h.b16 %v265
    %v1040 = vunpack.c.l.b16 %v266
    %v1041 = vunpack.c.h.b16 %v266
    %v1042 = vunpack.c.l.b16 %v267
    %v1043 = vunpack.c.h.b16 %v267
    %v1044 = vunpack.c.l.b16 %v268
    %v1045 = vunpack.c.h.b16 %v268
    %v1046 = vunpack.c.l.b16 %v269
    %v1047 = vunpack.c.h.b16 %v269
    %v1048 = vunpack.c.l.b16 %v270
    %v1049 = vunpack.c.h.b16 %v270
    %v1050 = vunpack.c.l.b16 %v271
    %v1051 = vunpack.c.h.b16 %v271
    %v1052 = vunpack.c.l.b16 %v272
    %v1053 = vunpack.c.h.b16 %v272
    %v1054 = vunpack.c.l.b16 %v273
    %v1055 = vunpack.c.h.b16 %v273
    %v1056 = vunpack.c.l.b16 %v274
    %v1057 = vunpack.c.h.b16 %v274
    %v1058 = vunpack.c.l.b16 %v275
    %v1059 = vunpack.c.h.b16 %v275
    %v1060 = vunpack.c.l.b16 %v276
    %v1061 = vunpack.c.h.b16 %v276
    %v1062 = vunpack.c.l.b16 %v277
    %v1063 = vunpack.c.h.b16 %v277
    %v1064 = vunpack.c.l.b16 %v278
    %v1065 = vunpack.c.h.b16 %v278
    %v1066 = vunpack.c.l.b16 %v279
    %v1067 = vunpack.c.h.b16 %v279
    %v1068 = vunpack.c.l.b16 %v280
    %v1069 = vunpack.c.h.b16 %v280
    %v1070 = vunpack.c.l.b16 %v281
    %v1071 = vunpack.c.h.b16 %v281
    %v1072 = vunpack.c.l.b16 %v282
    %v1073 = vunpack.c.h.b16 %v282
    %v1074 = vunpack.c.l.b16 %v283
    %v1075 = vunpack.c.h.b16 %v283
    %v1076 = vunpack.c.l.b16 %v284
    %v1077 = vunpack.c.h.b16 %v284
    %v1078 = vunpack.c.l.b16 %v285
    %v1079 = vunpack.c.h.b16 %v285
    %v1080 = vunpack.c.l.b16 %v286
    %v1081 = vunpack.c.h.b16 %v286
    %v1082 = vunpack.c.l.b16 %v287
    %v1083 = vunpack.c.h.b16 %v287
    %v1084 = vunpack.c.l.b16 %v288
    %v1085 = vunpack.c.h.b16 %v288
    %v1086 = vunpack.c.l.b16 %v289
    %v1087 = vunpack.c.h.b16 %v289
    %v1088 = vunpack.c.l.b16 %v290
    %v1089 = vunpack.c.h.b16 %v290
    %v1090 = vunpack.c.l.b16 %v291
    %v1091 = vunpack.c.h.b16 %v291
    %v1092 = vunpack.c.l.b16 %v292
    %v1093 = vunpack.c.h.b16 %v292
    %v1094 = vunpack.c.l.b16 %v293
    %v1095 = vunpack.c.h.b16 %v293
    %v1096 = vunpack.c.l.b16 %v294
    %v1097 = vunpack.c.h.b16 %v294
    %v1098 = vunpack.c.l.b16 %v295
    %v1099 = vunpack.c.h.b16 %v295
    %v1100 = vunpack.c.l.b16 %v296
    %v1101 = vunpack.c.h.b16 %v296
    %v1102 = vunpack.c.l.b16 %v297
    %v1103 = vunpack.c.h.b16 %v297
    %v1104 = vunpack.c.l.b16 %v298
    %v1105 = vunpack.c.h.b16 %v298
    %v1106 = vunpack.c.l.b16 %v299
    %v1107 = vunpack.c.h.b16 %v299
    %v1108 = vunpack.c.l.b16 %v300
    %v1109 = vunpack.c.h.b16 %v300
    %v1110 = vunpack.c.l.b16 %v301
    %v1111 = vunpack.c.h.b16 %v301
    %v1112 = vunpack.c.l.b16 %v302
    %v1113 = vunpack.c.h.b16 %v302
    %v1114 = vunpack.c.l.b16 %v303
    %v1115 = vunpack.c.h.b16 %v303
    %v1116 = vunpack.c.l.b16 %v304
    %v1117 = vunpack.c.h.b16 %v304
    %v1118 = vunpack.c.l.b16 %v305
    %v1119 = vunpack.c.h.b16 %v305
    %v1120 = vunpack.c.l.b16 %v306
    %v1121 = vunpack.c.h.b16 %v306
    %v1122 = vunpack.c.l.b16 %v307
    %v1123 = vunpack.c.h.b16 %v307
    %v1124 = vunpack.c.l.b16 %v308
    %v1125 = vunpack.c.h.b16 %v308
    %v1126 = vunpack.c.l.b16 %v309
    %v1127 = vunpack.c.h.b16 %v309
    %v1128 = vunpack.c.l.b16 %v310
    %v1129 = vunpack.c.h.b16 %v310
    %v1130 = vunpack.c.l.b16 %v311
    %v1131 = vunpack.c.h.b16 %v311
    %v1132 = vunpack.c.l.b16 %v312
    %v1133 = vunpack.c.h.b16 %v312
    %v1134 = vunpack.c.l.b16 %v313
    %v1135 = vunpack.c.h.b16 %v313
    %v1136 = vunpack.c.l.b16 %v314
    %v1137 = vunpack.c.h.b16 %v314
    %v1138 = vunpack.c.l.b16 %v315
    %v1139 = vunpack.c.h.b16 %v315
    %v1140 = vunpack.c.l.b16 %v316
    %v1141 = vunpack.c.h.b16 %v316
    %v1142 = vunpack.c.l.b16 %v317
    %v1143 = vunpack.c.h.b16 %v317
    %v1144 = vunpack.c.l.b16 %v318
    %v1145 = vunpack.c.h.b16 %v318
    %v1146 = vunpack.c.l.b16 %v319
    %v1147 = vunpack.c.h.b16 %v319
    %v1148 = vunpack.c.l.b16 %v320
    %v1149 = vunpack.c.h.b16 %v320
    %v1150 = vunpack.c.l.b16 %v321
    %v1151 = vunpack.c.h.b16 %v321
    %v1152 = vunpack.c.l.b16 %v322
    %v1153 = vunpack.c.h.b16 %v322
    %v1154 = vunpack.c.l.b16 %v323
    %v1155 = vunpack.c.h.b16 %v323
    %v1156 = vunpack.c.l.b16 %v324
    %v1157 = vunpack.c.h.b16 %v324
    %v1158 = vunpack.c.l.b16 %v325
    %v1159 = vunpack.c.h.b16 %v325
    %v1160 = vunpack.c.l.b16 %v326
    %v1161 = vunpack.c.h.b16 %v326
    %v1162 = vunpack.c.l.b16 %v327
    %v1163 = vunpack.c.h.b16 %v327
    %v1164 = vunpack.c.l.b16 %v328
    %v1165 = vunpack.c.h.b16 %v328
    %v1166 = vunpack.c.l.b16 %v329
    %v1167 = vunpack.c.h.b16 %v329
    %v1168 = vunpack.c.l.b16 %v330
    %v1169 = vunpack.c.h.b16 %v330
    %v1170 = vunpack.c.l.b16 %v331
    %v1171 = vunpack.c.h.b16 %v331
    %v1172 = vunpack.c.l.b16 %v332
    %v1173 = vunpack.c.h.b16 %v332
    %v1174 = vunpack.c.l.b16 %v333
    %v1175 = vunpack.c.h.b16 %v333
    %v1176 = vunpack.c.l.b16 %v334
    %v1177 = vunpack.c.h.b16 %v334
    %v1178 = vunpack.c.l.b16 %v335
    %v1179 = vunpack.c.h.b16 %v335
    %v1180 = vunpack.c.l.b16 %v336
    %v1181 = vunpack.c.h.b16 %v336
    %v1182 = vunpack.c.l.b16 %v337
    %v1183 = vunpack.c.h.b16 %v337
    %v1184 = vunpack.c.l.b16 %v338
    %v1185 = vunpack.c.h.b16 %v338
    %v1186 = vunpack.c.l.b16 %v339
    %v1187 = vunpack.c.h.b16 %v339
    %v1188 = vunpack.c.l.b16 %v340
    %v1189 = vunpack.c.h.b16 %v340
    %v1190 = vunpack.c.l.b16 %v341
    %v1191 = vunpack.c.h.b16 %v341
    %v1192 = vunpack.c.l.b16 %v342
    %v1193 = vunpack.c.h.b16 %v342
    %v1194 = vunpack.c.l.b16 %v343
    %v1195 = vunpack.c.h.b16 %v343
    %v1196 = vunpack.c.l.b16 %v344
    %v1197 = vunpack.c.h.b16 %v344
    %v1198 = vunpack.c.l.b16 %v345
    %v1199 = vunpack.c.h.b16 %v345
    %v1200 = vunpack.c.l.b16 %v346
    %v1201 = vunpack.c.h.b16 %v346
    %v1202 = vunpack.c.l.b16 %v347
    %v1203 = vunpack.c.h.b16 %v347
    %v1204 = vunpack.c.l.b16 %v348
    %v1205 = vunpack.c.h.b16 %v348
    %v1206 = vunpack.c.l.b16 %v349
    %v1207 = vunpack.c.h.b16 %v349
    %v1208 = vunpack.c.l.b16 %v350
    %v1209 = vunpack.c.h.b16 %v350
    %v1210 = vunpack.c.l.b16 %v351
    %v1211 = vunpack.c.h.b16 %v351
    %v1212 = vunpack.c.l.b16 %v352
    %v1213 = vunpack.c.h.b16 %v352
    %v1214 = vunpack.c.l.b16 %v353
    %v1215 = vunpack.c.h.b16 %v353
    %v1216 = vunpack.c.l.b16 %v354
    %v1217 = vunpack.c.h.b16 %v354
    %v1218 = vunpack.c.l.b16 %v355
    %v1219 = vunpack.c.h.b16 %v355
    %v1220 = vunpack.c.l.b16 %v356
    %v1221 = vunpack.c.h.b16 %v356
    %v1222 = vunpack.c.l.b16 %v357
    %v1223 = vunpack.c.h.b16 %v357
    %v1224 = vunpack.c.l.b16 %v358
    %v1225 = vunpack.c.h.b16 %v358
    %v1226 = vunpack.c.l.b16 %v359
    %v1227 = vunpack.c.h.b16 %v359
    %v1228 = vunpack.c.l.b16 %v360
    %v1229 = vunpack.c.h.b16 %v360
    %v1230 = vunpack.c.l.b16 %v361
    %v1231 = vunpack.c.h.b16 %v361
    %v1232 = vunpack.c.l.b16 %v362
    %v1233 = vunpack.c.h.b16 %v362
    %v1234 = vunpack.c.l.b16 %v363
    %v1235 = vunpack.c.h.b16 %v363
    %v1236 = vunpack.c.l.b16 %v364
    %v1237 = vunpack.c.h.b16 %v364
    %v1238 = vunpack.c.l.b16 %v365
    %v1239 = vunpack.c.h.b16 %v365
    %v1240 = vunpack.c.l.b16 %v366
    %v1241 = vunpack.c.h.b16 %v366
    %v1242 = vunpack.c.l.b16 %v367
    %v1243 = vunpack.c.h.b16 %v367
    %v1244 = vunpack.c.l.b16 %v368
    %v1245 = vunpack.c.h.b16 %v368
    %v1246 = vunpack.c.l.b16 %v369
    %v1247 = vunpack.c.h.b16 %v369
    %v1248 = vunpack.c.l.b16 %v370
    %v1249 = vunpack.c.h.b16 %v370
    %v1250 = vunpack.c.l.b16 %v371
    %v1251 = vunpack.c.h.b16 %v371
    %v1252 = vunpack.c.l.b16 %v372
    %v1253 = vunpack.c.h.b16 %v372
    %v1254 = vunpack.c.l.b16 %v373
    %v1255 = vunpack.c.h.b16 %v373
    %v1256 = vunpack.c.l.b16 %v374
    %v1257 = vunpack.c.h.b16 %v374
    %v1258 = vunpack.c.l.b16 %v375
    %v1259 = vunpack.c.h.b16 %v375
    %v1260 = vunpack.c.l.b16 %v376
    %v1261 = vunpack.c.h.b16 %v376
    %v1262 = vunpack.c.l.b16 %v377
    %v1263 = vunpack.c.h.b16 %v377
    %v1264 = vunpack.c.l.b16 %v378
    %v1265 = vunpack.c.h.b16 %v378
    %v1266 = vunpack.c.l.b16 %v379
    %v1267 = vunpack.c.h.b16 %v379
    %v1268 = vunpack.c.l.b16 %v380
    %v1269 = vunpack.c.h.b16 %v380
    %v1270 = vunpack.c.l.b16 %v381
    %v1271 = vunpack.c.h.b16 %v381
    %v1272 = vunpack.c.l.b16 %v382
    %v1273 = vunpack.c.h.b16 %v382
    %v1274 = vunpack.c.l.b16 %v383
    %v1275 = vunpack.c.h.b16 %v383
    %v1276 = vunpack.c.l.b16 %v384
    %v1277 = vunpack.c.h.b16 %v384
    %v1278 = vunpack.c.l.b16 %v385
    %v1279 = vunpack.c.h.b16 %v385
    %v1280 = vunpack.c.l.b16 %v386
    %v1281 = vunpack.c.h.b16 %v386
    %v1282 = vunpack.c.l.b16 %v387
    %v1283 = vunpack.c.h.b16 %v387
    %v1284 = vunpack.c.l.b16 %v388
    %v1285 = vunpack.c.h.b16 %v388
    %v1286 = vunpack.c.l.b16 %v389
    %v1287 = vunpack.c.h.b16 %v389
    %v1288 = vunpack.c.l.b16 %v390
    %v1289 = vunpack.c.h.b16 %v390
    %v1290 = vunpack.c.l.b16 %v391
    %v1291 = vunpack.c.h.b16 %v391
    %v1292 = vunpack.c.l.b16 %v392
    %v1293 = vunpack.c.h.b16 %v392
    %v1294 = vunpack.c.l.b16 %v393
    %v1295 = vunpack.c.h.b16 %v393
    %v1296 = vunpack.c.l.b16 %v394
    %v1297 = vunpack.c.h.b16 %v394
    %v1298 = vunpack.c.l.b16 %v395
    %v1299 = vunpack.c.h.b16 %v395
    %v1300 = vunpack.c.l.b16 %v396
    %v1301 = vunpack.c.h.b16 %v396
    %v1302 = vunpack.c.l.b16 %v397
    %v1303 = vunpack.c.h.b16 %v397
    %v1304 = vunpack.c.l.b16 %v398
    %v1305 = vunpack.c.h.b16 %v398
    %v1306 = vunpack.c.l.b16 %v399
    %v1307 = vunpack.c.h.b16 %v399
    %v1308 = vunpack.c.l.b16 %v400
    %v1309 = vunpack.c.h.b16 %v400
    %v1310 = vunpack.c.l.b16 %v401
    %v1311 = vunpack.c.h.b16 %v401
    %v1312 = vunpack.c.l.b16 %v402
    %v1313 = vunpack.c.h.b16 %v402
    %v1314 = vunpack.c.l.b16 %v403
    %v1315 = vunpack.c.h.b16 %v403
    %v1316 = vunpack.c.l.b16 %v404
    %v1317 = vunpack.c.h.b16 %v404
    %v1318 = vunpack.c.l.b16 %v405
    %v1319 = vunpack.c.h.b16 %v405
    %v1320 = vunpack.c.l.b16 %v406
    %v1321 = vunpack.c.h.b16 %v406
    %v1322 = vunpack.c.l.b16 %v407
    %v1323 = vunpack.c.h.b16 %v407
    %v1324 = vunpack.c.l.b16 %v408
    %v1325 = vunpack.c.h.b16 %v408
    %v1326 = vunpack.c.l.b16 %v409
    %v1327 = vunpack.c.h.b16 %v409
    %v1328 = vunpack.c.l.b16 %v410
    %v1329 = vunpack.c.h.b16 %v410
    %v1330 = vunpack.c.l.b16 %v411
    %v1331 = vunpack.c.h.b16 %v411
    %v1332 = vunpack.c.l.b16 %v412
    %v1333 = vunpack.c.h.b16 %v412
    %v1334 = vunpack.c.l.b16 %v413
    %v1335 = vunpack.c.h.b16 %v413
    %v1336 = vunpack.c.l.b16 %v414
    %v1337 = vunpack.c.h.b16 %v414
    %v1338 = vunpack.c.l.b16 %v415
    %v1339 = vunpack.c.h.b16 %v415
    %v1340 = vunpack.c.l.b16 %v416
    %v1341 = vunpack.c.h.b16 %v416
    %v1342 = vunpack.c.l.b16 %v417
    %v1343 = vunpack.c.h.b16 %v417
    %v1344 = vunpack.c.l.b16 %v418
    %v1345 = vunpack.c.h.b16 %v418
    %v1346 = vunpack.c.l.b16 %v419
    %v1347 = vunpack.c.h.b16 %v419
    %v1348 = vunpack.c.l.b16 %v420
    %v1349 = vunpack.c.h.b16 %v420
    %v1350 = vunpack.c.l.b16 %v421
    %v1351 = vunpack.c.h.b16 %v421
    %v1352 = vunpack.c.l.b16 %v422
    %v1353 = vunpack.c.h.b16 %v422
    %v1354 = vunpack.c.l.b16 %v423
    %v1355 = vunpack.c.h.b16 %v423
    %v1356 = vunpack.c.l.b16 %v424
    %v1357 = vunpack.c.h.b16 %v424
    %v1358 = vunpack.c.l.b16 %v425
    %v1359 = vunpack.c.h.b16 %v425
    %v1360 = vunpack.c.l.b16 %v426
    %v1361 = vunpack.c.h.b16 %v426
    %v1362 = vunpack.c.l.b16 %v427
    %v1363 = vunpack.c.h.b16 %v427
    %v1364 = vunpack.c.l.b16 %v428
    %v1365 = vunpack.c.h.b16 %v428
    %v1366 = vunpack.c.l.b16 %v429
    %v1367 = vunpack.c.h.b16 %v429
    %v1368 = vunpack.c.l.b16 %v430
    %v1369 = vunpack.c.h.b16 %v430
    %v1370 = vunpack.c.l.b16 %v431
    %v1371 = vunpack.c.h.b16 %v431
    %v1372 = vunpack.c.l.b16 %v432
    %v1373 = vunpack.c.h.b16 %v432
    %v1374 = vunpack.c.l.b16 %v433
    %v1375 = vunpack.c.h.b16 %v433
    %v1376 = vunpack.c.l.b16 %v434
    %v1377 = vunpack.c.h.b16 %v434
    %v1378 = vunpack.c.l.b16 %v435
    %v1379 = vunpack.c.h.b16 %v435
    %v1380 = vunpack.c.l.b16 %v436
    %v1381 = vunpack.c.h.b16 %v436
    %v1382 = vunpack.c.l.b16 %v437
    %v1383 = vunpack.c.h.b16 %v437
    %v1384 = vunpack.c.l.b16 %v438
    %v1385 = vunpack.c.h.b16 %v438
    %v1386 = vunpack.c.l.b16 %v439
    %v1387 = vunpack.c.h.b16 %v439
    %v1388 = vunpack.c.l.b16 %v440
    %v1389 = vunpack.c.h.b16 %v440
    %v1390 = vunpack.c.l.b16 %v441
    %v1391 = vunpack.c.h.b16 %v441
    %v1392 = vunpack.c.l.b16 %v442
    %v1393 = vunpack.c.h.b16 %v442
    %v1394 = vunpack.c.l.b16 %v443
    %v1395 = vunpack.c.h.b16 %v443
    %v1396 = vunpack.c.l.b16 %v444
    %v1397 = vunpack.c.h.b16 %v444
    %v1398 = vunpack.c.l.b16 %v445
    %v1399 = vunpack.c.h.b16 %v445
    %v1400 = vunpack.c.l.b16 %v446
    %v1401 = vunpack.c.h.b16 %v446
    %v1402 = vunpack.c.l.b16 %v447
    %v1403 = vunpack.c.h.b16 %v447
    %v1404 = vunpack.c.l.b16 %v448
    %v1405 = vunpack.c.h.b16 %v448
    %v1406 = vunpack.c.l.b16 %v449
    %v1407 = vunpack.c.h.b16 %v449
    %v1408 = vunpack.c.l.b16 %v450
    %v1409 = vunpack.c.h.b16 %v450
    %v1410 = vunpack.c.l.b16 %v451
    %v1411 = vunpack.c.h.b16 %v451
    %v1412 = vunpack.c.l.b16 %v452
    %v1413 = vunpack.c.h.b16 %v452
    %v1414 = vunpack.c.l.b16 %v453
    %v1415 = vunpack.c.h.b16 %v453
    %v1416 = vunpack.c.l.b16 %v454
    %v1417 = vunpack.c.h.b16 %v454
    %v1418 = vunpack.c.l.b16 %v455
    %v1419 = vunpack.c.h.b16 %v455
    %v1420 = vunpack.c.l.b16 %v456
    %v1421 = vunpack.c.h.b16 %v456
    %v1422 = vunpack.c.l.b16 %v457
    %v1423 = vunpack.c.h.b16 %v457
    %v1424 = vunpack.c.l.b16 %v458
    %v1425 = vunpack.c.h.b16 %v458
    %v1426 = vunpack.c.l.b16 %v459
    %v1427 = vunpack.c.h.b16 %v459
    %v1428 = vunpack.c.l.b16 %v460
    %v1429 = vunpack.c.h.b16 %v460
    %v1430 = vunpack.c.l.b16 %v461
    %v1431 = vunpack.c.h.b16 %v461
    %v1432 = vunpack.c.l.b16 %v462
    %v1433 = vunpack.c.h.b16 %v462
    %v1434 = vunpack.c.l.b16 %v463
    %v1435 = vunpack.c.h.b16 %v463
    %v1436 = vunpack.c.l.b16 %v464
    %v1437 = vunpack.c.h.b16 %v464
    %v1438 = vunpack.c.l.b16 %v465
    %v1439 = vunpack.c.h.b16 %v465
    %v1440 = vunpack.c.l.b16 %v466
    %v1441 = vunpack.c.h.b16 %v466
    %v1442 = vunpack.c.l.b16 %v467
    %v1443 = vunpack.c.h.b16 %v467
    %v1444 = vunpack.c.l.b16 %v468
    %v1445 = vunpack.c.h.b16 %v468
    %v1446 = vunpack.c.l.b16 %v469
    %v1447 = vunpack.c.h.b16 %v469
    %v1448 = vunpack.c.l.b16 %v470
    %v1449 = vunpack.c.h.b16 %v470
    %v1450 = vunpack.c.l.b16 %v471
    %v1451 = vunpack.c.h.b16 %v471
    %v1452 = vunpack.c.l.b16 %v472
    %v1453 = vunpack.c.h.b16 %v472
    %v1454 = vunpack.c.l.b16 %v473
    %v1455 = vunpack.c.h.b16 %v473
    %v1456 = vunpack.c.l.b16 %v474
    %v1457 = vunpack.c.h.b16 %v474
    %v1458 = vunpack.c.l.b16 %v475
    %v1459 = vunpack.c.h.b16 %v475
    %v1460 = vunpack.c.l.b16 %v476
    %v1461 = vunpack.c.h.b16 %v476
    %v1462 = vunpack.c.l.b16 %v477
    %v1463 = vunpack.c.h.b16 %v477
    %v1464 = vunpack.c.l.b16 %v478
    %v1465 = vunpack.c.h.b16 %v478
    %v1466 = vunpack.c.l.b16 %v479
    %v1467 = vunpack.c.h.b16 %v479
    %v1468 = vunpack.c.l.b16 %v480
    %v1469 = vunpack.c.h.b16 %v480
    %v1470 = vunpack.c.l.b16 %v481
    %v1471 = vunpack.c.h.b16 %v481
    %v1472 = vunpack.c.l.b16 %v482
    %v1473 = vunpack.c.h.b16 %v482
    %v1474 = vunpack.c.l.b16 %v483
    %v1475 = vunpack.c.h.b16 %v483
    %v1476 = vunpack.c.l.b16 %v484
    %v1477 = vunpack.c.h.b16 %v484
    %v1478 = vunpack.c.l.b16 %v485
    %v1479 = vunpack.c.h.b16 %v485
    %v1480 = vunpack.c.l.b16 %v486
    %v1481 = vunpack.c.h.b16 %v486
    %v1482 = vunpack.c.l.b16 %v487
    %v1483 = vunpack.c.h.b16 %v487
    %v1484 = vunpack.c.l.b16 %v488
    %v1485 = vunpack.c.h.b16 %v488
    %v1486 = vunpack.c.l.b16 %v489
    %v1487 = vunpack.c.h.b16 %v489
    %v1488 = vunpack.c.l.b16 %v490
    %v1489 = vunpack.c.h.b16 %v490
    %v1490 = vunpack.c.l.b16 %v491
    %v1491 = vunpack.c.h.b16 %v491
    %v1492 = vunpack.c.l.b16 %v492
    %v1493 = vunpack.c.h.b16 %v492
    %v1494 = vunpack.c.l.b16 %v493
    %v1495 = vunpack.c.h.b16 %v493
    %v1496 = vunpack.c.l.b16 %v494
    %v1497 = vunpack.c.h.b16 %v494
    %v1498 = vunpack.c.l.b16 %v495
    %v1499 = vunpack.c.h.b16 %v495
    %v1500 = vunpack.c.l.b16 %v496
    %v1501 = vunpack.c.h.b16 %v496
    %v1502 = vunpack.c.l.b16 %v497
    %v1503 = vunpack.c.h.b16 %v497
    %v1504 = vunpack.c.l.b16 %v498
    %v1505 = vunpack.c.h.b16 %v498
    %v1506 = vunpack.c.l.b16 %v499
    %v1507 = vunpack.c.h.b16 %v499
    %v1508 = vunpack.c.l.b16 %v500
    %v1509 = vunpack.c.h.b16 %v500
    %v1510 = vunpack.c.l.b16 %v501
    %v1511 = vunpack.c.h.b16 %v501
    %v1512 = vunpack.c.l.b16 %v502
    %v1513 = vunpack.c.h.b16 %v502
    %v1514 = vunpack.c.l.b16 %v503
    %v1515 = vunpack.c.h.b16 %v503
    %v1516 = vunpack.c.l.b16 %v504
    %v1517 = vunpack.c.h.b16 %v504
    %v1518 = vpack.c.b16 %v944, %v942
    %v1519 = vpack.c.b16 %v945, %v943
    %v1520 = vpack.c.b16 %v948, %v946
    %v1521 = vpack.c.b16 %v949, %v947
    %v1522 = vpack.c.b16 %v952, %v950
    %v1523 = vpack.c.b16 %v953, %v951
    %v1524 = vpack.c.b16 %v956, %v954
    %v1525 = vpack.c.b16 %v957, %v955
    %v1526 = vpack.c.b16 %v960, %v958
    %v1527 = vpack.c.b16 %v961, %v959
    %v1528 = vpack.c.b16 %v964, %v962
    %v1529 = vpack.c.b16 %v965, %v963
    %v1530 = vpack.c.b16 %v968, %v966
    %v1531 = vpack.c.b16 %v969, %v967
    %v1532 = vpack.c.b16 %v972, %v970
    %v1533 = vpack.c.b16 %v973, %v971
    %v1534 = vpack.c.b16 %v976, %v974
    %v1535 = vpack.c.b16 %v977, %v975
    %v1536 = vpack.c.b16 %v980, %v978
    %v1537 = vpack.c.b16 %v981, %v979
    %v1538 = vpack.c.b16 %v984, %v982
    %v1539 = vpack.c.b16 %v985, %v983
    %v1540 = vpack.c.b16 %v988, %v986
    %v1541 = vpack.c.b16 %v989, %v987
    %v1542 = vpack.c.b16 %v992, %v990
    %v1543 = vpack.c.b16 %v993, %v991
    %v1544 = vpack.c.b16 %v996, %v994
    %v1545 = vpack.c.b16 %v997, %v995
    %v1546 = vpack.c.b16 %v1000, %v998
    %v1547 = vpack.c.b16 %v1001, %v999
    %v1548 = vpack.c.b16 %v1004, %v1002
    %v1549 = vpack.c.b16 %v1005, %v1003
    %v1550 = vpack.c.b16 %v1008, %v1006
    %v1551 = vpack.c.b16 %v1009, %v1007
    %v1552 = vpack.c.b16 %v1012, %v1010
    %v1553 = vpack.c.b16 %v1013, %v1011
    %v1554 = vpack.c.b16 %v1016, %v1014
    %v1555 = vpack.c.b16 %v1017, %v1015
    %v1556 = vpack.c.b16 %v1020, %v1018
    %v1557 = vpack.c.b16 %v1021, %v1019
    %v1558 = vpack.c.b16 %v1024, %v1022
    %v1559 = vpack.c.b16 %v1025, %v1023
    %v1560 = vpack.c.b16 %v1028, %v1026
    %v1561 = vpack.c.b16 %v1029, %v1027
    %v1562 = vpack.c.b16 %v1032, %v1030
    %v1563 = vpack.c.b16 %v1033, %v1031
    %v1564 = vpack.c.b16 %v1036, %v1034
    %v1565 = vpack.c.b16 %v1037, %v1035
    %v1566 = vpack.c.b16 %v1040, %v1038
    %v1567 = vpack.c.b16 %v1041, %v1039
    %v1568 = vpack.c.b16 %v1044, %v1042
    %v1569 = vpack.c.b16 %v1045, %v1043
    %v1570 = vpack.c.b16 %v1048, %v1046
    %v1571 = vpack.c.b16 %v1049, %v1047
    %v1572 = vpack.c.b16 %v1052, %v1050
    %v1573 = vpack.c.b16 %v1053, %v1051
    %v1574 = vpack.c.b16 %v1056, %v1054
    %v1575 = vpack.c.b16 %v1057, %v1055
    %v1576 = vpack.c.b16 %v1060, %v1058
    %v1577 = vpack.c.b16 %v1061, %v1059
    %v1578 = vpack.c.b16 %v1064, %v1062
    %v1579 = vpack.c.b16 %v1065, %v1063
    %v1580 = vpack.c.b16 %v1068, %v1066
    %v1581 = vpack.c.b16 %v1069, %v1067
    %v1582 = vpack.c.b16 %v1072, %v1070
    %v1583 = vpack.c.b16 %v1073, %v1071
    %v1584 = vpack.c.b16 %v1076, %v1074
    %v1585 = vpack.c.b16 %v1077, %v1075
    %v1586 = vpack.c.b16 %v1080, %v1078
    %v1587 = vpack.c.b16 %v1081, %v1079
    %v1588 = vpack.c.b16 %v1084, %v1082
    %v1589 = vpack.c.b16 %v1085, %v1083
    %v1590 = vpack.c.b16 %v1088, %v1086
    %v1591 = vpack.c.b16 %v1089, %v1087
    %v1592 = vpack.c.b16 %v1092, %v1090
    %v1593 = vpack.c.b16 %v1093, %v1091
    %v1594 = vpack.c.b16 %v1096, %v1094
    %v1595 = vpack.c.b16 %v1097, %v1095
    %v1596 = vpack.c.b16 %v1100, %v1098
    %v1597 = vpack.c.b16 %v1101, %v1099
    %v1598 = vpack.c.b16 %v1104, %v1102
    %v1599 = vpack.c.b16 %v1105, %v1103
    %v1600 = vpack.c.b16 %v1108, %v1106
    %v1601 = vpack.c.b16 %v1109, %v1107
    %v1602 = vpack.c.b16 %v1112, %v1110
    %v1603 = vpack.c.b16 %v1113, %v1111
    %v1604 = vpack.c.b16 %v1116, %v1114
    %v1605 = vpack.c.b16 %v1117, %v1115
    %v1606 = vpack.c.b16 %v1120, %v1118
    %v1607 = vpack.c.b16 %v1121, %v1119
    %v1608 = vpack.c.b16 %v1124, %v1122
    %v1609 = vpack.c.b16 %v1125, %v1123
    %v1610 = vpack.c.b16 %v1128, %v1126
    %v1611 = vpack.c.b16 %v1129, %v1127
    %v1612 = vpack.c.b16 %v1132, %v1130
    %v1613 = vpack.c.b16 %v1133, %v1131
    %v1614 = vpack.c.b16 %v1136, %v1134
    %v1615 = vpack.c.b16 %v1137, %v1135
    %v1616 = vpack.c.b16 %v1140, %v1138
    %v1617 = vpack.c.b16 %v1141, %v1139
    %v1618 = vpack.c.b16 %v1144, %v1142
    %v1619 = vpack.c.b16 %v1145, %v1143
    %v1620 = vpack.c.b16 %v1148, %v1146
    %v1621 = vpack.c.b16 %v1149, %v1147
    %v1622 = vpack.c.b16 %v1152, %v1150
    %v1623 = vpack.c.b16 %v1153, %v1151
    %v1624 = vpack.c.b16 %v1156, %v1154
    %v1625 = vpack.c.b16 %v1157, %v1155
    %v1626 = vpack.c.b16 %v1160, %v1158
    %v1627 = vpack.c.b16 %v1161, %v1159
    %v1628 = vpack.c.b16 %v1164, %v1162
    %v1629 = vpack.c.b16 %v1165, %v1163
    %v1630 = vpack.c.b16 %v1168, %v1166
    %v1631 = vpack.c.b16 %v1169, %v1167
    %v1632 = vpack.c.b16 %v1172, %v1170
    %v1633 = vpack.c.b16 %v1173, %v1171
    %v1634 = vpack.c.b16 %v1176, %v1174
    %v1635 = vpack.c.b16 %v1177, %v1175
    %v1636 = vpack.c.b16 %v1180, %v1178
    %v1637 = vpack.c.b16 %v1181, %v1179
    %v1638 = vpack.c.b16 %v1184, %v1182
    %v1639 = vpack.c.b16 %v1185, %v1183
    %v1640 = vpack.c.b16 %v1188, %v1186
    %v1641 = vpack.c.b16 %v1189, %v1187
    %v1642 = vpack.c.b16 %v1192, %v1190
    %v1643 = vpack.c.b16 %v1193, %v1191
    %v1644 = vpack.c.b16 %v1196, %v1194
    %v1645 = vpack.c.b16 %v1197, %v1195
    %v1646 = vpack.c.b16 %v1200, %v1198
    %v1647 = vpack.c.b16 %v1201, %v1199
    %v1648 = vpack.c.b16 %v1204, %v1202
    %v1649 = vpack.c.b16 %v1205, %v1203
    %v1650 = vpack.c.b16 %v1208, %v1206
    %v1651 = vpack.c.b16 %v1209, %v1207
    %v1652 = vpack.c.b16 %v1212, %v1210
    %v1653 = vpack.c.b16 %v1213, %v1211
    %v1654 = vpack.c.b16 %v1216, %v1214
    %v1655 = vpack.c.b16 %v1217, %v1215
    %v1656 = vpack.c.b16 %v1220, %v1218
    %v1657 = vpack.c.b16 %v1221, %v1219
    %v1658 = vpack.c.b16 %v1224, %v1222
    %v1659 = vpack.c.b16 %v1225, %v1223
    %v1660 = vpack.c.b16 %v1228, %v1226
    %v1661 = vpack.c.b16 %v1229, %v1227
    %v1662 = vpack.c.b16 %v1232, %v1230
    %v1663 = vpack.c.b16 %v1233, %v1231
    %v1664 = vpack.c.b16 %v1236, %v1234
    %v1665 = vpack.c.b16 %v1237, %v1235
    %v1666 = vpack.c.b16 %v1240, %v1238
    %v1667 = vpack.c.b16 %v1241, %v1239
    %v1668 = vpack.c.b16 %v1244, %v1242
    %v1669 = vpack.c.b16 %v1245, %v1243
    %v1670 = vpack.c.b16 %v1248, %v1246
    %v1671 = vpack.c.b16 %v1249, %v1247
    %v1672 = vpack.c.b16 %v1252, %v1250
    %v1673 = vpack.c.b16 %v1253, %v1251
    %v1674 = vpack.c.b16 %v1256, %v1254
    %v1675 = vpack.c.b16 %v1257, %v1255
    %v1676 = vpack.c.b16 %v1260, %v1258
    %v1677 = vpack.c.b16 %v1261, %v1259
    %v1678 = vpack.c.b16 %v1264, %v1262
    %v1679 = vpack.c.b16 %v1265, %v1263
    %v1680 = vpack.c.b16 %v1268, %v1266
    %v1681 = vpack.c.b16 %v1269, %v1267
    %v1682 = vpack.c.b16 %v1272, %v1270
    %v1683 = vpack.c.b16 %v1273, %v1271
    %v1684 = vpack.c.b16 %v1276, %v1274
    %v1685 = vpack.c.b16 %v1277, %v1275
    %v1686 = vpack.c.b16 %v1280, %v1278
    %v1687 = vpack.c.b16 %v1281, %v1279
    %v1688 = vpack.c.b16 %v1284, %v1282
    %v1689 = vpack.c.b16 %v1285, %v1283
    %v1690 = vpack.c.b16 %v1288, %v1286
    %v1691 = vpack.c.b16 %v1289, %v1287
    %v1692 = vpack.c.b16 %v1292, %v1290
    %v1693 = vpack.c.b16 %v1293, %v1291
    %v1694 = vpack.c.b16 %v1296, %v1294
    %v1695 = vpack.c.b16 %v1297, %v1295
    %v1696 = vpack.c.b16 %v1300, %v1298
    %v1697 = vpack.c.b16 %v1301, %v1299
    %v1698 = vpack.c.b16 %v1304, %v1302
    %v1699 = vpack.c.b16 %v1305, %v1303
    %v1700 = vpack.c.b16 %v1308, %v1306
    %v1701 = vpack.c.b16 %v1309, %v1307
    %v1702 = vpack.c.b16 %v1312, %v1310
    %v1703 = vpack.c.b16 %v1313, %v1311
    %v1704 = vpack.c.b16 %v1316, %v1314
    %v1705 = vpack.c.b16 %v1317, %v1315
    %v1706 = vpack.c.b16 %v1320, %v1318
    %v1707 = vpack.c.b16 %v1321, %v1319
    %v1708 = vpack.c.b16 %v1324, %v1322
    %v1709 = vpack.c.b16 %v1325, %v1323
    %v1710 = vpack.c.b16 %v1328, %v1326
    %v1711 = vpack.c.b16 %v1329, %v1327
    %v1712 = vpack.c.b16 %v1332, %v1330
    %v1713 = vpack.c.b16 %v1333, %v1331
    %v1714 = vpack.c.b16 %v1336, %v1334
    %v1715 = vpack.c.b16 %v1337, %v1335
    %v1716 = vpack.c.b16 %v1340, %v1338
    %v1717 = vpack.c.b16 %v1341, %v1339
    %v1718 = vpack.c.b16 %v1344, %v1342
    %v1719 = vpack.c.b16 %v1345, %v1343
    %v1720 = vpack.c.b16 %v1348, %v1346
    %v1721 = vpack.c.b16 %v1349, %v1347
    %v1722 = vpack.c.b16 %v1352, %v1350
    %v1723 = vpack.c.b16 %v1353, %v1351
    %v1724 = vpack.c.b16 %v1356, %v1354
    %v1725 = vpack.c.b16 %v1357, %v1355
    %v1726 = vpack.c.b16 %v1360, %v1358
    %v1727 = vpack.c.b16 %v1361, %v1359
    %v1728 = vpack.c.b16 %v1364, %v1362
    %v1729 = vpack.c.b16 %v1365, %v1363
    %v1730 = vpack.c.b16 %v1368, %v1366
    %v1731 = vpack.c.b16 %v1369, %v1367
    %v1732 = vpack.c.b16 %v1372, %v1370
    %v1733 = vpack.c.b16 %v1373, %v1371
    %v1734 = vpack.c.b16 %v1376, %v1374
    %v1735 = vpack.c.b16 %v1377, %v1375
    %v1736 = vpack.c.b16 %v1380, %v1378
    %v1737 = vpack.c.b16 %v1381, %v1379
    %v1738 = vpack.c.b16 %v1384, %v1382
    %v1739 = vpack.c.b16 %v1385, %v1383
    %v1740 = vpack.c.b16 %v1388, %v1386
    %v1741 = vpack.c.b16 %v1389, %v1387
    %v1742 = vpack.c.b16 %v1392, %v1390
    %v1743 = vpack.c.b16 %v1393, %v1391
    %v1744 = vpack.c.b16 %v1396, %v1394
    %v1745 = vpack.c.b16 %v1397, %v1395
    %v1746 = vpack.c.b16 %v1400, %v1398
    %v1747 = vpack.c.b16 %v1401, %v1399
    %v1748 = vpack.c.b16 %v1404, %v1402
    %v1749 = vpack.c.b16 %v1405, %v1403
    %v1750 = vpack.c.b16 %v1408, %v1406
    %v1751 = vpack.c.b16 %v1409, %v1407
    %v1752 = vpack.c.b16 %v1412, %v1410
    %v1753 = vpack.c.b16 %v1413, %v1411
    %v1754 = vpack.c.b16 %v1416, %v1414
    %v1755 = vpack.c.b16 %v1417, %v1415
    %v1756 = vpack.c.b16 %v1420, %v1418
    %v1757 = vpack.c.b16 %v1421, %v1419
    %v1758 = vpack.c.b16 %v1424, %v1422
    %v1759 = vpack.c.b16 %v1425, %v1423
    %v1760 = vpack.c.b16 %v1428, %v1426
    %v1761 = vpack.c.b16 %v1429, %v1427
    %v1762 = vpack.c.b16 %v1432, %v1430
    %v1763 = vpack.c.b16 %v1433, %v1431
    %v1764 = vpack.c.b16 %v1436, %v1434
    %v1765 = vpack.c.b16 %v1437, %v1435
    %v1766 = vpack.c.b16 %v1440, %v1438
    %v1767 = vpack.c.b16 %v1441, %v1439
    %v1768 = vpack.c.b16 %v1444, %v1442
    %v1769 = vpack.c.b16 %v1445, %v1443
    %v1770 = vpack.c.b16 %v1448, %v1446
    %v1771 = vpack.c.b16 %v1449, %v1447
    %v1772 = vpack.c.b16 %v1452, %v1450
    %v1773 = vpack.c.b16 %v1453, %v1451
    %v1774 = vpack.c.b16 %v1456, %v1454
    %v1775 = vpack.c.b16 %v1457, %v1455
    %v1776 = vpack.c.b16 %v1460, %v1458
    %v1777 = vpack.c.b16 %v1461, %v1459
    %v1778 = vpack.c.b16 %v1464, %v1462
    %v1779 = vpack.c.b16 %v1465, %v1463
    %v1780 = vpack.c.b16 %v1468, %v1466
    %v1781 = vpack.c.b16 %v1469, %v1467
    %v1782 = vpack.c.b16 %v1472, %v1470
    %v1783 = vpack.c.b16 %v1473, %v1471
    %v1784 = vpack.c.b16 %v1476, %v1474
    %v1785 = vpack.c.b16 %v1477, %v1475
    %v1786 = vpack.c.b16 %v1480, %v1478
    %v1787 = vpack.c.b16 %v1481, %v1479
    %v1788 = vpack.c.b16 %v1484, %v1482
    %v1789 = vpack.c.b16 %v1485, %v1483
    %v1790 = vpack.c.b16 %v1488, %v1486
    %v1791 = vpack.c.b16 %v1489, %v1487
    %v1792 = vpack.c.b16 %v1492, %v1490
    %v1793 = vpack.c.b16 %v1493, %v1491
    %v1794 = vpack.c.b16 %v1496, %v1494
    %v1795 = vpack.c.b16 %v1497, %v1495
    %v1796 = vpack.c.b16 %v1500, %v1498
    %v1797 = vpack.c.b16 %v1501, %v1499
    %v1798 = vpack.c.b16 %v1504, %v1502
    %v1799 = vpack.c.b16 %v1505, %v1503
    %v1800 = vpack.c.b16 %v1508, %v1506
    %v1801 = vpack.c.b16 %v1509, %v1507
    %v1802 = vpack.c.b16 %v1512, %v1510
    %v1803 = vpack.c.b16 %v1513, %v1511
    %v1804 = vpack.c.b16 %v1516, %v1514
    %v1805 = vpack.c.b16 %v1517, %v1515
    %2094 = vmatprep.subr.bf16.mxu0 %v1519
    %2095 = vmatpush1.bf16.msra.mxu0 %v1518
    %2096 = vmatprep.subr.bf16.mxu0 %v1521
    %2097 = vmatpush1.bf16.msra.mxu0 %v1520
    %2098 = vmatprep.subr.bf16.mxu0 %v1523
    %2099 = vmatpush1.bf16.msra.mxu0 %v1522
    %2100 = vmatprep.subr.bf16.mxu0 %v1525
    %2101 = vmatpush1.bf16.msra.mxu0 %v1524
    %2102 = vmatprep.subr.bf16.mxu0 %v1527
    %2103 = vmatpush1.bf16.msra.mxu0 %v1526
    %2104 = vmatprep.subr.bf16.mxu0 %v1529
    %2105 = vmatpush1.bf16.msra.mxu0 %v1528
    %2106 = vmatprep.subr.bf16.mxu0 %v1531
    %2107 = vmatpush1.bf16.msra.mxu0 %v1530
    %2108 = vmatprep.subr.bf16.mxu0 %v1533
    %2109 = vmatpush1.bf16.msra.mxu0 %v1532
    %2110 = vmatprep.subr.bf16.mxu0 %v1535
    %2111 = vmatpush1.bf16.msra.mxu0 %v1534
    %2112 = vmatprep.subr.bf16.mxu0 %v1537
    %2113 = vmatpush1.bf16.msra.mxu0 %v1536
    %2114 = vmatprep.subr.bf16.mxu0 %v1539
    %2115 = vmatpush1.bf16.msra.mxu0 %v1538
    %2116 = vmatprep.subr.bf16.mxu0 %v1541
    %2117 = vmatpush1.bf16.msra.mxu0 %v1540
    %2118 = vmatprep.subr.bf16.mxu0 %v1543
    %2119 = vmatpush1.bf16.msra.mxu0 %v1542
    %2120 = vmatprep.subr.bf16.mxu0 %v1545
    %2121 = vmatpush1.bf16.msra.mxu0 %v1544
    %2122 = vmatprep.subr.bf16.mxu0 %v1547
    %2123 = vmatpush1.bf16.msra.mxu0 %v1546
    %2124 = vmatprep.subr.bf16.mxu0 %v1549
    %2125 = vmatpush1.bf16.msra.mxu0 %v1548
    %2126 = vmatprep.mubr.bf16.mxu0 %v553
    %2127 = vmatmul.mubr.bf16.gmra.mrb[0].mxu0 %v539
    %v2128 = vpop.f32.mrb[0].mxu0
    %v2129 = vadd.f32 %v508, %v2128
    %v2130 = vpop.f32.mrb[0].mxu0
    %v2131 = vadd.f32 %v512, %v2130
    %v2132 = vpop.f32.mrb[0].mxu0
    %v2133 = vpop.f32.mrb[0].mxu0
    %2134 = vdwg.mxu0
    %2135 = vmatprep.subr.bf16.mxu0 %v1551
    %2136 = vmatpush1.bf16.msra.mxu0 %v1550
    %2137 = vmatprep.subr.bf16.mxu0 %v1553
    %2138 = vmatpush1.bf16.msra.mxu0 %v1552
    %2139 = vmatprep.subr.bf16.mxu0 %v1555
    %2140 = vmatpush1.bf16.msra.mxu0 %v1554
    %2141 = vmatprep.subr.bf16.mxu0 %v1557
    %2142 = vmatpush1.bf16.msra.mxu0 %v1556
    %2143 = vmatprep.subr.bf16.mxu0 %v1559
    %2144 = vmatpush1.bf16.msra.mxu0 %v1558
    %2145 = vmatprep.subr.bf16.mxu0 %v1561
    %2146 = vmatpush1.bf16.msra.mxu0 %v1560
    %2147 = vmatprep.subr.bf16.mxu0 %v1563
    %2148 = vmatpush1.bf16.msra.mxu0 %v1562
    %2149 = vmatprep.subr.bf16.mxu0 %v1565
    %2150 = vmatpush1.bf16.msra.mxu0 %v1564
    %2151 = vmatprep.subr.bf16.mxu0 %v1567
    %2152 = vmatpush1.bf16.msra.mxu0 %v1566
    %2153 = vmatprep.subr.bf16.mxu0 %v1569
    %2154 = vmatpush1.bf16.msra.mxu0 %v1568
    %2155 = vmatprep.subr.bf16.mxu0 %v1571
    %2156 = vmatpush1.bf16.msra.mxu0 %v1570
    %2157 = vmatprep.subr.bf16.mxu0 %v1573
    %2158 = vmatpush1.bf16.msra.mxu0 %v1572
    %2159 = vmatprep.subr.bf16.mxu0 %v1575
    %2160 = vmatpush1.bf16.msra.mxu0 %v1574
    %2161 = vmatprep.subr.bf16.mxu0 %v1577
    %2162 = vmatpush1.bf16.msra.mxu0 %v1576
    %2163 = vmatprep.subr.bf16.mxu0 %v1579
    %2164 = vmatpush1.bf16.msra.mxu0 %v1578
    %2165 = vmatprep.subr.bf16.mxu0 %v1581
    %2166 = vmatpush1.bf16.msra.mxu0 %v1580
    %2167 = vmatprep.mubr.bf16.mxu0 %v563
    %2168 = vmatmul.mubr.bf16.gmra.mrb[0].mxu0 %v561
    %v2169 = vpop.f32.mrb[0].mxu0
    %v2170 = vadd.f32 %v2129, %v2169
    %v2171 = vpop.f32.mrb[0].mxu0
    %v2172 = vadd.f32 %v2131, %v2171
    %v2173 = vpop.f32.mrb[0].mxu0
    %v2174 = vpop.f32.mrb[0].mxu0
    %2175 = vdwg.mxu0
    %2176 = vmatprep.subr.bf16.mxu0 %v1583
    %2177 = vmatpush1.bf16.msra.mxu0 %v1582
    %2178 = vmatprep.subr.bf16.mxu0 %v1585
    %2179 = vmatpush1.bf16.msra.mxu0 %v1584
    %2180 = vmatprep.subr.bf16.mxu0 %v1587
    %2181 = vmatpush1.bf16.msra.mxu0 %v1586
    %2182 = vmatprep.subr.bf16.mxu0 %v1589
    %2183 = vmatpush1.bf16.msra.mxu0 %v1588
    %2184 = vmatprep.subr.bf16.mxu0 %v1591
    %2185 = vmatpush1.bf16.msra.mxu0 %v1590
    %2186 = vmatprep.subr.bf16.mxu0 %v1593
    %2187 = vmatpush1.bf16.msra.mxu0 %v1592
    %2188 = vmatprep.subr.bf16.mxu0 %v1595
    %2189 = vmatpush1.bf16.msra.mxu0 %v1594
    %2190 = vmatprep.subr.bf16.mxu0 %v1597
    %2191 = vmatpush1.bf16.msra.mxu0 %v1596
    %2192 = vmatprep.subr.bf16.mxu0 %v1599
    %2193 = vmatpush1.bf16.msra.mxu0 %v1598
    %2194 = vmatprep.subr.bf16.mxu0 %v1601
    %2195 = vmatpush1.bf16.msra.mxu0 %v1600
    %2196 = vmatprep.subr.bf16.mxu0 %v1603
    %2197 = vmatpush1.bf16.msra.mxu0 %v1602
    %2198 = vmatprep.subr.bf16.mxu0 %v1605
    %2199 = vmatpush1.bf16.msra.mxu0 %v1604
    %2200 = vmatprep.subr.bf16.mxu0 %v1607
    %2201 = vmatpush1.bf16.msra.mxu0 %v1606
    %2202 = vmatprep.subr.bf16.mxu0 %v1609
    %2203 = vmatpush1.bf16.msra.mxu0 %v1608
    %2204 = vmatprep.subr.bf16.mxu0 %v1611
    %2205 = vmatpush1.bf16.msra.mxu0 %v1610
    %2206 = vmatprep.subr.bf16.mxu0 %v1613
    %2207 = vmatpush1.bf16.msra.mxu0 %v1612
    %2208 = vmatprep.mubr.bf16.mxu0 %v560
    %2209 = vmatmul.mubr.bf16.gmra.mrb[0].mxu0 %v546
    %v2210 = vpop.f32.mrb[0].mxu0
    %v2211 = vadd.f32 %v2170, %v2210
    %v2212 = vpop.f32.mrb[0].mxu0
    %v2213 = vadd.f32 %v2172, %v2212
    %v2214 = vpop.f32.mrb[0].mxu0
    %v2215 = vpop.f32.mrb[0].mxu0
    %2216 = vdwg.mxu0
    %2217 = vmatprep.subr.bf16.mxu0 %v1615
    %2218 = vmatpush1.bf16.msra.mxu0 %v1614
    %2219 = vmatprep.subr.bf16.mxu0 %v1617
    %2220 = vmatpush1.bf16.msra.mxu0 %v1616
    %2221 = vmatprep.subr.bf16.mxu0 %v1619
    %2222 = vmatpush1.bf16.msra.mxu0 %v1618
    %2223 = vmatprep.subr.bf16.mxu0 %v1621
    %2224 = vmatpush1.bf16.msra.mxu0 %v1620
    %2225 = vmatprep.subr.bf16.mxu0 %v1623
    %2226 = vmatpush1.bf16.msra.mxu0 %v1622
    %2227 = vmatprep.subr.bf16.mxu0 %v1625
    %2228 = vmatpush1.bf16.msra.mxu0 %v1624
    %2229 = vmatprep.subr.bf16.mxu0 %v1627
    %2230 = vmatpush1.bf16.msra.mxu0 %v1626
    %2231 = vmatprep.subr.bf16.mxu0 %v1629
    %2232 = vmatpush1.bf16.msra.mxu0 %v1628
    %2233 = vmatprep.subr.bf16.mxu0 %v1631
    %2234 = vmatpush1.bf16.msra.mxu0 %v1630
    %2235 = vmatprep.subr.bf16.mxu0 %v1633
    %2236 = vmatpush1.bf16.msra.mxu0 %v1632
    %2237 = vmatprep.subr.bf16.mxu0 %v1635
    %2238 = vmatpush1.bf16.msra.mxu0 %v1634
    %2239 = vmatprep.subr.bf16.mxu0 %v1637
    %2240 = vmatpush1.bf16.msra.mxu0 %v1636
    %2241 = vmatprep.subr.bf16.mxu0 %v1639
    %2242 = vmatpush1.bf16.msra.mxu0 %v1638
    %2243 = vmatprep.subr.bf16.mxu0 %v1641
    %2244 = vmatpush1.bf16.msra.mxu0 %v1640
    %2245 = vmatprep.subr.bf16.mxu0 %v1643
    %2246 = vmatpush1.bf16.msra.mxu0 %v1642
    %2247 = vmatprep.subr.bf16.mxu0 %v1645
    %2248 = vmatpush1.bf16.msra.mxu0 %v1644
    %2249 = vmatprep.mubr.bf16.mxu0 %v564
    %2250 = vmatmul.mubr.bf16.gmra.mrb[0].mxu0 %v562
    %v2251 = vpop.f32.mrb[0].mxu0
    %v2252 = vadd.f32 %v2211, %v2251
    %v2253 = vpop.f32.mrb[0].mxu0
    %v2254 = vadd.f32 %v2213, %v2253
    %v2255 = vpop.f32.mrb[0].mxu0
    %v2256 = vpop.f32.mrb[0].mxu0
    %2257 = vdwg.mxu0
    %2258 = vmatprep.subr.bf16.mxu0 %v1647
    %2259 = vmatpush1.bf16.msra.mxu0 %v1646
    %2260 = vmatprep.subr.bf16.mxu0 %v1649
    %2261 = vmatpush1.bf16.msra.mxu0 %v1648
    %2262 = vmatprep.subr.bf16.mxu0 %v1651
    %2263 = vmatpush1.bf16.msra.mxu0 %v1650
    %2264 = vmatprep.subr.bf16.mxu0 %v1653
    %2265 = vmatpush1.bf16.msra.mxu0 %v1652
    %2266 = vmatprep.subr.bf16.mxu0 %v1655
    %2267 = vmatpush1.bf16.msra.mxu0 %v1654
    %2268 = vmatprep.subr.bf16.mxu0 %v1657
    %2269 = vmatpush1.bf16.msra.mxu0 %v1656
    %2270 = vmatprep.subr.bf16.mxu0 %v1659
    %2271 = vmatpush1.bf16.msra.mxu0 %v1658
    %2272 = vmatprep.subr.bf16.mxu0 %v1661
    %2273 = vmatpush1.bf16.msra.mxu0 %v1660
    %2274 = vmatprep.subr.bf16.mxu0 %v1663
    %2275 = vmatpush1.bf16.msra.mxu0 %v1662
    %2276 = vmatprep.subr.bf16.mxu0 %v1665
    %2277 = vmatpush1.bf16.msra.mxu0 %v1664
    %2278 = vmatprep.subr.bf16.mxu0 %v1667
    %2279 = vmatpush1.bf16.msra.mxu0 %v1666
    %2280 = vmatprep.subr.bf16.mxu0 %v1669
    %2281 = vmatpush1.bf16.msra.mxu0 %v1668
    %2282 = vmatprep.subr.bf16.mxu0 %v1671
    %2283 = vmatpush1.bf16.msra.mxu0 %v1670
    %2284 = vmatprep.subr.bf16.mxu0 %v1673
    %2285 = vmatpush1.bf16.msra.mxu0 %v1672
    %2286 = vmatprep.subr.bf16.mxu0 %v1675
    %2287 = vmatpush1.bf16.msra.mxu0 %v1674
    %2288 = vmatprep.subr.bf16.mxu0 %v1677
    %2289 = vmatpush1.bf16.msra.mxu0 %v1676
    %2290 = vmatprep.mubr.bf16.mxu0 %v602
    %2291 = vmatmul.mubr.bf16.gmra.mrb[0].mxu0 %v588
    %v2292 = vpop.f32.mrb[0].mxu0
    %v2293 = vadd.f32 %v2252, %v2292
    %v2294 = vpop.f32.mrb[0].mxu0
    %v2295 = vadd.f32 %v2254, %v2294
    %v2296 = vpop.f32.mrb[0].mxu0
    %v2297 = vpop.f32.mrb[0].mxu0
    %2298 = vdwg.mxu0
    %2299 = vmatprep.subr.bf16.mxu0 %v1679
    %2300 = vmatpush1.bf16.msra.mxu0 %v1678
    %2301 = vmatprep.subr.bf16.mxu0 %v1681
    %2302 = vmatpush1.bf16.msra.mxu0 %v1680
    %2303 = vmatprep.subr.bf16.mxu0 %v1683
    %2304 = vmatpush1.bf16.msra.mxu0 %v1682
    %2305 = vmatprep.subr.bf16.mxu0 %v1685
    %2306 = vmatpush1.bf16.msra.mxu0 %v1684
    %2307 = vmatprep.subr.bf16.mxu0 %v1687
    %2308 = vmatpush1.bf16.msra.mxu0 %v1686
    %2309 = vmatprep.subr.bf16.mxu0 %v1689
    %2310 = vmatpush1.bf16.msra.mxu0 %v1688
    %2311 = vmatprep.subr.bf16.mxu0 %v1691
    %2312 = vmatpush1.bf16.msra.mxu0 %v1690
    %2313 = vmatprep.subr.bf16.mxu0 %v1693
    %2314 = vmatpush1.bf16.msra.mxu0 %v1692
    %2315 = vmatprep.subr.bf16.mxu0 %v1695
    %2316 = vmatpush1.bf16.msra.mxu0 %v1694
    %2317 = vmatprep.subr.bf16.mxu0 %v1697
    %2318 = vmatpush1.bf16.msra.mxu0 %v1696
    %2319 = vmatprep.subr.bf16.mxu0 %v1699
    %2320 = vmatpush1.bf16.msra.mxu0 %v1698
    %2321 = vmatprep.subr.bf16.mxu0 %v1701
    %2322 = vmatpush1.bf16.msra.mxu0 %v1700
    %2323 = vmatprep.subr.bf16.mxu0 %v1703
    %2324 = vmatpush1.bf16.msra.mxu0 %v1702
    %2325 = vmatprep.subr.bf16.mxu0 %v1705
    %2326 = vmatpush1.bf16.msra.mxu0 %v1704
    %2327 = vmatprep.subr.bf16.mxu0 %v1707
    %2328 = vmatpush1.bf16.msra.mxu0 %v1706
    %2329 = vmatprep.subr.bf16.mxu0 %v1709
    %2330 = vmatpush1.bf16.msra.mxu0 %v1708
    %2331 = vmatprep.mubr.bf16.mxu0 %v612
    %2332 = vmatmul.mubr.bf16.gmra.mrb[0].mxu0 %v610
    %v2333 = vpop.f32.mrb[0].mxu0
    %v2334 = vadd.f32 %v2293, %v2333
    %v2335 = vpop.f32.mrb[0].mxu0
    %v2336 = vadd.f32 %v2295, %v2335
    %v2337 = vpop.f32.mrb[0].mxu0
    %v2338 = vpop.f32.mrb[0].mxu0
    %2339 = vdwg.mxu0
    %2340 = vmatprep.subr.bf16.mxu0 %v1711
    %2341 = vmatpush1.bf16.msra.mxu0 %v1710
    %2342 = vmatprep.subr.bf16.mxu0 %v1713
    %2343 = vmatpush1.bf16.msra.mxu0 %v1712
    %2344 = vmatprep.subr.bf16.mxu0 %v1715
    %2345 = vmatpush1.bf16.msra.mxu0 %v1714
    %2346 = vmatprep.subr.bf16.mxu0 %v1717
    %2347 = vmatpush1.bf16.msra.mxu0 %v1716
    %2348 = vmatprep.subr.bf16.mxu0 %v1719
    %2349 = vmatpush1.bf16.msra.mxu0 %v1718
    %2350 = vmatprep.subr.bf16.mxu0 %v1721
    %2351 = vmatpush1.bf16.msra.mxu0 %v1720
    %2352 = vmatprep.subr.bf16.mxu0 %v1723
    %2353 = vmatpush1.bf16.msra.mxu0 %v1722
    %2354 = vmatprep.subr.bf16.mxu0 %v1725
    %2355 = vmatpush1.bf16.msra.mxu0 %v1724
    %2356 = vmatprep.subr.bf16.mxu0 %v1727
    %2357 = vmatpush1.bf16.msra.mxu0 %v1726
    %2358 = vmatprep.subr.bf16.mxu0 %v1729
    %2359 = vmatpush1.bf16.msra.mxu0 %v1728
    %2360 = vmatprep.subr.bf16.mxu0 %v1731
    %2361 = vmatpush1.bf16.msra.mxu0 %v1730
    %2362 = vmatprep.subr.bf16.mxu0 %v1733
    %2363 = vmatpush1.bf16.msra.mxu0 %v1732
    %2364 = vmatprep.subr.bf16.mxu0 %v1735
    %2365 = vmatpush1.bf16.msra.mxu0 %v1734
    %2366 = vmatprep.subr.bf16.mxu0 %v1737
    %2367 = vmatpush1.bf16.msra.mxu0 %v1736
    %2368 = vmatprep.subr.bf16.mxu0 %v1739
    %2369 = vmatpush1.bf16.msra.mxu0 %v1738
    %2370 = vmatprep.subr.bf16.mxu0 %v1741
    %2371 = vmatpush1.bf16.msra.mxu0 %v1740
    %2372 = vmatprep.mubr.bf16.mxu0 %v609
    %2373 = vmatmul.mubr.bf16.gmra.mrb[0].mxu0 %v595
    %v2374 = vpop.f32.mrb[0].mxu0
    %v2375 = vadd.f32 %v2334, %v2374
    %v2376 = vpop.f32.mrb[0].mxu0
    %v2377 = vadd.f32 %v2336, %v2376
    %v2378 = vpop.f32.mrb[0].mxu0
    %v2379 = vpop.f32.mrb[0].mxu0
    %2380 = vdwg.mxu0
    %2381 = vmatprep.subr.bf16.mxu0 %v1743
    %2382 = vmatpush1.bf16.msra.mxu0 %v1742
    %2383 = vmatprep.subr.bf16.mxu0 %v1745
    %2384 = vmatpush1.bf16.msra.mxu0 %v1744
    %2385 = vmatprep.subr.bf16.mxu0 %v1747
    %2386 = vmatpush1.bf16.msra.mxu0 %v1746
    %2387 = vmatprep.subr.bf16.mxu0 %v1749
    %2388 = vmatpush1.bf16.msra.mxu0 %v1748
    %2389 = vmatprep.subr.bf16.mxu0 %v1751
    %2390 = vmatpush1.bf16.msra.mxu0 %v1750
    %2391 = vmatprep.subr.bf16.mxu0 %v1753
    %2392 = vmatpush1.bf16.msra.mxu0 %v1752
    %2393 = vmatprep.subr.bf16.mxu0 %v1755
    %2394 = vmatpush1.bf16.msra.mxu0 %v1754
    %2395 = vmatprep.subr.bf16.mxu0 %v1757
    %2396 = vmatpush1.bf16.msra.mxu0 %v1756
    %2397 = vmatprep.subr.bf16.mxu0 %v1759
    %2398 = vmatpush1.bf16.msra.mxu0 %v1758
    %2399 = vmatprep.subr.bf16.mxu0 %v1761
    %2400 = vmatpush1.bf16.msra.mxu0 %v1760
    %2401 = vmatprep.subr.bf16.mxu0 %v1763
    %2402 = vmatpush1.bf16.msra.mxu0 %v1762
    %2403 = vmatprep.subr.bf16.mxu0 %v1765
    %2404 = vmatpush1.bf16.msra.mxu0 %v1764
    %2405 = vmatprep.subr.bf16.mxu0 %v1767
    %2406 = vmatpush1.bf16.msra.mxu0 %v1766
    %2407 = vmatprep.subr.bf16.mxu0 %v1769
    %2408 = vmatpush1.bf16.msra.mxu0 %v1768
    %2409 = vmatprep.subr.bf16.mxu0 %v1771
    %2410 = vmatpush1.bf16.msra.mxu0 %v1770
    %2411 = vmatprep.subr.bf16.mxu0 %v1773
    %2412 = vmatpush1.bf16.msra.mxu0 %v1772
    %2413 = vmatprep.mubr.bf16.mxu0 %v613
    %2414 = vmatmul.mubr.bf16.gmra.mrb[0].mxu0 %v611
    %v2415 = vpop.f32.mrb[0].mxu0
    %v2416 = vadd.f32 %v2375, %v2415
    %v2417 = vpop.f32.mrb[0].mxu0
    %v2418 = vadd.f32 %v2377, %v2417
    %v2419 = vpop.f32.mrb[0].mxu0
    %v2420 = vpop.f32.mrb[0].mxu0
    %2421 = vdwg.mxu0
    %2422 = vmatprep.subr.bf16.mxu0 %v1775
    %2423 = vmatpush1.bf16.msra.mxu0 %v1774
    %2424 = vmatprep.subr.bf16.mxu0 %v1777
    %2425 = vmatpush1.bf16.msra.mxu0 %v1776
    %2426 = vmatprep.subr.bf16.mxu0 %v1779
    %2427 = vmatpush1.bf16.msra.mxu0 %v1778
    %2428 = vmatprep.subr.bf16.mxu0 %v1781
    %2429 = vmatpush1.bf16.msra.mxu0 %v1780
    %2430 = vmatprep.subr.bf16.mxu0 %v1783
    %2431 = vmatpush1.bf16.msra.mxu0 %v1782
    %2432 = vmatprep.subr.bf16.mxu0 %v1785
    %2433 = vmatpush1.bf16.msra.mxu0 %v1784
    %2434 = vmatprep.subr.bf16.mxu0 %v1787
    %2435 = vmatpush1.bf16.msra.mxu0 %v1786
    %2436 = vmatprep.subr.bf16.mxu0 %v1789
    %2437 = vmatpush1.bf16.msra.mxu0 %v1788
    %2438 = vmatprep.subr.bf16.mxu0 %v1791
    %2439 = vmatpush1.bf16.msra.mxu0 %v1790
    %2440 = vmatprep.subr.bf16.mxu0 %v1793
    %2441 = vmatpush1.bf16.msra.mxu0 %v1792
    %2442 = vmatprep.subr.bf16.mxu0 %v1795
    %2443 = vmatpush1.bf16.msra.mxu0 %v1794
    %2444 = vmatprep.subr.bf16.mxu0 %v1797
    %2445 = vmatpush1.bf16.msra.mxu0 %v1796
    %2446 = vmatprep.subr.bf16.mxu0 %v1799
    %2447 = vmatpush1.bf16.msra.mxu0 %v1798
    %2448 = vmatprep.subr.bf16.mxu0 %v1801
    %2449 = vmatpush1.bf16.msra.mxu0 %v1800
    %2450 = vmatprep.subr.bf16.mxu0 %v1803
    %2451 = vmatpush1.bf16.msra.mxu0 %v1802
    %2452 = vmatprep.subr.bf16.mxu0 %v1805
    %2453 = vmatpush1.bf16.msra.mxu0 %v1804
    %2454 = vmatprep.mubr.bf16.mxu0 %v635
    %2455 = vmatmul.mubr.bf16.gmra.mrb[0].mxu0 %v628
    %v2456 = vpop.f32.mrb[0].mxu0
    %v2457 = vadd.f32 %v2416, %v2456
    %v2458 = vpop.f32.mrb[0].mxu0
    %v2459 = vadd.f32 %v2418, %v2458
    %v2460 = vpop.f32.mrb[0].mxu0
    %v2461 = vpop.f32.mrb[0].mxu0
    %2462 = vdwg.mxu0
    %vm2463 = vcmp.gt.f32.partialorder %v2457, 0.0
    %vm2464 = vcmp.gt.f32.partialorder %v2459, 0.0
    %v2465 = vmin.f32 %v2457, 0.0
    %v2466 = vmin.f32 %v2459, 0.0
    %v2467 = vmul.f32 %v2465, 1.442695
    %v2468 = vpow.pop %v2467
    %v2469 = vmul.f32 %v2466, 1.442695
    %v2470 = vpow.pop %v2469
    %v2471 = vsub.f32 %v2468, 1.0
    %v2472 = vsub.f32 %v2470, 1.0
    %v2473 = vsel %vm2463, %v2457, %v2471
    %v2474 = vsel %vm2464, %v2459, %v2472
    %v2475 = vld [vmem:[#allocation8] sm:$0xff]
    %v2476 = vld [vmem:[#allocation8 + $0x8] sm:$0xff]
    %v2477 = vld [vmem:[#allocation8 + $0x10] sm:$0xff]
    %v2478 = vld [vmem:[#allocation8 + $0x18] sm:$0xff]
    %v2479 = vld [vmem:[#allocation8 + $0x20] sm:$0xff]
    %v2480 = vld [vmem:[#allocation8 + $0x28] sm:$0xff]
    %v2481 = vld [vmem:[#allocation8 + $0x30] sm:$0xff]
    %v2482 = vld [vmem:[#allocation8 + $0x38] sm:$0xff]
    %v2483 = vld [vmem:[#allocation8 + $0x40] sm:$0xff]
    %v2484 = vld [vmem:[#allocation8 + $0x48] sm:$0xff]
    %v2485 = vld [vmem:[#allocation8 + $0x50] sm:$0xff]
    %v2486 = vld [vmem:[#allocation8 + $0x58] sm:$0xff]
    %v2487 = vld [vmem:[#allocation8 + $0x60] sm:$0xff]
    %v2488 = vld [vmem:[#allocation8 + $0x68] sm:$0xff]
    %v2489 = vld [vmem:[#allocation8 + $0x70] sm:$0xff]
    %v2490 = vld [vmem:[#allocation8 + $0x78] sm:$0xff]
    %v2491 = vld [vmem:[#allocation8 + $0x80] sm:$0xff]
    %v2492 = vld [vmem:[#allocation8 + $0x88] sm:$0xff]
    %v2493 = vld [vmem:[#allocation8 + $0x90] sm:$0xff]
    %v2494 = vld [vmem:[#allocation8 + $0x98] sm:$0xff]
    %v2495 = vld [vmem:[#allocation8 + $0xa0] sm:$0xff]
    %v2496 = vld [vmem:[#allocation8 + $0xa8] sm:$0xff]
    %v2497 = vld [vmem:[#allocation8 + $0xb0] sm:$0xff]
    %v2498 = vld [vmem:[#allocation8 + $0xb8] sm:$0xff]
    %v2499 = vld [vmem:[#allocation8 + $0xc0] sm:$0xff]
    %v2500 = vld [vmem:[#allocation8 + $0xc8] sm:$0xff]
    %v2501 = vld [vmem:[#allocation8 + $0xd0] sm:$0xff]
    %v2502 = vld [vmem:[#allocation8 + $0xd8] sm:$0xff]
    %v2503 = vld [vmem:[#allocation8 + $0xe0] sm:$0xff]
    %v2504 = vld [vmem:[#allocation8 + $0xe8] sm:$0xff]
    %v2505 = vld [vmem:[#allocation8 + $0xf0] sm:$0xff]
    %v2506 = vld [vmem:[#allocation8 + $0xf8] sm:$0xff]
    %v2507 = vpack.c.bf16 %v2473, %v2473
    %v2508 = vpack.c.bf16 %v2474, %v2474
    %v2509 = vlaneseq
    %v2510 = vshrl.u32 %v2509, 7
    %v2511 = vsub.s32 1, %v2510
    %v2512 = vrot.slane %v129, %v2511
    %v2513 = vlaneseq
    %v2514 = vshrl.u32 %v2513, 7
    %v2515 = vsub.s32 1, %v2514
    %v2516 = vrot.slane %v130, %v2515
    %v2549 = vunpack.c.l.b16 %v2475
    %v2550 = vunpack.c.h.b16 %v2475
    %v2551 = vunpack.c.l.b16 %v2476
    %v2552 = vunpack.c.h.b16 %v2476
    %v2553 = vunpack.c.l.b16 %v2477
    %v2554 = vunpack.c.h.b16 %v2477
    %v2555 = vunpack.c.l.b16 %v2478
    %v2556 = vunpack.c.h.b16 %v2478
    %v2557 = vunpack.c.l.b16 %v2479
    %v2558 = vunpack.c.h.b16 %v2479
    %v2559 = vunpack.c.l.b16 %v2480
    %v2560 = vunpack.c.h.b16 %v2480
    %v2561 = vunpack.c.l.b16 %v2481
    %v2562 = vunpack.c.h.b16 %v2481
    %v2563 = vunpack.c.l.b16 %v2482
    %v2564 = vunpack.c.h.b16 %v2482
    %v2565 = vunpack.c.l.b16 %v2483
    %v2566 = vunpack.c.h.b16 %v2483
    %v2567 = vunpack.c.l.b16 %v2484
    %v2568 = vunpack.c.h.b16 %v2484
    %v2569 = vunpack.c.l.b16 %v2485
    %v2570 = vunpack.c.h.b16 %v2485
    %v2571 = vunpack.c.l.b16 %v2486
    %v2572 = vunpack.c.h.b16 %v2486
    %v2573 = vunpack.c.l.b16 %v2487
    %v2574 = vunpack.c.h.b16 %v2487
    %v2575 = vunpack.c.l.b16 %v2488
    %v2576 = vunpack.c.h.b16 %v2488
    %v2577 = vunpack.c.l.b16 %v2489
    %v2578 = vunpack.c.h.b16 %v2489
    %v2579 = vunpack.c.l.b16 %v2490
    %v2580 = vunpack.c.h.b16 %v2490
    %v2581 = vunpack.c.l.b16 %v2491
    %v2582 = vunpack.c.h.b16 %v2491
    %v2583 = vunpack.c.l.b16 %v2492
    %v2584 = vunpack.c.h.b16 %v2492
    %v2585 = vunpack.c.l.b16 %v2493
    %v2586 = vunpack.c.h.b16 %v2493
    %v2587 = vunpack.c.l.b16 %v2494
    %v2588 = vunpack.c.h.b16 %v2494
    %v2589 = vunpack.c.l.b16 %v2495
    %v2590 = vunpack.c.h.b16 %v2495
    %v2591 = vunpack.c.l.b16 %v2496
    %v2592 = vunpack.c.h.b16 %v2496
    %v2593 = vunpack.c.l.b16 %v2497
    %v2594 = vunpack.c.h.b16 %v2497
    %v2595 = vunpack.c.l.b16 %v2498
    %v2596 = vunpack.c.h.b16 %v2498
    %v2597 = vunpack.c.l.b16 %v2499
    %v2598 = vunpack.c.h.b16 %v2499
    %v2599 = vunpack.c.l.b16 %v2500
    %v2600 = vunpack.c.h.b16 %v2500
    %v2601 = vunpack.c.l.b16 %v2501
    %v2602 = vunpack.c.h.b16 %v2501
    %v2603 = vunpack.c.l.b16 %v2502
    %v2604 = vunpack.c.h.b16 %v2502
    %v2605 = vunpack.c.l.b16 %v2503
    %v2606 = vunpack.c.h.b16 %v2503
    %v2607 = vunpack.c.l.b16 %v2504
    %v2608 = vunpack.c.h.b16 %v2504
    %v2609 = vunpack.c.l.b16 %v2505
    %v2610 = vunpack.c.h.b16 %v2505
    %v2611 = vunpack.c.l.b16 %v2506
    %v2612 = vunpack.c.h.b16 %v2506
    %v2613 = vpack.c.b16 %v2551, %v2549
    %v2614 = vpack.c.b16 %v2552, %v2550
    %v2615 = vpack.c.b16 %v2555, %v2553
    %v2616 = vpack.c.b16 %v2556, %v2554
    %v2617 = vpack.c.b16 %v2559, %v2557
    %v2618 = vpack.c.b16 %v2560, %v2558
    %v2619 = vpack.c.b16 %v2563, %v2561
    %v2620 = vpack.c.b16 %v2564, %v2562
    %v2621 = vpack.c.b16 %v2567, %v2565
    %v2622 = vpack.c.b16 %v2568, %v2566
    %v2623 = vpack.c.b16 %v2571, %v2569
    %v2624 = vpack.c.b16 %v2572, %v2570
    %v2625 = vpack.c.b16 %v2575, %v2573
    %v2626 = vpack.c.b16 %v2576, %v2574
    %v2627 = vpack.c.b16 %v2579, %v2577
    %v2628 = vpack.c.b16 %v2580, %v2578
    %v2629 = vpack.c.b16 %v2583, %v2581
    %v2630 = vpack.c.b16 %v2584, %v2582
    %v2631 = vpack.c.b16 %v2587, %v2585
    %v2632 = vpack.c.b16 %v2588, %v2586
    %v2633 = vpack.c.b16 %v2591, %v2589
    %v2634 = vpack.c.b16 %v2592, %v2590
    %v2635 = vpack.c.b16 %v2595, %v2593
    %v2636 = vpack.c.b16 %v2596, %v2594
    %v2637 = vpack.c.b16 %v2599, %v2597
    %v2638 = vpack.c.b16 %v2600, %v2598
    %v2639 = vpack.c.b16 %v2603, %v2601
    %v2640 = vpack.c.b16 %v2604, %v2602
    %v2641 = vpack.c.b16 %v2607, %v2605
    %v2642 = vpack.c.b16 %v2608, %v2606
    %v2643 = vpack.c.b16 %v2611, %v2609
    %v2644 = vpack.c.b16 %v2612, %v2610
    %2677 = vmatprep.subr.bf16.mxu0 %v2614
    %2678 = vmatpush1.bf16.msra.mxu0 %v2613
    %2679 = vmatprep.subr.bf16.mxu0 %v2616
    %2680 = vmatpush1.bf16.msra.mxu0 %v2615
    %2681 = vmatprep.subr.bf16.mxu0 %v2618
    %2682 = vmatpush1.bf16.msra.mxu0 %v2617
    %2683 = vmatprep.subr.bf16.mxu0 %v2620
    %2684 = vmatpush1.bf16.msra.mxu0 %v2619
    %2685 = vmatprep.subr.bf16.mxu0 %v2622
    %2686 = vmatpush1.bf16.msra.mxu0 %v2621
    %2687 = vmatprep.subr.bf16.mxu0 %v2624
    %2688 = vmatpush1.bf16.msra.mxu0 %v2623
    %2689 = vmatprep.subr.bf16.mxu0 %v2626
    %2690 = vmatpush1.bf16.msra.mxu0 %v2625
    %2691 = vmatprep.subr.bf16.mxu0 %v2628
    %2692 = vmatpush1.bf16.msra.mxu0 %v2627
    %2693 = vmatprep.subr.bf16.mxu0 %v2630
    %2694 = vmatpush1.bf16.msra.mxu0 %v2629
    %2695 = vmatprep.subr.bf16.mxu0 %v2632
    %2696 = vmatpush1.bf16.msra.mxu0 %v2631
    %2697 = vmatprep.subr.bf16.mxu0 %v2634
    %2698 = vmatpush1.bf16.msra.mxu0 %v2633
    %2699 = vmatprep.subr.bf16.mxu0 %v2636
    %2700 = vmatpush1.bf16.msra.mxu0 %v2635
    %2701 = vmatprep.subr.bf16.mxu0 %v2638
    %2702 = vmatpush1.bf16.msra.mxu0 %v2637
    %2703 = vmatprep.subr.bf16.mxu0 %v2640
    %2704 = vmatpush1.bf16.msra.mxu0 %v2639
    %2705 = vmatprep.subr.bf16.mxu0 %v2642
    %2706 = vmatpush1.bf16.msra.mxu0 %v2641
    %2707 = vmatprep.subr.bf16.mxu0 %v2644
    %2708 = vmatpush1.bf16.msra.mxu0 %v2643
    %2709 = vmatprep.mubr.bf16.mxu0 %v2508
    %2710 = vmatmul.mubr.bf16.gmra.mrb[0].mxu0 %v2507
    %v2711 = vpop.f32.mrb[0].mxu0
    %v2712 = vadd.f32 %v2512, %v2711
    %v2713 = vpop.f32.mrb[0].mxu0
    %v2714 = vadd.f32 %v2516, %v2713
    %v2715 = vpop.f32.mrb[0].mxu0
    %v2716 = vpop.f32.mrb[0].mxu0
    %2717 = vdwg.mxu0
    %v2718 = vmax.f32 %v2712, 0.0
    %v2719 = vmax.f32 %v2714, 0.0
    %v2720 = vld [vmem:[#allocation10] sm:$0xff]
    %v2721 = vld [vmem:[#allocation10 + $0x8] sm:$0xff]
    %v2722 = vld [vmem:[#allocation10 + $0x10] sm:$0xff]
    %v2723 = vld [vmem:[#allocation10 + $0x18] sm:$0xff]
    %v2724 = vld [vmem:[#allocation10 + $0x20] sm:$0xff]
    %v2725 = vld [vmem:[#allocation10 + $0x28] sm:$0xff]
    %v2726 = vld [vmem:[#allocation10 + $0x30] sm:$0xff]
    %v2727 = vld [vmem:[#allocation10 + $0x38] sm:$0xff]
    %v2728 = vld [vmem:[#allocation10 + $0x40] sm:$0xff]
    %v2729 = vld [vmem:[#allocation10 + $0x48] sm:$0xff]
    %v2730 = vld [vmem:[#allocation10 + $0x50] sm:$0xff]
    %v2731 = vld [vmem:[#allocation10 + $0x58] sm:$0xff]
    %v2732 = vld [vmem:[#allocation10 + $0x60] sm:$0xff]
    %v2733 = vld [vmem:[#allocation10 + $0x68] sm:$0xff]
    %v2734 = vld [vmem:[#allocation10 + $0x70] sm:$0xff]
    %v2735 = vld [vmem:[#allocation10 + $0x78] sm:$0xff]
    %v2736 = vld [vmem:[#allocation10 + $0x80] sm:$0xff]
    %v2737 = vld [vmem:[#allocation10 + $0x88] sm:$0xff]
    %v2738 = vld [vmem:[#allocation10 + $0x90] sm:$0xff]
    %v2739 = vld [vmem:[#allocation10 + $0x98] sm:$0xff]
    %v2740 = vld [vmem:[#allocation10 + $0xa0] sm:$0xff]
    %v2741 = vld [vmem:[#allocation10 + $0xa8] sm:$0xff]
    %v2742 = vld [vmem:[#allocation10 + $0xb0] sm:$0xff]
    %v2743 = vld [vmem:[#allocation10 + $0xb8] sm:$0xff]
    %v2744 = vld [vmem:[#allocation10 + $0xc0] sm:$0xff]
    %v2745 = vld [vmem:[#allocation10 + $0xc8] sm:$0xff]
    %v2746 = vld [vmem:[#allocation10 + $0xd0] sm:$0xff]
    %v2747 = vld [vmem:[#allocation10 + $0xd8] sm:$0xff]
    %v2748 = vld [vmem:[#allocation10 + $0xe0] sm:$0xff]
    %v2749 = vld [vmem:[#allocation10 + $0xe8] sm:$0xff]
    %v2750 = vld [vmem:[#allocation10 + $0xf0] sm:$0xff]
    %v2751 = vld [vmem:[#allocation10 + $0xf8] sm:$0xff]
    %v2752 = vld [vmem:[#allocation10 + $0x100] sm:$0xff]
    %v2753 = vld [vmem:[#allocation10 + $0x108] sm:$0xff]
    %v2754 = vld [vmem:[#allocation10 + $0x110] sm:$0xff]
    %v2755 = vld [vmem:[#allocation10 + $0x118] sm:$0xff]
    %v2756 = vld [vmem:[#allocation10 + $0x120] sm:$0xff]
    %v2757 = vld [vmem:[#allocation10 + $0x128] sm:$0xff]
    %v2758 = vld [vmem:[#allocation10 + $0x130] sm:$0xff]
    %v2759 = vld [vmem:[#allocation10 + $0x138] sm:$0xff]
    %v2760 = vld [vmem:[#allocation10 + $0x140] sm:$0xff]
    %v2761 = vld [vmem:[#allocation10 + $0x148] sm:$0xff]
    %v2762 = vld [vmem:[#allocation10 + $0x150] sm:$0xff]
    %v2763 = vld [vmem:[#allocation10 + $0x158] sm:$0xff]
    %v2764 = vld [vmem:[#allocation10 + $0x160] sm:$0xff]
    %v2765 = vld [vmem:[#allocation10 + $0x168] sm:$0xff]
    %v2766 = vld [vmem:[#allocation10 + $0x170] sm:$0xff]
    %v2767 = vld [vmem:[#allocation10 + $0x178] sm:$0xff]
    %v2768 = vld [vmem:[#allocation10 + $0x180] sm:$0xff]
    %v2769 = vld [vmem:[#allocation10 + $0x188] sm:$0xff]
    %v2770 = vld [vmem:[#allocation10 + $0x190] sm:$0xff]
    %v2771 = vld [vmem:[#allocation10 + $0x198] sm:$0xff]
    %v2772 = vld [vmem:[#allocation10 + $0x1a0] sm:$0xff]
    %v2773 = vld [vmem:[#allocation10 + $0x1a8] sm:$0xff]
    %v2774 = vld [vmem:[#allocation10 + $0x1b0] sm:$0xff]
    %v2775 = vld [vmem:[#allocation10 + $0x1b8] sm:$0xff]
    %v2776 = vld [vmem:[#allocation10 + $0x1c0] sm:$0xff]
    %v2777 = vld [vmem:[#allocation10 + $0x1c8] sm:$0xff]
    %v2778 = vld [vmem:[#allocation10 + $0x1d0] sm:$0xff]
    %v2779 = vld [vmem:[#allocation10 + $0x1d8] sm:$0xff]
    %v2780 = vld [vmem:[#allocation10 + $0x1e0] sm:$0xff]
    %v2781 = vld [vmem:[#allocation10 + $0x1e8] sm:$0xff]
    %v2782 = vld [vmem:[#allocation10 + $0x1f0] sm:$0xff]
    %v2783 = vld [vmem:[#allocation10 + $0x1f8] sm:$0xff]
    %v2784 = vpack.c.bf16 %v2718, %v2718
    %v2785 = vpack.c.bf16 %v2719, %v2719
    %v2787 = vlaneseq
    %v2788 = vshrl.u32 %v2787, 7
    %v2789 = vsub.s32 0, %v2788
    %v2790 = vrot.slane %v131, %v2789
    %v2791 = vlaneseq
    %v2792 = vshrl.u32 %v2791, 7
    %v2793 = vsub.s32 2, %v2792
    %v2794 = vrot.slane %v131, %v2793
    %v2795 = vlaneseq
    %v2796 = vshrl.u32 %v2795, 7
    %v2797 = vsub.s32 4, %v2796
    %v2798 = vrot.slane %v131, %v2797
    %v2799 = vlaneseq
    %v2800 = vshrl.u32 %v2799, 7
    %v2801 = vsub.s32 6, %v2800
    %v2802 = vrot.slane %v131, %v2801
    %v2807 = vlaneseq
    %v2808 = vshrl.u32 %v2807, 7
    %v2809 = vsub.s32 0, %v2808
    %v2810 = vrot.slane %v2790, %v2809
    %v2811 = vlaneseq
    %v2812 = vshrl.u32 %v2811, 7
    %v2813 = vsub.s32 0, %v2812
    %v2814 = vrot.slane %v2794, %v2813
    %v2815 = vlaneseq
    %v2816 = vshrl.u32 %v2815, 7
    %v2817 = vsub.s32 0, %v2816
    %v2818 = vrot.slane %v2798, %v2817
    %v2819 = vlaneseq
    %v2820 = vshrl.u32 %v2819, 7
    %v2821 = vsub.s32 0, %v2820
    %v2822 = vrot.slane %v2802, %v2821
    %v2887 = vunpack.c.l.b16 %v2720
    %v2888 = vunpack.c.h.b16 %v2720
    %v2889 = vunpack.c.l.b16 %v2721
    %v2890 = vunpack.c.h.b16 %v2721
    %v2891 = vunpack.c.l.b16 %v2722
    %v2892 = vunpack.c.h.b16 %v2722
    %v2893 = vunpack.c.l.b16 %v2723
    %v2894 = vunpack.c.h.b16 %v2723
    %v2895 = vunpack.c.l.b16 %v2724
    %v2896 = vunpack.c.h.b16 %v2724
    %v2897 = vunpack.c.l.b16 %v2725
    %v2898 = vunpack.c.h.b16 %v2725
    %v2899 = vunpack.c.l.b16 %v2726
    %v2900 = vunpack.c.h.b16 %v2726
    %v2901 = vunpack.c.l.b16 %v2727
    %v2902 = vunpack.c.h.b16 %v2727
    %v2903 = vunpack.c.l.b16 %v2728
    %v2904 = vunpack.c.h.b16 %v2728
    %v2905 = vunpack.c.l.b16 %v2729
    %v2906 = vunpack.c.h.b16 %v2729
    %v2907 = vunpack.c.l.b16 %v2730
    %v2908 = vunpack.c.h.b16 %v2730
    %v2909 = vunpack.c.l.b16 %v2731
    %v2910 = vunpack.c.h.b16 %v2731
    %v2911 = vunpack.c.l.b16 %v2732
    %v2912 = vunpack.c.h.b16 %v2732
    %v2913 = vunpack.c.l.b16 %v2733
    %v2914 = vunpack.c.h.b16 %v2733
    %v2915 = vunpack.c.l.b16 %v2734
    %v2916 = vunpack.c.h.b16 %v2734
    %v2917 = vunpack.c.l.b16 %v2735
    %v2918 = vunpack.c.h.b16 %v2735
    %v2919 = vunpack.c.l.b16 %v2736
    %v2920 = vunpack.c.h.b16 %v2736
    %v2921 = vunpack.c.l.b16 %v2737
    %v2922 = vunpack.c.h.b16 %v2737
    %v2923 = vunpack.c.l.b16 %v2738
    %v2924 = vunpack.c.h.b16 %v2738
    %v2925 = vunpack.c.l.b16 %v2739
    %v2926 = vunpack.c.h.b16 %v2739
    %v2927 = vunpack.c.l.b16 %v2740
    %v2928 = vunpack.c.h.b16 %v2740
    %v2929 = vunpack.c.l.b16 %v2741
    %v2930 = vunpack.c.h.b16 %v2741
    %v2931 = vunpack.c.l.b16 %v2742
    %v2932 = vunpack.c.h.b16 %v2742
    %v2933 = vunpack.c.l.b16 %v2743
    %v2934 = vunpack.c.h.b16 %v2743
    %v2935 = vunpack.c.l.b16 %v2744
    %v2936 = vunpack.c.h.b16 %v2744
    %v2937 = vunpack.c.l.b16 %v2745
    %v2938 = vunpack.c.h.b16 %v2745
    %v2939 = vunpack.c.l.b16 %v2746
    %v2940 = vunpack.c.h.b16 %v2746
    %v2941 = vunpack.c.l.b16 %v2747
    %v2942 = vunpack.c.h.b16 %v2747
    %v2943 = vunpack.c.l.b16 %v2748
    %v2944 = vunpack.c.h.b16 %v2748
    %v2945 = vunpack.c.l.b16 %v2749
    %v2946 = vunpack.c.h.b16 %v2749
    %v2947 = vunpack.c.l.b16 %v2750
    %v2948 = vunpack.c.h.b16 %v2750
    %v2949 = vunpack.c.l.b16 %v2751
    %v2950 = vunpack.c.h.b16 %v2751
    %v2951 = vunpack.c.l.b16 %v2752
    %v2952 = vunpack.c.h.b16 %v2752
    %v2953 = vunpack.c.l.b16 %v2753
    %v2954 = vunpack.c.h.b16 %v2753
    %v2955 = vunpack.c.l.b16 %v2754
    %v2956 = vunpack.c.h.b16 %v2754
    %v2957 = vunpack.c.l.b16 %v2755
    %v2958 = vunpack.c.h.b16 %v2755
    %v2959 = vunpack.c.l.b16 %v2756
    %v2960 = vunpack.c.h.b16 %v2756
    %v2961 = vunpack.c.l.b16 %v2757
    %v2962 = vunpack.c.h.b16 %v2757
    %v2963 = vunpack.c.l.b16 %v2758
    %v2964 = vunpack.c.h.b16 %v2758
    %v2965 = vunpack.c.l.b16 %v2759
    %v2966 = vunpack.c.h.b16 %v2759
    %v2967 = vunpack.c.l.b16 %v2760
    %v2968 = vunpack.c.h.b16 %v2760
    %v2969 = vunpack.c.l.b16 %v2761
    %v2970 = vunpack.c.h.b16 %v2761
    %v2971 = vunpack.c.l.b16 %v2762
    %v2972 = vunpack.c.h.b16 %v2762
    %v2973 = vunpack.c.l.b16 %v2763
    %v2974 = vunpack.c.h.b16 %v2763
    %v2975 = vunpack.c.l.b16 %v2764
    %v2976 = vunpack.c.h.b16 %v2764
    %v2977 = vunpack.c.l.b16 %v2765
    %v2978 = vunpack.c.h.b16 %v2765
    %v2979 = vunpack.c.l.b16 %v2766
    %v2980 = vunpack.c.h.b16 %v2766
    %v2981 = vunpack.c.l.b16 %v2767
    %v2982 = vunpack.c.h.b16 %v2767
    %v2983 = vunpack.c.l.b16 %v2768
    %v2984 = vunpack.c.h.b16 %v2768
    %v2985 = vunpack.c.l.b16 %v2769
    %v2986 = vunpack.c.h.b16 %v2769
    %v2987 = vunpack.c.l.b16 %v2770
    %v2988 = vunpack.c.h.b16 %v2770
    %v2989 = vunpack.c.l.b16 %v2771
    %v2990 = vunpack.c.h.b16 %v2771
    %v2991 = vunpack.c.l.b16 %v2772
    %v2992 = vunpack.c.h.b16 %v2772
    %v2993 = vunpack.c.l.b16 %v2773
    %v2994 = vunpack.c.h.b16 %v2773
    %v2995 = vunpack.c.l.b16 %v2774
    %v2996 = vunpack.c.h.b16 %v2774
    %v2997 = vunpack.c.l.b16 %v2775
    %v2998 = vunpack.c.h.b16 %v2775
    %v2999 = vunpack.c.l.b16 %v2776
    %v3000 = vunpack.c.h.b16 %v2776
    %v3001 = vunpack.c.l.b16 %v2777
    %v3002 = vunpack.c.h.b16 %v2777
    %v3003 = vunpack.c.l.b16 %v2778
    %v3004 = vunpack.c.h.b16 %v2778
    %v3005 = vunpack.c.l.b16 %v2779
    %v3006 = vunpack.c.h.b16 %v2779
    %v3007 = vunpack.c.l.b16 %v2780
    %v3008 = vunpack.c.h.b16 %v2780
    %v3009 = vunpack.c.l.b16 %v2781
    %v3010 = vunpack.c.h.b16 %v2781
    %v3011 = vunpack.c.l.b16 %v2782
    %v3012 = vunpack.c.h.b16 %v2782
    %v3013 = vunpack.c.l.b16 %v2783
    %v3014 = vunpack.c.h.b16 %v2783
    %v3015 = vpack.c.b16 %v2891, %v2887
    %v3016 = vpack.c.b16 %v2892, %v2888
    %v3017 = vpack.c.b16 %v2893, %v2889
    %v3018 = vpack.c.b16 %v2894, %v2890
    %v3019 = vpack.c.b16 %v2899, %v2895
    %v3020 = vpack.c.b16 %v2900, %v2896
    %v3021 = vpack.c.b16 %v2901, %v2897
    %v3022 = vpack.c.b16 %v2902, %v2898
    %v3023 = vpack.c.b16 %v2907, %v2903
    %v3024 = vpack.c.b16 %v2908, %v2904
    %v3025 = vpack.c.b16 %v2909, %v2905
    %v3026 = vpack.c.b16 %v2910, %v2906
    %v3027 = vpack.c.b16 %v2915, %v2911
    %v3028 = vpack.c.b16 %v2916, %v2912
    %v3029 = vpack.c.b16 %v2917, %v2913
    %v3030 = vpack.c.b16 %v2918, %v2914
    %v3031 = vpack.c.b16 %v2923, %v2919
    %v3032 = vpack.c.b16 %v2924, %v2920
    %v3033 = vpack.c.b16 %v2925, %v2921
    %v3034 = vpack.c.b16 %v2926, %v2922
    %v3035 = vpack.c.b16 %v2931, %v2927
    %v3036 = vpack.c.b16 %v2932, %v2928
    %v3037 = vpack.c.b16 %v2933, %v2929
    %v3038 = vpack.c.b16 %v2934, %v2930
    %v3039 = vpack.c.b16 %v2939, %v2935
    %v3040 = vpack.c.b16 %v2940, %v2936
    %v3041 = vpack.c.b16 %v2941, %v2937
    %v3042 = vpack.c.b16 %v2942, %v2938
    %v3043 = vpack.c.b16 %v2947, %v2943
    %v3044 = vpack.c.b16 %v2948, %v2944
    %v3045 = vpack.c.b16 %v2949, %v2945
    %v3046 = vpack.c.b16 %v2950, %v2946
    %v3047 = vpack.c.b16 %v2955, %v2951
    %v3048 = vpack.c.b16 %v2956, %v2952
    %v3049 = vpack.c.b16 %v2957, %v2953
    %v3050 = vpack.c.b16 %v2958, %v2954
    %v3051 = vpack.c.b16 %v2963, %v2959
    %v3052 = vpack.c.b16 %v2964, %v2960
    %v3053 = vpack.c.b16 %v2965, %v2961
    %v3054 = vpack.c.b16 %v2966, %v2962
    %v3055 = vpack.c.b16 %v2971, %v2967
    %v3056 = vpack.c.b16 %v2972, %v2968
    %v3057 = vpack.c.b16 %v2973, %v2969
    %v3058 = vpack.c.b16 %v2974, %v2970
    %v3059 = vpack.c.b16 %v2979, %v2975
    %v3060 = vpack.c.b16 %v2980, %v2976
    %v3061 = vpack.c.b16 %v2981, %v2977
    %v3062 = vpack.c.b16 %v2982, %v2978
    %v3063 = vpack.c.b16 %v2987, %v2983
    %v3064 = vpack.c.b16 %v2988, %v2984
    %v3065 = vpack.c.b16 %v2989, %v2985
    %v3066 = vpack.c.b16 %v2990, %v2986
    %v3067 = vpack.c.b16 %v2995, %v2991
    %v3068 = vpack.c.b16 %v2996, %v2992
    %v3069 = vpack.c.b16 %v2997, %v2993
    %v3070 = vpack.c.b16 %v2998, %v2994
    %v3071 = vpack.c.b16 %v3003, %v2999
    %v3072 = vpack.c.b16 %v3004, %v3000
    %v3073 = vpack.c.b16 %v3005, %v3001
    %v3074 = vpack.c.b16 %v3006, %v3002
    %v3075 = vpack.c.b16 %v3011, %v3007
    %v3076 = vpack.c.b16 %v3012, %v3008
    %v3077 = vpack.c.b16 %v3013, %v3009
    %v3078 = vpack.c.b16 %v3014, %v3010
    %3143 = vmatprep.subr.bf16.mxu0 %v3016
    %3144 = vmatpush1.bf16.msra.mxu0 %v3015
    %3145 = vmatprep.subr.bf16.mxu0 %v3020
    %3146 = vmatpush1.bf16.msra.mxu0 %v3019
    %3147 = vmatprep.subr.bf16.mxu0 %v3024
    %3148 = vmatpush1.bf16.msra.mxu0 %v3023
    %3149 = vmatprep.subr.bf16.mxu0 %v3028
    %3150 = vmatpush1.bf16.msra.mxu0 %v3027
    %3151 = vmatprep.subr.bf16.mxu0 %v3032
    %3152 = vmatpush1.bf16.msra.mxu0 %v3031
    %3153 = vmatprep.subr.bf16.mxu0 %v3036
    %3154 = vmatpush1.bf16.msra.mxu0 %v3035
    %3155 = vmatprep.subr.bf16.mxu0 %v3040
    %3156 = vmatpush1.bf16.msra.mxu0 %v3039
    %3157 = vmatprep.subr.bf16.mxu0 %v3044
    %3158 = vmatpush1.bf16.msra.mxu0 %v3043
    %3159 = vmatprep.subr.bf16.mxu0 %v3048
    %3160 = vmatpush1.bf16.msra.mxu0 %v3047
    %3161 = vmatprep.subr.bf16.mxu0 %v3052
    %3162 = vmatpush1.bf16.msra.mxu0 %v3051
    %3163 = vmatprep.subr.bf16.mxu0 %v3056
    %3164 = vmatpush1.bf16.msra.mxu0 %v3055
    %3165 = vmatprep.subr.bf16.mxu0 %v3060
    %3166 = vmatpush1.bf16.msra.mxu0 %v3059
    %3167 = vmatprep.subr.bf16.mxu0 %v3064
    %3168 = vmatpush1.bf16.msra.mxu0 %v3063
    %3169 = vmatprep.subr.bf16.mxu0 %v3068
    %3170 = vmatpush1.bf16.msra.mxu0 %v3067
    %3171 = vmatprep.subr.bf16.mxu0 %v3072
    %3172 = vmatpush1.bf16.msra.mxu0 %v3071
    %3173 = vmatprep.subr.bf16.mxu0 %v3076
    %3174 = vmatpush1.bf16.msra.mxu0 %v3075
    %3175 = vmatprep.mubr.bf16.mxu0 %v2785
    %3176 = vmatmul.mubr.bf16.gmra.mrb[0].mxu0 %v2784
    %v3177 = vpop.f32.mrb[0].mxu0
    %v3178 = vadd.f32 %v2810, %v3177
    %v3179 = vpop.f32.mrb[0].mxu0
    %v3180 = vadd.f32 %v2814, %v3179
    %v3181 = vpop.f32.mrb[0].mxu0
    %v3182 = vpop.f32.mrb[0].mxu0
    %3183 = vdwg.mxu0
    %3184 = vmatprep.subr.bf16.mxu0 %v3018
    %3185 = vmatpush1.bf16.msra.mxu0 %v3017
    %3186 = vmatprep.subr.bf16.mxu0 %v3022
    %3187 = vmatpush1.bf16.msra.mxu0 %v3021
    %3188 = vmatprep.subr.bf16.mxu0 %v3026
    %3189 = vmatpush1.bf16.msra.mxu0 %v3025
    %3190 = vmatprep.subr.bf16.mxu0 %v3030
    %3191 = vmatpush1.bf16.msra.mxu0 %v3029
    %3192 = vmatprep.subr.bf16.mxu0 %v3034
    %3193 = vmatpush1.bf16.msra.mxu0 %v3033
    %3194 = vmatprep.subr.bf16.mxu0 %v3038
    %3195 = vmatpush1.bf16.msra.mxu0 %v3037
    %3196 = vmatprep.subr.bf16.mxu0 %v3042
    %3197 = vmatpush1.bf16.msra.mxu0 %v3041
    %3198 = vmatprep.subr.bf16.mxu0 %v3046
    %3199 = vmatpush1.bf16.msra.mxu0 %v3045
    %3200 = vmatprep.subr.bf16.mxu0 %v3050
    %3201 = vmatpush1.bf16.msra.mxu0 %v3049
    %3202 = vmatprep.subr.bf16.mxu0 %v3054
    %3203 = vmatpush1.bf16.msra.mxu0 %v3053
    %3204 = vmatprep.subr.bf16.mxu0 %v3058
    %3205 = vmatpush1.bf16.msra.mxu0 %v3057
    %3206 = vmatprep.subr.bf16.mxu0 %v3062
    %3207 = vmatpush1.bf16.msra.mxu0 %v3061
    %3208 = vmatprep.subr.bf16.mxu0 %v3066
    %3209 = vmatpush1.bf16.msra.mxu0 %v3065
    %3210 = vmatprep.subr.bf16.mxu0 %v3070
    %3211 = vmatpush1.bf16.msra.mxu0 %v3069
    %3212 = vmatprep.subr.bf16.mxu0 %v3074
    %3213 = vmatpush1.bf16.msra.mxu0 %v3073
    %3214 = vmatprep.subr.bf16.mxu0 %v3078
    %3215 = vmatpush1.bf16.msra.mxu0 %v3077
    %3216 = vmatprep.mubr.bf16.mxu0 %v2785
    %3217 = vmatmul.mubr.bf16.gmra.mrb[0].mxu0 %v2784
    %v3218 = vpop.f32.mrb[0].mxu0
    %v3219 = vadd.f32 %v2818, %v3218
    %v3220 = vpop.f32.mrb[0].mxu0
    %v3221 = vadd.f32 %v2822, %v3220
    %v3222 = vpop.f32.mrb[0].mxu0
    %v3223 = vpop.f32.mrb[0].mxu0
    %3224 = vdwg.mxu0
    %v3225 = vmax.f32 %v3178, 0.0
    %v3226 = vmax.f32 %v3180, 0.0
    %v3227 = vmax.f32 %v3219, 0.0
    %v3228 = vmax.f32 %v3221, 0.0
    %v3229 = vld [vmem:[#allocation8 + $0x100] sm:$0xff]
    %v3230 = vld [vmem:[#allocation8 + $0x108] sm:$0xff]
    %v3231 = vld [vmem:[#allocation8 + $0x110] sm:$0xff]
    %v3232 = vld [vmem:[#allocation8 + $0x118] sm:$0xff]
    %v3233 = vld [vmem:[#allocation8 + $0x120] sm:$0xff]
    %v3234 = vld [vmem:[#allocation8 + $0x128] sm:$0xff]
    %v3235 = vld [vmem:[#allocation8 + $0x130] sm:$0xff]
    %v3236 = vld [vmem:[#allocation8 + $0x138] sm:$0xff]
    %v3237 = vld [vmem:[#allocation8 + $0x140] sm:$0xff]
    %v3238 = vld [vmem:[#allocation8 + $0x148] sm:$0xff]
    %v3239 = vld [vmem:[#allocation8 + $0x150] sm:$0xff]
    %v3240 = vld [vmem:[#allocation8 + $0x158] sm:$0xff]
    %v3241 = vld [vmem:[#allocation8 + $0x160] sm:$0xff]
    %v3242 = vld [vmem:[#allocation8 + $0x168] sm:$0xff]
    %v3243 = vld [vmem:[#allocation8 + $0x170] sm:$0xff]
    %v3244 = vld [vmem:[#allocation8 + $0x178] sm:$0xff]
    %v3245 = vld [vmem:[#allocation8 + $0x180] sm:$0xff]
    %v3246 = vld [vmem:[#allocation8 + $0x188] sm:$0xff]
    %v3247 = vld [vmem:[#allocation8 + $0x190] sm:$0xff]
    %v3248 = vld [vmem:[#allocation8 + $0x198] sm:$0xff]
    %v3249 = vld [vmem:[#allocation8 + $0x1a0] sm:$0xff]
    %v3250 = vld [vmem:[#allocation8 + $0x1a8] sm:$0xff]
    %v3251 = vld [vmem:[#allocation8 + $0x1b0] sm:$0xff]
    %v3252 = vld [vmem:[#allocation8 + $0x1b8] sm:$0xff]
    %v3253 = vld [vmem:[#allocation8 + $0x1c0] sm:$0xff]
    %v3254 = vld [vmem:[#allocation8 + $0x1c8] sm:$0xff]
    %v3255 = vld [vmem:[#allocation8 + $0x1d0] sm:$0xff]
    %v3256 = vld [vmem:[#allocation8 + $0x1d8] sm:$0xff]
    %v3257 = vld [vmem:[#allocation8 + $0x1e0] sm:$0xff]
    %v3258 = vld [vmem:[#allocation8 + $0x1e8] sm:$0xff]
    %v3259 = vld [vmem:[#allocation8 + $0x1f0] sm:$0xff]
    %v3260 = vld [vmem:[#allocation8 + $0x1f8] sm:$0xff]
    %v3261 = vld [vmem:[#allocation8 + $0x200] sm:$0xff]
    %v3262 = vld [vmem:[#allocation8 + $0x208] sm:$0xff]
    %v3263 = vld [vmem:[#allocation8 + $0x210] sm:$0xff]
    %v3264 = vld [vmem:[#allocation8 + $0x218] sm:$0xff]
    %v3265 = vld [vmem:[#allocation8 + $0x220] sm:$0xff]
    %v3266 = vld [vmem:[#allocation8 + $0x228] sm:$0xff]
    %v3267 = vld [vmem:[#allocation8 + $0x230] sm:$0xff]
    %v3268 = vld [vmem:[#allocation8 + $0x238] sm:$0xff]
    %v3269 = vld [vmem:[#allocation8 + $0x240] sm:$0xff]
    %v3270 = vld [vmem:[#allocation8 + $0x248] sm:$0xff]
    %v3271 = vld [vmem:[#allocation8 + $0x250] sm:$0xff]
    %v3272 = vld [vmem:[#allocation8 + $0x258] sm:$0xff]
    %v3273 = vld [vmem:[#allocation8 + $0x260] sm:$0xff]
    %v3274 = vld [vmem:[#allocation8 + $0x268] sm:$0xff]
    %v3275 = vld [vmem:[#allocation8 + $0x270] sm:$0xff]
    %v3276 = vld [vmem:[#allocation8 + $0x278] sm:$0xff]
    %v3277 = vld [vmem:[#allocation8 + $0x280] sm:$0xff]
    %v3278 = vld [vmem:[#allocation8 + $0x288] sm:$0xff]
    %v3279 = vld [vmem:[#allocation8 + $0x290] sm:$0xff]
    %v3280 = vld [vmem:[#allocation8 + $0x298] sm:$0xff]
    %v3281 = vld [vmem:[#allocation8 + $0x2a0] sm:$0xff]
    %v3282 = vld [vmem:[#allocation8 + $0x2a8] sm:$0xff]
    %v3283 = vld [vmem:[#allocation8 + $0x2b0] sm:$0xff]
    %v3284 = vld [vmem:[#allocation8 + $0x2b8] sm:$0xff]
    %v3285 = vld [vmem:[#allocation8 + $0x2c0] sm:$0xff]
    %v3286 = vld [vmem:[#allocation8 + $0x2c8] sm:$0xff]
    %v3287 = vld [vmem:[#allocation8 + $0x2d0] sm:$0xff]
    %v3288 = vld [vmem:[#allocation8 + $0x2d8] sm:$0xff]
    %v3289 = vld [vmem:[#allocation8 + $0x2e0] sm:$0xff]
    %v3290 = vld [vmem:[#allocation8 + $0x2e8] sm:$0xff]
    %v3291 = vld [vmem:[#allocation8 + $0x2f0] sm:$0xff]
    %v3292 = vld [vmem:[#allocation8 + $0x2f8] sm:$0xff]
    %v3293 = vpack.c.bf16 %v3225, %v3225
    %v3294 = vpack.c.bf16 %v3226, %v3226
    %v3295 = vpack.c.bf16 %v3227, %v3227
    %v3296 = vpack.c.bf16 %v3228, %v3228
    %v3297 = vlaneseq
    %v3298 = vshrl.u32 %v3297, 7
    %v3299 = vsub.s32 2, %v3298
    %v3300 = vrot.slane %v129, %v3299
    %v3301 = vlaneseq
    %v3302 = vshrl.u32 %v3301, 7
    %v3303 = vsub.s32 2, %v3302
    %v3304 = vrot.slane %v130, %v3303
    %v3369 = vunpack.c.l.b16 %v3229
    %v3370 = vunpack.c.h.b16 %v3229
    %v3371 = vunpack.c.l.b16 %v3230
    %v3372 = vunpack.c.h.b16 %v3230
    %v3373 = vunpack.c.l.b16 %v3231
    %v3374 = vunpack.c.h.b16 %v3231
    %v3375 = vunpack.c.l.b16 %v3232
    %v3376 = vunpack.c.h.b16 %v3232
    %v3377 = vunpack.c.l.b16 %v3233
    %v3378 = vunpack.c.h.b16 %v3233
    %v3379 = vunpack.c.l.b16 %v3234
    %v3380 = vunpack.c.h.b16 %v3234
    %v3381 = vunpack.c.l.b16 %v3235
    %v3382 = vunpack.c.h.b16 %v3235
    %v3383 = vunpack.c.l.b16 %v3236
    %v3384 = vunpack.c.h.b16 %v3236
    %v3385 = vunpack.c.l.b16 %v3237
    %v3386 = vunpack.c.h.b16 %v3237
    %v3387 = vunpack.c.l.b16 %v3238
    %v3388 = vunpack.c.h.b16 %v3238
    %v3389 = vunpack.c.l.b16 %v3239
    %v3390 = vunpack.c.h.b16 %v3239
    %v3391 = vunpack.c.l.b16 %v3240
    %v3392 = vunpack.c.h.b16 %v3240
    %v3393 = vunpack.c.l.b16 %v3241
    %v3394 = vunpack.c.h.b16 %v3241
    %v3395 = vunpack.c.l.b16 %v3242
    %v3396 = vunpack.c.h.b16 %v3242
    %v3397 = vunpack.c.l.b16 %v3243
    %v3398 = vunpack.c.h.b16 %v3243
    %v3399 = vunpack.c.l.b16 %v3244
    %v3400 = vunpack.c.h.b16 %v3244
    %v3401 = vunpack.c.l.b16 %v3245
    %v3402 = vunpack.c.h.b16 %v3245
    %v3403 = vunpack.c.l.b16 %v3246
    %v3404 = vunpack.c.h.b16 %v3246
    %v3405 = vunpack.c.l.b16 %v3247
    %v3406 = vunpack.c.h.b16 %v3247
    %v3407 = vunpack.c.l.b16 %v3248
    %v3408 = vunpack.c.h.b16 %v3248
    %v3409 = vunpack.c.l.b16 %v3249
    %v3410 = vunpack.c.h.b16 %v3249
    %v3411 = vunpack.c.l.b16 %v3250
    %v3412 = vunpack.c.h.b16 %v3250
    %v3413 = vunpack.c.l.b16 %v3251
    %v3414 = vunpack.c.h.b16 %v3251
    %v3415 = vunpack.c.l.b16 %v3252
    %v3416 = vunpack.c.h.b16 %v3252
    %v3417 = vunpack.c.l.b16 %v3253
    %v3418 = vunpack.c.h.b16 %v3253
    %v3419 = vunpack.c.l.b16 %v3254
    %v3420 = vunpack.c.h.b16 %v3254
    %v3421 = vunpack.c.l.b16 %v3255
    %v3422 = vunpack.c.h.b16 %v3255
    %v3423 = vunpack.c.l.b16 %v3256
    %v3424 = vunpack.c.h.b16 %v3256
    %v3425 = vunpack.c.l.b16 %v3257
    %v3426 = vunpack.c.h.b16 %v3257
    %v3427 = vunpack.c.l.b16 %v3258
    %v3428 = vunpack.c.h.b16 %v3258
    %v3429 = vunpack.c.l.b16 %v3259
    %v3430 = vunpack.c.h.b16 %v3259
    %v3431 = vunpack.c.l.b16 %v3260
    %v3432 = vunpack.c.h.b16 %v3260
    %v3433 = vunpack.c.l.b16 %v3261
    %v3434 = vunpack.c.h.b16 %v3261
    %v3435 = vunpack.c.l.b16 %v3262
    %v3436 = vunpack.c.h.b16 %v3262
    %v3437 = vunpack.c.l.b16 %v3263
    %v3438 = vunpack.c.h.b16 %v3263
    %v3439 = vunpack.c.l.b16 %v3264
    %v3440 = vunpack.c.h.b16 %v3264
    %v3441 = vunpack.c.l.b16 %v3265
    %v3442 = vunpack.c.h.b16 %v3265
    %v3443 = vunpack.c.l.b16 %v3266
    %v3444 = vunpack.c.h.b16 %v3266
    %v3445 = vunpack.c.l.b16 %v3267
    %v3446 = vunpack.c.h.b16 %v3267
    %v3447 = vunpack.c.l.b16 %v3268
    %v3448 = vunpack.c.h.b16 %v3268
    %v3449 = vunpack.c.l.b16 %v3269
    %v3450 = vunpack.c.h.b16 %v3269
    %v3451 = vunpack.c.l.b16 %v3270
    %v3452 = vunpack.c.h.b16 %v3270
    %v3453 = vunpack.c.l.b16 %v3271
    %v3454 = vunpack.c.h.b16 %v3271
    %v3455 = vunpack.c.l.b16 %v3272
    %v3456 = vunpack.c.h.b16 %v3272
    %v3457 = vunpack.c.l.b16 %v3273
    %v3458 = vunpack.c.h.b16 %v3273
    %v3459 = vunpack.c.l.b16 %v3274
    %v3460 = vunpack.c.h.b16 %v3274
    %v3461 = vunpack.c.l.b16 %v3275
    %v3462 = vunpack.c.h.b16 %v3275
    %v3463 = vunpack.c.l.b16 %v3276
    %v3464 = vunpack.c.h.b16 %v3276
    %v3465 = vunpack.c.l.b16 %v3277
    %v3466 = vunpack.c.h.b16 %v3277
    %v3467 = vunpack.c.l.b16 %v3278
    %v3468 = vunpack.c.h.b16 %v3278
    %v3469 = vunpack.c.l.b16 %v3279
    %v3470 = vunpack.c.h.b16 %v3279
    %v3471 = vunpack.c.l.b16 %v3280
    %v3472 = vunpack.c.h.b16 %v3280
    %v3473 = vunpack.c.l.b16 %v3281
    %v3474 = vunpack.c.h.b16 %v3281
    %v3475 = vunpack.c.l.b16 %v3282
    %v3476 = vunpack.c.h.b16 %v3282
    %v3477 = vunpack.c.l.b16 %v3283
    %v3478 = vunpack.c.h.b16 %v3283
    %v3479 = vunpack.c.l.b16 %v3284
    %v3480 = vunpack.c.h.b16 %v3284
    %v3481 = vunpack.c.l.b16 %v3285
    %v3482 = vunpack.c.h.b16 %v3285
    %v3483 = vunpack.c.l.b16 %v3286
    %v3484 = vunpack.c.h.b16 %v3286
    %v3485 = vunpack.c.l.b16 %v3287
    %v3486 = vunpack.c.h.b16 %v3287
    %v3487 = vunpack.c.l.b16 %v3288
    %v3488 = vunpack.c.h.b16 %v3288
    %v3489 = vunpack.c.l.b16 %v3289
    %v3490 = vunpack.c.h.b16 %v3289
    %v3491 = vunpack.c.l.b16 %v3290
    %v3492 = vunpack.c.h.b16 %v3290
    %v3493 = vunpack.c.l.b16 %v3291
    %v3494 = vunpack.c.h.b16 %v3291
    %v3495 = vunpack.c.l.b16 %v3292
    %v3496 = vunpack.c.h.b16 %v3292
    %v3497 = vpack.c.b16 %v3371, %v3369
    %v3498 = vpack.c.b16 %v3372, %v3370
    %v3499 = vpack.c.b16 %v3375, %v3373
    %v3500 = vpack.c.b16 %v3376, %v3374
    %v3501 = vpack.c.b16 %v3379, %v3377
    %v3502 = vpack.c.b16 %v3380, %v3378
    %v3503 = vpack.c.b16 %v3383, %v3381
    %v3504 = vpack.c.b16 %v3384, %v3382
    %v3505 = vpack.c.b16 %v3387, %v3385
    %v3506 = vpack.c.b16 %v3388, %v3386
    %v3507 = vpack.c.b16 %v3391, %v3389
    %v3508 = vpack.c.b16 %v3392, %v3390
    %v3509 = vpack.c.b16 %v3395, %v3393
    %v3510 = vpack.c.b16 %v3396, %v3394
    %v3511 = vpack.c.b16 %v3399, %v3397
    %v3512 = vpack.c.b16 %v3400, %v3398
    %v3513 = vpack.c.b16 %v3403, %v3401
    %v3514 = vpack.c.b16 %v3404, %v3402
    %v3515 = vpack.c.b16 %v3407, %v3405
    %v3516 = vpack.c.b16 %v3408, %v3406
    %v3517 = vpack.c.b16 %v3411, %v3409
    %v3518 = vpack.c.b16 %v3412, %v3410
    %v3519 = vpack.c.b16 %v3415, %v3413
    %v3520 = vpack.c.b16 %v3416, %v3414
    %v3521 = vpack.c.b16 %v3419, %v3417
    %v3522 = vpack.c.b16 %v3420, %v3418
    %v3523 = vpack.c.b16 %v3423, %v3421
    %v3524 = vpack.c.b16 %v3424, %v3422
    %v3525 = vpack.c.b16 %v3427, %v3425
    %v3526 = vpack.c.b16 %v3428, %v3426
    %v3527 = vpack.c.b16 %v3431, %v3429
    %v3528 = vpack.c.b16 %v3432, %v3430
    %v3529 = vpack.c.b16 %v3435, %v3433
    %v3530 = vpack.c.b16 %v3436, %v3434
    %v3531 = vpack.c.b16 %v3439, %v3437
    %v3532 = vpack.c.b16 %v3440, %v3438
    %v3533 = vpack.c.b16 %v3443, %v3441
    %v3534 = vpack.c.b16 %v3444, %v3442
    %v3535 = vpack.c.b16 %v3447, %v3445
    %v3536 = vpack.c.b16 %v3448, %v3446
    %v3537 = vpack.c.b16 %v3451, %v3449
    %v3538 = vpack.c.b16 %v3452, %v3450
    %v3539 = vpack.c.b16 %v3455, %v3453
    %v3540 = vpack.c.b16 %v3456, %v3454
    %v3541 = vpack.c.b16 %v3459, %v3457
    %v3542 = vpack.c.b16 %v3460, %v3458
    %v3543 = vpack.c.b16 %v3463, %v3461
    %v3544 = vpack.c.b16 %v3464, %v3462
    %v3545 = vpack.c.b16 %v3467, %v3465
    %v3546 = vpack.c.b16 %v3468, %v3466
    %v3547 = vpack.c.b16 %v3471, %v3469
    %v3548 = vpack.c.b16 %v3472, %v3470
    %v3549 = vpack.c.b16 %v3475, %v3473
    %v3550 = vpack.c.b16 %v3476, %v3474
    %v3551 = vpack.c.b16 %v3479, %v3477
    %v3552 = vpack.c.b16 %v3480, %v3478
    %v3553 = vpack.c.b16 %v3483, %v3481
    %v3554 = vpack.c.b16 %v3484, %v3482
    %v3555 = vpack.c.b16 %v3487, %v3485
    %v3556 = vpack.c.b16 %v3488, %v3486
    %v3557 = vpack.c.b16 %v3491, %v3489
    %v3558 = vpack.c.b16 %v3492, %v3490
    %v3559 = vpack.c.b16 %v3495, %v3493
    %v3560 = vpack.c.b16 %v3496, %v3494
    %3625 = vmatprep.subr.bf16.mxu0 %v3498
    %3626 = vmatpush1.bf16.msra.mxu0 %v3497
    %3627 = vmatprep.subr.bf16.mxu0 %v3500
    %3628 = vmatpush1.bf16.msra.mxu0 %v3499
    %3629 = vmatprep.subr.bf16.mxu0 %v3502
    %3630 = vmatpush1.bf16.msra.mxu0 %v3501
    %3631 = vmatprep.subr.bf16.mxu0 %v3504
    %3632 = vmatpush1.bf16.msra.mxu0 %v3503
    %3633 = vmatprep.subr.bf16.mxu0 %v3506
    %3634 = vmatpush1.bf16.msra.mxu0 %v3505
    %3635 = vmatprep.subr.bf16.mxu0 %v3508
    %3636 = vmatpush1.bf16.msra.mxu0 %v3507
    %3637 = vmatprep.subr.bf16.mxu0 %v3510
    %3638 = vmatpush1.bf16.msra.mxu0 %v3509
    %3639 = vmatprep.subr.bf16.mxu0 %v3512
    %3640 = vmatpush1.bf16.msra.mxu0 %v3511
    %3641 = vmatprep.subr.bf16.mxu0 %v3514
    %3642 = vmatpush1.bf16.msra.mxu0 %v3513
    %3643 = vmatprep.subr.bf16.mxu0 %v3516
    %3644 = vmatpush1.bf16.msra.mxu0 %v3515
    %3645 = vmatprep.subr.bf16.mxu0 %v3518
    %3646 = vmatpush1.bf16.msra.mxu0 %v3517
    %3647 = vmatprep.subr.bf16.mxu0 %v3520
    %3648 = vmatpush1.bf16.msra.mxu0 %v3519
    %3649 = vmatprep.subr.bf16.mxu0 %v3522
    %3650 = vmatpush1.bf16.msra.mxu0 %v3521
    %3651 = vmatprep.subr.bf16.mxu0 %v3524
    %3652 = vmatpush1.bf16.msra.mxu0 %v3523
    %3653 = vmatprep.subr.bf16.mxu0 %v3526
    %3654 = vmatpush1.bf16.msra.mxu0 %v3525
    %3655 = vmatprep.subr.bf16.mxu0 %v3528
    %3656 = vmatpush1.bf16.msra.mxu0 %v3527
    %3657 = vmatprep.mubr.bf16.mxu0 %v3294
    %3658 = vmatmul.mubr.bf16.gmra.mrb[0].mxu0 %v3293
    %v3659 = vpop.f32.mrb[0].mxu0
    %v3660 = vadd.f32 %v3300, %v3659
    %v3661 = vpop.f32.mrb[0].mxu0
    %v3662 = vadd.f32 %v3304, %v3661
    %v3663 = vpop.f32.mrb[0].mxu0
    %v3664 = vpop.f32.mrb[0].mxu0
    %3665 = vdwg.mxu0
    %3666 = vmatprep.subr.bf16.mxu0 %v3530
    %3667 = vmatpush1.bf16.msra.mxu0 %v3529
    %3668 = vmatprep.subr.bf16.mxu0 %v3532
    %3669 = vmatpush1.bf16.msra.mxu0 %v3531
    %3670 = vmatprep.subr.bf16.mxu0 %v3534
    %3671 = vmatpush1.bf16.msra.mxu0 %v3533
    %3672 = vmatprep.subr.bf16.mxu0 %v3536
    %3673 = vmatpush1.bf16.msra.mxu0 %v3535
    %3674 = vmatprep.subr.bf16.mxu0 %v3538
    %3675 = vmatpush1.bf16.msra.mxu0 %v3537
    %3676 = vmatprep.subr.bf16.mxu0 %v3540
    %3677 = vmatpush1.bf16.msra.mxu0 %v3539
    %3678 = vmatprep.subr.bf16.mxu0 %v3542
    %3679 = vmatpush1.bf16.msra.mxu0 %v3541
    %3680 = vmatprep.subr.bf16.mxu0 %v3544
    %3681 = vmatpush1.bf16.msra.mxu0 %v3543
    %3682 = vmatprep.subr.bf16.mxu0 %v3546
    %3683 = vmatpush1.bf16.msra.mxu0 %v3545
    %3684 = vmatprep.subr.bf16.mxu0 %v3548
    %3685 = vmatpush1.bf16.msra.mxu0 %v3547
    %3686 = vmatprep.subr.bf16.mxu0 %v3550
    %3687 = vmatpush1.bf16.msra.mxu0 %v3549
    %3688 = vmatprep.subr.bf16.mxu0 %v3552
    %3689 = vmatpush1.bf16.msra.mxu0 %v3551
    %3690 = vmatprep.subr.bf16.mxu0 %v3554
    %3691 = vmatpush1.bf16.msra.mxu0 %v3553
    %3692 = vmatprep.subr.bf16.mxu0 %v3556
    %3693 = vmatpush1.bf16.msra.mxu0 %v3555
    %3694 = vmatprep.subr.bf16.mxu0 %v3558
    %3695 = vmatpush1.bf16.msra.mxu0 %v3557
    %3696 = vmatprep.subr.bf16.mxu0 %v3560
    %3697 = vmatpush1.bf16.msra.mxu0 %v3559
    %3698 = vmatprep.mubr.bf16.mxu0 %v3296
    %3699 = vmatmul.mubr.bf16.gmra.mrb[0].mxu0 %v3295
    %v3700 = vpop.f32.mrb[0].mxu0
    %v3701 = vadd.f32 %v3660, %v3700
    %v3702 = vpop.f32.mrb[0].mxu0
    %v3703 = vadd.f32 %v3662, %v3702
    %v3704 = vpop.f32.mrb[0].mxu0
    %v3705 = vpop.f32.mrb[0].mxu0
    %3706 = vdwg.mxu0
    %v3707 = vadd.f32 %v3701, %v2718
    %v3708 = vadd.f32 %v3703, %v2719
    %v3709 = vmax.f32 %v3707, 0.0
    %v3710 = vmax.f32 %v3708, 0.0
    %v3711 = vld [vmem:[#allocation8 + $0x300] sm:$0xff]
    %v3712 = vld [vmem:[#allocation8 + $0x308] sm:$0xff]
    %v3713 = vld [vmem:[#allocation8 + $0x310] sm:$0xff]
    %v3714 = vld [vmem:[#allocation8 + $0x318] sm:$0xff]
    %v3715 = vld [vmem:[#allocation8 + $0x320] sm:$0xff]
    %v3716 = vld [vmem:[#allocation8 + $0x328] sm:$0xff]
    %v3717 = vld [vmem:[#allocation8 + $0x330] sm:$0xff]
    %v3718 = vld [vmem:[#allocation8 + $0x338] sm:$0xff]
    %v3719 = vld [vmem:[#allocation8 + $0x340] sm:$0xff]
    %v3720 = vld [vmem:[#allocation8 + $0x348] sm:$0xff]
    %v3721 = vld [vmem:[#allocation8 + $0x350] sm:$0xff]
    %v3722 = vld [vmem:[#allocation8 + $0x358] sm:$0xff]
    %v3723 = vld [vmem:[#allocation8 + $0x360] sm:$0xff]
    %v3724 = vld [vmem:[#allocation8 + $0x368] sm:$0xff]
    %v3725 = vld [vmem:[#allocation8 + $0x370] sm:$0xff]
    %v3726 = vld [vmem:[#allocation8 + $0x378] sm:$0xff]
    %v3727 = vld [vmem:[#allocation8 + $0x380] sm:$0xff]
    %v3728 = vld [vmem:[#allocation8 + $0x388] sm:$0xff]
    %v3729 = vld [vmem:[#allocation8 + $0x390] sm:$0xff]
    %v3730 = vld [vmem:[#allocation8 + $0x398] sm:$0xff]
    %v3731 = vld [vmem:[#allocation8 + $0x3a0] sm:$0xff]
    %v3732 = vld [vmem:[#allocation8 + $0x3a8] sm:$0xff]
    %v3733 = vld [vmem:[#allocation8 + $0x3b0] sm:$0xff]
    %v3734 = vld [vmem:[#allocation8 + $0x3b8] sm:$0xff]
    %v3735 = vld [vmem:[#allocation8 + $0x3c0] sm:$0xff]
    %v3736 = vld [vmem:[#allocation8 + $0x3c8] sm:$0xff]
    %v3737 = vld [vmem:[#allocation8 + $0x3d0] sm:$0xff]
    %v3738 = vld [vmem:[#allocation8 + $0x3d8] sm:$0xff]
    %v3739 = vld [vmem:[#allocation8 + $0x3e0] sm:$0xff]
    %v3740 = vld [vmem:[#allocation8 + $0x3e8] sm:$0xff]
    %v3741 = vld [vmem:[#allocation8 + $0x3f0] sm:$0xff]
    %v3742 = vld [vmem:[#allocation8 + $0x3f8] sm:$0xff]
    %v3743 = vpack.c.bf16 %v3709, %v3709
    %v3744 = vpack.c.bf16 %v3710, %v3710
    %v3745 = vlaneseq
    %v3746 = vshrl.u32 %v3745, 7
    %v3747 = vsub.s32 3, %v3746
    %v3748 = vrot.slane %v129, %v3747
    %v3749 = vlaneseq
    %v3750 = vshrl.u32 %v3749, 7
    %v3751 = vsub.s32 3, %v3750
    %v3752 = vrot.slane %v130, %v3751
    %v3785 = vunpack.c.l.b16 %v3711
    %v3786 = vunpack.c.h.b16 %v3711
    %v3787 = vunpack.c.l.b16 %v3712
    %v3788 = vunpack.c.h.b16 %v3712
    %v3789 = vunpack.c.l.b16 %v3713
    %v3790 = vunpack.c.h.b16 %v3713
    %v3791 = vunpack.c.l.b16 %v3714
    %v3792 = vunpack.c.h.b16 %v3714
    %v3793 = vunpack.c.l.b16 %v3715
    %v3794 = vunpack.c.h.b16 %v3715
    %v3795 = vunpack.c.l.b16 %v3716
    %v3796 = vunpack.c.h.b16 %v3716
    %v3797 = vunpack.c.l.b16 %v3717
    %v3798 = vunpack.c.h.b16 %v3717
    %v3799 = vunpack.c.l.b16 %v3718
    %v3800 = vunpack.c.h.b16 %v3718
    %v3801 = vunpack.c.l.b16 %v3719
    %v3802 = vunpack.c.h.b16 %v3719
    %v3803 = vunpack.c.l.b16 %v3720
    %v3804 = vunpack.c.h.b16 %v3720
    %v3805 = vunpack.c.l.b16 %v3721
    %v3806 = vunpack.c.h.b16 %v3721
    %v3807 = vunpack.c.l.b16 %v3722
    %v3808 = vunpack.c.h.b16 %v3722
    %v3809 = vunpack.c.l.b16 %v3723
    %v3810 = vunpack.c.h.b16 %v3723
    %v3811 = vunpack.c.l.b16 %v3724
    %v3812 = vunpack.c.h.b16 %v3724
    %v3813 = vunpack.c.l.b16 %v3725
    %v3814 = vunpack.c.h.b16 %v3725
    %v3815 = vunpack.c.l.b16 %v3726
    %v3816 = vunpack.c.h.b16 %v3726
    %v3817 = vunpack.c.l.b16 %v3727
    %v3818 = vunpack.c.h.b16 %v3727
    %v3819 = vunpack.c.l.b16 %v3728
    %v3820 = vunpack.c.h.b16 %v3728
    %v3821 = vunpack.c.l.b16 %v3729
    %v3822 = vunpack.c.h.b16 %v3729
    %v3823 = vunpack.c.l.b16 %v3730
    %v3824 = vunpack.c.h.b16 %v3730
    %v3825 = vunpack.c.l.b16 %v3731
    %v3826 = vunpack.c.h.b16 %v3731
    %v3827 = vunpack.c.l.b16 %v3732
    %v3828 = vunpack.c.h.b16 %v3732
    %v3829 = vunpack.c.l.b16 %v3733
    %v3830 = vunpack.c.h.b16 %v3733
    %v3831 = vunpack.c.l.b16 %v3734
    %v3832 = vunpack.c.h.b16 %v3734
    %v3833 = vunpack.c.l.b16 %v3735
    %v3834 = vunpack.c.h.b16 %v3735
    %v3835 = vunpack.c.l.b16 %v3736
    %v3836 = vunpack.c.h.b16 %v3736
    %v3837 = vunpack.c.l.b16 %v3737
    %v3838 = vunpack.c.h.b16 %v3737
    %v3839 = vunpack.c.l.b16 %v3738
    %v3840 = vunpack.c.h.b16 %v3738
    %v3841 = vunpack.c.l.b16 %v3739
    %v3842 = vunpack.c.h.b16 %v3739
    %v3843 = vunpack.c.l.b16 %v3740
    %v3844 = vunpack.c.h.b16 %v3740
    %v3845 = vunpack.c.l.b16 %v3741
    %v3846 = vunpack.c.h.b16 %v3741
    %v3847 = vunpack.c.l.b16 %v3742
    %v3848 = vunpack.c.h.b16 %v3742
    %v3849 = vpack.c.b16 %v3787, %v3785
    %v3850 = vpack.c.b16 %v3788, %v3786
    %v3851 = vpack.c.b16 %v3791, %v3789
    %v3852 = vpack.c.b16 %v3792, %v3790
    %v3853 = vpack.c.b16 %v3795, %v3793
    %v3854 = vpack.c.b16 %v3796, %v3794
    %v3855 = vpack.c.b16 %v3799, %v3797
    %v3856 = vpack.c.b16 %v3800, %v3798
    %v3857 = vpack.c.b16 %v3803, %v3801
    %v3858 = vpack.c.b16 %v3804, %v3802
    %v3859 = vpack.c.b16 %v3807, %v3805
    %v3860 = vpack.c.b16 %v3808, %v3806
    %v3861 = vpack.c.b16 %v3811, %v3809
    %v3862 = vpack.c.b16 %v3812, %v3810
    %v3863 = vpack.c.b16 %v3815, %v3813
    %v3864 = vpack.c.b16 %v3816, %v3814
    %v3865 = vpack.c.b16 %v3819, %v3817
    %v3866 = vpack.c.b16 %v3820, %v3818
    %v3867 = vpack.c.b16 %v3823, %v3821
    %v3868 = vpack.c.b16 %v3824, %v3822
    %v3869 = vpack.c.b16 %v3827, %v3825
    %v3870 = vpack.c.b16 %v3828, %v3826
    %v3871 = vpack.c.b16 %v3831, %v3829
    %v3872 = vpack.c.b16 %v3832, %v3830
    %v3873 = vpack.c.b16 %v3835, %v3833
    %v3874 = vpack.c.b16 %v3836, %v3834
    %v3875 = vpack.c.b16 %v3839, %v3837
    %v3876 = vpack.c.b16 %v3840, %v3838
    %v3877 = vpack.c.b16 %v3843, %v3841
    %v3878 = vpack.c.b16 %v3844, %v3842
    %v3879 = vpack.c.b16 %v3847, %v3845
    %v3880 = vpack.c.b16 %v3848, %v3846
    %3913 = vmatprep.subr.bf16.mxu0 %v3850
    %3914 = vmatpush1.bf16.msra.mxu0 %v3849
    %3915 = vmatprep.subr.bf16.mxu0 %v3852
    %3916 = vmatpush1.bf16.msra.mxu0 %v3851
    %3917 = vmatprep.subr.bf16.mxu0 %v3854
    %3918 = vmatpush1.bf16.msra.mxu0 %v3853
    %3919 = vmatprep.subr.bf16.mxu0 %v3856
    %3920 = vmatpush1.bf16.msra.mxu0 %v3855
    %3921 = vmatprep.subr.bf16.mxu0 %v3858
    %3922 = vmatpush1.bf16.msra.mxu0 %v3857
    %3923 = vmatprep.subr.bf16.mxu0 %v3860
    %3924 = vmatpush1.bf16.msra.mxu0 %v3859
    %3925 = vmatprep.subr.bf16.mxu0 %v3862
    %3926 = vmatpush1.bf16.msra.mxu0 %v3861
    %3927 = vmatprep.subr.bf16.mxu0 %v3864
    %3928 = vmatpush1.bf16.msra.mxu0 %v3863
    %3929 = vmatprep.subr.bf16.mxu0 %v3866
    %3930 = vmatpush1.bf16.msra.mxu0 %v3865
    %3931 = vmatprep.subr.bf16.mxu0 %v3868
    %3932 = vmatpush1.bf16.msra.mxu0 %v3867
    %3933 = vmatprep.subr.bf16.mxu0 %v3870
    %3934 = vmatpush1.bf16.msra.mxu0 %v3869
    %3935 = vmatprep.subr.bf16.mxu0 %v3872
    %3936 = vmatpush1.bf16.msra.mxu0 %v3871
    %3937 = vmatprep.subr.bf16.mxu0 %v3874
    %3938 = vmatpush1.bf16.msra.mxu0 %v3873
    %3939 = vmatprep.subr.bf16.mxu0 %v3876
    %3940 = vmatpush1.bf16.msra.mxu0 %v3875
    %3941 = vmatprep.subr.bf16.mxu0 %v3878
    %3942 = vmatpush1.bf16.msra.mxu0 %v3877
    %3943 = vmatprep.subr.bf16.mxu0 %v3880
    %3944 = vmatpush1.bf16.msra.mxu0 %v3879
    %3945 = vmatprep.mubr.bf16.mxu0 %v3744
    %3946 = vmatmul.mubr.bf16.gmra.mrb[0].mxu0 %v3743
    %v3947 = vpop.f32.mrb[0].mxu0
    %v3948 = vadd.f32 %v3748, %v3947
    %v3949 = vpop.f32.mrb[0].mxu0
    %v3950 = vadd.f32 %v3752, %v3949
    %v3951 = vpop.f32.mrb[0].mxu0
    %v3952 = vpop.f32.mrb[0].mxu0
    %3953 = vdwg.mxu0
    %v3954 = vmax.f32 %v3948, 0.0
    %v3955 = vmax.f32 %v3950, 0.0
    %v3956 = vld [vmem:[#allocation10 + $0x200] sm:$0xff]
    %v3957 = vld [vmem:[#allocation10 + $0x208] sm:$0xff]
    %v3958 = vld [vmem:[#allocation10 + $0x210] sm:$0xff]
    %v3959 = vld [vmem:[#allocation10 + $0x218] sm:$0xff]
    %v3960 = vld [vmem:[#allocation10 + $0x220] sm:$0xff]
    %v3961 = vld [vmem:[#allocation10 + $0x228] sm:$0xff]
    %v3962 = vld [vmem:[#allocation10 + $0x230] sm:$0xff]
    %v3963 = vld [vmem:[#allocation10 + $0x238] sm:$0xff]
    %v3964 = vld [vmem:[#allocation10 + $0x240] sm:$0xff]
    %v3965 = vld [vmem:[#allocation10 + $0x248] sm:$0xff]
    %v3966 = vld [vmem:[#allocation10 + $0x250] sm:$0xff]
    %v3967 = vld [vmem:[#allocation10 + $0x258] sm:$0xff]
    %v3968 = vld [vmem:[#allocation10 + $0x260] sm:$0xff]
    %v3969 = vld [vmem:[#allocation10 + $0x268] sm:$0xff]
    %v3970 = vld [vmem:[#allocation10 + $0x270] sm:$0xff]
    %v3971 = vld [vmem:[#allocation10 + $0x278] sm:$0xff]
    %v3972 = vld [vmem:[#allocation10 + $0x280] sm:$0xff]
    %v3973 = vld [vmem:[#allocation10 + $0x288] sm:$0xff]
    %v3974 = vld [vmem:[#allocation10 + $0x290] sm:$0xff]
    %v3975 = vld [vmem:[#allocation10 + $0x298] sm:$0xff]
    %v3976 = vld [vmem:[#allocation10 + $0x2a0] sm:$0xff]
    %v3977 = vld [vmem:[#allocation10 + $0x2a8] sm:$0xff]
    %v3978 = vld [vmem:[#allocation10 + $0x2b0] sm:$0xff]
    %v3979 = vld [vmem:[#allocation10 + $0x2b8] sm:$0xff]
    %v3980 = vld [vmem:[#allocation10 + $0x2c0] sm:$0xff]
    %v3981 = vld [vmem:[#allocation10 + $0x2c8] sm:$0xff]
    %v3982 = vld [vmem:[#allocation10 + $0x2d0] sm:$0xff]
    %v3983 = vld [vmem:[#allocation10 + $0x2d8] sm:$0xff]
    %v3984 = vld [vmem:[#allocation10 + $0x2e0] sm:$0xff]
    %v3985 = vld [vmem:[#allocation10 + $0x2e8] sm:$0xff]
    %v3986 = vld [vmem:[#allocation10 + $0x2f0] sm:$0xff]
    %v3987 = vld [vmem:[#allocation10 + $0x2f8] sm:$0xff]
    %v3988 = vld [vmem:[#allocation10 + $0x300] sm:$0xff]
    %v3989 = vld [vmem:[#allocation10 + $0x308] sm:$0xff]
    %v3990 = vld [vmem:[#allocation10 + $0x310] sm:$0xff]
    %v3991 = vld [vmem:[#allocation10 + $0x318] sm:$0xff]
    %v3992 = vld [vmem:[#allocation10 + $0x320] sm:$0xff]
    %v3993 = vld [vmem:[#allocation10 + $0x328] sm:$0xff]
    %v3994 = vld [vmem:[#allocation10 + $0x330] sm:$0xff]
    %v3995 = vld [vmem:[#allocation10 + $0x338] sm:$0xff]
    %v3996 = vld [vmem:[#allocation10 + $0x340] sm:$0xff]
    %v3997 = vld [vmem:[#allocation10 + $0x348] sm:$0xff]
    %v3998 = vld [vmem:[#allocation10 + $0x350] sm:$0xff]
    %v3999 = vld [vmem:[#allocation10 + $0x358] sm:$0xff]
    %v4000 = vld [vmem:[#allocation10 + $0x360] sm:$0xff]
    %v4001 = vld [vmem:[#allocation10 + $0x368] sm:$0xff]
    %v4002 = vld [vmem:[#allocation10 + $0x370] sm:$0xff]
    %v4003 = vld [vmem:[#allocation10 + $0x378] sm:$0xff]
    %v4004 = vld [vmem:[#allocation10 + $0x380] sm:$0xff]
    %v4005 = vld [vmem:[#allocation10 + $0x388] sm:$0xff]
    %v4006 = vld [vmem:[#allocation10 + $0x390] sm:$0xff]
    %v4007 = vld [vmem:[#allocation10 + $0x398] sm:$0xff]
    %v4008 = vld [vmem:[#allocation10 + $0x3a0] sm:$0xff]
    %v4009 = vld [vmem:[#allocation10 + $0x3a8] sm:$0xff]
    %v4010 = vld [vmem:[#allocation10 + $0x3b0] sm:$0xff]
    %v4011 = vld [vmem:[#allocation10 + $0x3b8] sm:$0xff]
    %v4012 = vld [vmem:[#allocation10 + $0x3c0] sm:$0xff]
    %v4013 = vld [vmem:[#allocation10 + $0x3c8] sm:$0xff]
    %v4014 = vld [vmem:[#allocation10 + $0x3d0] sm:$0xff]
    %v4015 = vld [vmem:[#allocation10 + $0x3d8] sm:$0xff]
    %v4016 = vld [vmem:[#allocation10 + $0x3e0] sm:$0xff]
    %v4017 = vld [vmem:[#allocation10 + $0x3e8] sm:$0xff]
    %v4018 = vld [vmem:[#allocation10 + $0x3f0] sm:$0xff]
    %v4019 = vld [vmem:[#allocation10 + $0x3f8] sm:$0xff]
    %v4020 = vpack.c.bf16 %v3954, %v3954
    %v4021 = vpack.c.bf16 %v3955, %v3955
    %v4022 = vlaneseq
    %v4023 = vshrl.u32 %v4022, 7
    %v4024 = vsub.s32 1, %v4023
    %v4025 = vrot.slane %v131, %v4024
    %v4026 = vlaneseq
    %v4027 = vshrl.u32 %v4026, 7
    %v4028 = vsub.s32 3, %v4027
    %v4029 = vrot.slane %v131, %v4028
    %v4030 = vlaneseq
    %v4031 = vshrl.u32 %v4030, 7
    %v4032 = vsub.s32 5, %v4031
    %v4033 = vrot.slane %v131, %v4032
    %v4034 = vlaneseq
    %v4035 = vshrl.u32 %v4034, 7
    %v4036 = vsub.s32 7, %v4035
    %v4037 = vrot.slane %v131, %v4036
    %v4042 = vlaneseq
    %v4043 = vshrl.u32 %v4042, 7
    %v4044 = vsub.s32 1, %v4043
    %v4045 = vrot.slane %v4025, %v4044
    %v4046 = vlaneseq
    %v4047 = vshrl.u32 %v4046, 7
    %v4048 = vsub.s32 1, %v4047
    %v4049 = vrot.slane %v4029, %v4048
    %v4050 = vlaneseq
    %v4051 = vshrl.u32 %v4050, 7
    %v4052 = vsub.s32 1, %v4051
    %v4053 = vrot.slane %v4033, %v4052
    %v4054 = vlaneseq
    %v4055 = vshrl.u32 %v4054, 7
    %v4056 = vsub.s32 1, %v4055
    %v4057 = vrot.slane %v4037, %v4056
    %v4122 = vunpack.c.l.b16 %v3956
    %v4123 = vunpack.c.h.b16 %v3956
    %v4124 = vunpack.c.l.b16 %v3957
    %v4125 = vunpack.c.h.b16 %v3957
    %v4126 = vunpack.c.l.b16 %v3958
    %v4127 = vunpack.c.h.b16 %v3958
    %v4128 = vunpack.c.l.b16 %v3959
    %v4129 = vunpack.c.h.b16 %v3959
    %v4130 = vunpack.c.l.b16 %v3960
    %v4131 = vunpack.c.h.b16 %v3960
    %v4132 = vunpack.c.l.b16 %v3961
    %v4133 = vunpack.c.h.b16 %v3961
    %v4134 = vunpack.c.l.b16 %v3962
    %v4135 = vunpack.c.h.b16 %v3962
    %v4136 = vunpack.c.l.b16 %v3963
    %v4137 = vunpack.c.h.b16 %v3963
    %v4138 = vunpack.c.l.b16 %v3964
    %v4139 = vunpack.c.h.b16 %v3964
    %v4140 = vunpack.c.l.b16 %v3965
    %v4141 = vunpack.c.h.b16 %v3965
    %v4142 = vunpack.c.l.b16 %v3966
    %v4143 = vunpack.c.h.b16 %v3966
    %v4144 = vunpack.c.l.b16 %v3967
    %v4145 = vunpack.c.h.b16 %v3967
    %v4146 = vunpack.c.l.b16 %v3968
    %v4147 = vunpack.c.h.b16 %v3968
    %v4148 = vunpack.c.l.b16 %v3969
    %v4149 = vunpack.c.h.b16 %v3969
    %v4150 = vunpack.c.l.b16 %v3970
    %v4151 = vunpack.c.h.b16 %v3970
    %v4152 = vunpack.c.l.b16 %v3971
    %v4153 = vunpack.c.h.b16 %v3971
    %v4154 = vunpack.c.l.b16 %v3972
    %v4155 = vunpack.c.h.b16 %v3972
    %v4156 = vunpack.c.l.b16 %v3973
    %v4157 = vunpack.c.h.b16 %v3973
    %v4158 = vunpack.c.l.b16 %v3974
    %v4159 = vunpack.c.h.b16 %v3974
    %v4160 = vunpack.c.l.b16 %v3975
    %v4161 = vunpack.c.h.b16 %v3975
    %v4162 = vunpack.c.l.b16 %v3976
    %v4163 = vunpack.c.h.b16 %v3976
    %v4164 = vunpack.c.l.b16 %v3977
    %v4165 = vunpack.c.h.b16 %v3977
    %v4166 = vunpack.c.l.b16 %v3978
    %v4167 = vunpack.c.h.b16 %v3978
    %v4168 = vunpack.c.l.b16 %v3979
    %v4169 = vunpack.c.h.b16 %v3979
    %v4170 = vunpack.c.l.b16 %v3980
    %v4171 = vunpack.c.h.b16 %v3980
    %v4172 = vunpack.c.l.b16 %v3981
    %v4173 = vunpack.c.h.b16 %v3981
    %v4174 = vunpack.c.l.b16 %v3982
    %v4175 = vunpack.c.h.b16 %v3982
    %v4176 = vunpack.c.l.b16 %v3983
    %v4177 = vunpack.c.h.b16 %v3983
    %v4178 = vunpack.c.l.b16 %v3984
    %v4179 = vunpack.c.h.b16 %v3984
    %v4180 = vunpack.c.l.b16 %v3985
    %v4181 = vunpack.c.h.b16 %v3985
    %v4182 = vunpack.c.l.b16 %v3986
    %v4183 = vunpack.c.h.b16 %v3986
    %v4184 = vunpack.c.l.b16 %v3987
    %v4185 = vunpack.c.h.b16 %v3987
    %v4186 = vunpack.c.l.b16 %v3988
    %v4187 = vunpack.c.h.b16 %v3988
    %v4188 = vunpack.c.l.b16 %v3989
    %v4189 = vunpack.c.h.b16 %v3989
    %v4190 = vunpack.c.l.b16 %v3990
    %v4191 = vunpack.c.h.b16 %v3990
    %v4192 = vunpack.c.l.b16 %v3991
    %v4193 = vunpack.c.h.b16 %v3991
    %v4194 = vunpack.c.l.b16 %v3992
    %v4195 = vunpack.c.h.b16 %v3992
    %v4196 = vunpack.c.l.b16 %v3993
    %v4197 = vunpack.c.h.b16 %v3993
    %v4198 = vunpack.c.l.b16 %v3994
    %v4199 = vunpack.c.h.b16 %v3994
    %v4200 = vunpack.c.l.b16 %v3995
    %v4201 = vunpack.c.h.b16 %v3995
    %v4202 = vunpack.c.l.b16 %v3996
    %v4203 = vunpack.c.h.b16 %v3996
    %v4204 = vunpack.c.l.b16 %v3997
    %v4205 = vunpack.c.h.b16 %v3997
    %v4206 = vunpack.c.l.b16 %v3998
    %v4207 = vunpack.c.h.b16 %v3998
    %v4208 = vunpack.c.l.b16 %v3999
    %v4209 = vunpack.c.h.b16 %v3999
    %v4210 = vunpack.c.l.b16 %v4000
    %v4211 = vunpack.c.h.b16 %v4000
    %v4212 = vunpack.c.l.b16 %v4001
    %v4213 = vunpack.c.h.b16 %v4001
    %v4214 = vunpack.c.l.b16 %v4002
    %v4215 = vunpack.c.h.b16 %v4002
    %v4216 = vunpack.c.l.b16 %v4003
    %v4217 = vunpack.c.h.b16 %v4003
    %v4218 = vunpack.c.l.b16 %v4004
    %v4219 = vunpack.c.h.b16 %v4004
    %v4220 = vunpack.c.l.b16 %v4005
    %v4221 = vunpack.c.h.b16 %v4005
    %v4222 = vunpack.c.l.b16 %v4006
    %v4223 = vunpack.c.h.b16 %v4006
    %v4224 = vunpack.c.l.b16 %v4007
    %v4225 = vunpack.c.h.b16 %v4007
    %v4226 = vunpack.c.l.b16 %v4008
    %v4227 = vunpack.c.h.b16 %v4008
    %v4228 = vunpack.c.l.b16 %v4009
    %v4229 = vunpack.c.h.b16 %v4009
    %v4230 = vunpack.c.l.b16 %v4010
    %v4231 = vunpack.c.h.b16 %v4010
    %v4232 = vunpack.c.l.b16 %v4011
    %v4233 = vunpack.c.h.b16 %v4011
    %v4234 = vunpack.c.l.b16 %v4012
    %v4235 = vunpack.c.h.b16 %v4012
    %v4236 = vunpack.c.l.b16 %v4013
    %v4237 = vunpack.c.h.b16 %v4013
    %v4238 = vunpack.c.l.b16 %v4014
    %v4239 = vunpack.c.h.b16 %v4014
    %v4240 = vunpack.c.l.b16 %v4015
    %v4241 = vunpack.c.h.b16 %v4015
    %v4242 = vunpack.c.l.b16 %v4016
    %v4243 = vunpack.c.h.b16 %v4016
    %v4244 = vunpack.c.l.b16 %v4017
    %v4245 = vunpack.c.h.b16 %v4017
    %v4246 = vunpack.c.l.b16 %v4018
    %v4247 = vunpack.c.h.b16 %v4018
    %v4248 = vunpack.c.l.b16 %v4019
    %v4249 = vunpack.c.h.b16 %v4019
    %v4250 = vpack.c.b16 %v4126, %v4122
    %v4251 = vpack.c.b16 %v4127, %v4123
    %v4252 = vpack.c.b16 %v4128, %v4124
    %v4253 = vpack.c.b16 %v4129, %v4125
    %v4254 = vpack.c.b16 %v4134, %v4130
    %v4255 = vpack.c.b16 %v4135, %v4131
    %v4256 = vpack.c.b16 %v4136, %v4132
    %v4257 = vpack.c.b16 %v4137, %v4133
    %v4258 = vpack.c.b16 %v4142, %v4138
    %v4259 = vpack.c.b16 %v4143, %v4139
    %v4260 = vpack.c.b16 %v4144, %v4140
    %v4261 = vpack.c.b16 %v4145, %v4141
    %v4262 = vpack.c.b16 %v4150, %v4146
    %v4263 = vpack.c.b16 %v4151, %v4147
    %v4264 = vpack.c.b16 %v4152, %v4148
    %v4265 = vpack.c.b16 %v4153, %v4149
    %v4266 = vpack.c.b16 %v4158, %v4154
    %v4267 = vpack.c.b16 %v4159, %v4155
    %v4268 = vpack.c.b16 %v4160, %v4156
    %v4269 = vpack.c.b16 %v4161, %v4157
    %v4270 = vpack.c.b16 %v4166, %v4162
    %v4271 = vpack.c.b16 %v4167, %v4163
    %v4272 = vpack.c.b16 %v4168, %v4164
    %v4273 = vpack.c.b16 %v4169, %v4165
    %v4274 = vpack.c.b16 %v4174, %v4170
    %v4275 = vpack.c.b16 %v4175, %v4171
    %v4276 = vpack.c.b16 %v4176, %v4172
    %v4277 = vpack.c.b16 %v4177, %v4173
    %v4278 = vpack.c.b16 %v4182, %v4178
    %v4279 = vpack.c.b16 %v4183, %v4179
    %v4280 = vpack.c.b16 %v4184, %v4180
    %v4281 = vpack.c.b16 %v4185, %v4181
    %v4282 = vpack.c.b16 %v4190, %v4186
    %v4283 = vpack.c.b16 %v4191, %v4187
    %v4284 = vpack.c.b16 %v4192, %v4188
    %v4285 = vpack.c.b16 %v4193, %v4189
    %v4286 = vpack.c.b16 %v4198, %v4194
    %v4287 = vpack.c.b16 %v4199, %v4195
    %v4288 = vpack.c.b16 %v4200, %v4196
    %v4289 = vpack.c.b16 %v4201, %v4197
    %v4290 = vpack.c.b16 %v4206, %v4202
    %v4291 = vpack.c.b16 %v4207, %v4203
    %v4292 = vpack.c.b16 %v4208, %v4204
    %v4293 = vpack.c.b16 %v4209, %v4205
    %v4294 = vpack.c.b16 %v4214, %v4210
    %v4295 = vpack.c.b16 %v4215, %v4211
    %v4296 = vpack.c.b16 %v4216, %v4212
    %v4297 = vpack.c.b16 %v4217, %v4213
    %v4298 = vpack.c.b16 %v4222, %v4218
    %v4299 = vpack.c.b16 %v4223, %v4219
    %v4300 = vpack.c.b16 %v4224, %v4220
    %v4301 = vpack.c.b16 %v4225, %v4221
    %v4302 = vpack.c.b16 %v4230, %v4226
    %v4303 = vpack.c.b16 %v4231, %v4227
    %v4304 = vpack.c.b16 %v4232, %v4228
    %v4305 = vpack.c.b16 %v4233, %v4229
    %v4306 = vpack.c.b16 %v4238, %v4234
    %v4307 = vpack.c.b16 %v4239, %v4235
    %v4308 = vpack.c.b16 %v4240, %v4236
    %v4309 = vpack.c.b16 %v4241, %v4237
    %v4310 = vpack.c.b16 %v4246, %v4242
    %v4311 = vpack.c.b16 %v4247, %v4243
    %v4312 = vpack.c.b16 %v4248, %v4244
    %v4313 = vpack.c.b16 %v4249, %v4245
    %4378 = vmatprep.subr.bf16.mxu0 %v4251
    %4379 = vmatpush1.bf16.msra.mxu0 %v4250
    %4380 = vmatprep.subr.bf16.mxu0 %v4255
    %4381 = vmatpush1.bf16.msra.mxu0 %v4254
    %4382 = vmatprep.subr.bf16.mxu0 %v4259
    %4383 = vmatpush1.bf16.msra.mxu0 %v4258
    %4384 = vmatprep.subr.bf16.mxu0 %v4263
    %4385 = vmatpush1.bf16.msra.mxu0 %v4262
    %4386 = vmatprep.subr.bf16.mxu0 %v4267
    %4387 = vmatpush1.bf16.msra.mxu0 %v4266
    %4388 = vmatprep.subr.bf16.mxu0 %v4271
    %4389 = vmatpush1.bf16.msra.mxu0 %v4270
    %4390 = vmatprep.subr.bf16.mxu0 %v4275
    %4391 = vmatpush1.bf16.msra.mxu0 %v4274
    %4392 = vmatprep.subr.bf16.mxu0 %v4279
    %4393 = vmatpush1.bf16.msra.mxu0 %v4278
    %4394 = vmatprep.subr.bf16.mxu0 %v4283
    %4395 = vmatpush1.bf16.msra.mxu0 %v4282
    %4396 = vmatprep.subr.bf16.mxu0 %v4287
    %4397 = vmatpush1.bf16.msra.mxu0 %v4286
    %4398 = vmatprep.subr.bf16.mxu0 %v4291
    %4399 = vmatpush1.bf16.msra.mxu0 %v4290
    %4400 = vmatprep.subr.bf16.mxu0 %v4295
    %4401 = vmatpush1.bf16.msra.mxu0 %v4294
    %4402 = vmatprep.subr.bf16.mxu0 %v4299
    %4403 = vmatpush1.bf16.msra.mxu0 %v4298
    %4404 = vmatprep.subr.bf16.mxu0 %v4303
    %4405 = vmatpush1.bf16.msra.mxu0 %v4302
    %4406 = vmatprep.subr.bf16.mxu0 %v4307
    %4407 = vmatpush1.bf16.msra.mxu0 %v4306
    %4408 = vmatprep.subr.bf16.mxu0 %v4311
    %4409 = vmatpush1.bf16.msra.mxu0 %v4310
    %4410 = vmatprep.mubr.bf16.mxu0 %v4021
    %4411 = vmatmul.mubr.bf16.gmra.mrb[0].mxu0 %v4020
    %v4412 = vpop.f32.mrb[0].mxu0
    %v4413 = vadd.f32 %v4045, %v4412
    %v4414 = vpop.f32.mrb[0].mxu0
    %v4415 = vadd.f32 %v4049, %v4414
    %v4416 = vpop.f32.mrb[0].mxu0
    %v4417 = vpop.f32.mrb[0].mxu0
    %4418 = vdwg.mxu0
    %4419 = vmatprep.subr.bf16.mxu0 %v4253
    %4420 = vmatpush1.bf16.msra.mxu0 %v4252
    %4421 = vmatprep.subr.bf16.mxu0 %v4257
    %4422 = vmatpush1.bf16.msra.mxu0 %v4256
    %4423 = vmatprep.subr.bf16.mxu0 %v4261
    %4424 = vmatpush1.bf16.msra.mxu0 %v4260
    %4425 = vmatprep.subr.bf16.mxu0 %v4265
    %4426 = vmatpush1.bf16.msra.mxu0 %v4264
    %4427 = vmatprep.subr.bf16.mxu0 %v4269
    %4428 = vmatpush1.bf16.msra.mxu0 %v4268
    %4429 = vmatprep.subr.bf16.mxu0 %v4273
    %4430 = vmatpush1.bf16.msra.mxu0 %v4272
    %4431 = vmatprep.subr.bf16.mxu0 %v4277
    %4432 = vmatpush1.bf16.msra.mxu0 %v4276
    %4433 = vmatprep.subr.bf16.mxu0 %v4281
    %4434 = vmatpush1.bf16.msra.mxu0 %v4280
    %4435 = vmatprep.subr.bf16.mxu0 %v4285
    %4436 = vmatpush1.bf16.msra.mxu0 %v4284
    %4437 = vmatprep.subr.bf16.mxu0 %v4289
    %4438 = vmatpush1.bf16.msra.mxu0 %v4288
    %4439 = vmatprep.subr.bf16.mxu0 %v4293
    %4440 = vmatpush1.bf16.msra.mxu0 %v4292
    %4441 = vmatprep.subr.bf16.mxu0 %v4297
    %4442 = vmatpush1.bf16.msra.mxu0 %v4296
    %4443 = vmatprep.subr.bf16.mxu0 %v4301
    %4444 = vmatpush1.bf16.msra.mxu0 %v4300
    %4445 = vmatprep.subr.bf16.mxu0 %v4305
    %4446 = vmatpush1.bf16.msra.mxu0 %v4304
    %4447 = vmatprep.subr.bf16.mxu0 %v4309
    %4448 = vmatpush1.bf16.msra.mxu0 %v4308
    %4449 = vmatprep.subr.bf16.mxu0 %v4313
    %4450 = vmatpush1.bf16.msra.mxu0 %v4312
    %4451 = vmatprep.mubr.bf16.mxu0 %v4021
    %4452 = vmatmul.mubr.bf16.gmra.mrb[0].mxu0 %v4020
    %v4453 = vpop.f32.mrb[0].mxu0
    %v4454 = vadd.f32 %v4053, %v4453
    %v4455 = vpop.f32.mrb[0].mxu0
    %v4456 = vadd.f32 %v4057, %v4455
    %v4457 = vpop.f32.mrb[0].mxu0
    %v4458 = vpop.f32.mrb[0].mxu0
    %4459 = vdwg.mxu0
    %v4460 = vmax.f32 %v4413, 0.0
    %v4461 = vmax.f32 %v4415, 0.0
    %v4462 = vmax.f32 %v4454, 0.0
    %v4463 = vmax.f32 %v4456, 0.0
    %v4464 = vld [vmem:[#allocation8 + $0x400] sm:$0xff]
    %v4465 = vld [vmem:[#allocation8 + $0x408] sm:$0xff]
    %v4466 = vld [vmem:[#allocation8 + $0x410] sm:$0xff]
    %v4467 = vld [vmem:[#allocation8 + $0x418] sm:$0xff]
    %v4468 = vld [vmem:[#allocation8 + $0x420] sm:$0xff]
    %v4469 = vld [vmem:[#allocation8 + $0x428] sm:$0xff]
    %v4470 = vld [vmem:[#allocation8 + $0x430] sm:$0xff]
    %v4471 = vld [vmem:[#allocation8 + $0x438] sm:$0xff]
    %v4472 = vld [vmem:[#allocation8 + $0x440] sm:$0xff]
    %v4473 = vld [vmem:[#allocation8 + $0x448] sm:$0xff]
    %v4474 = vld [vmem:[#allocation8 + $0x450] sm:$0xff]
    %v4475 = vld [vmem:[#allocation8 + $0x458] sm:$0xff]
    %v4476 = vld [vmem:[#allocation8 + $0x460] sm:$0xff]
    %v4477 = vld [vmem:[#allocation8 + $0x468] sm:$0xff]
    %v4478 = vld [vmem:[#allocation8 + $0x470] sm:$0xff]
    %v4479 = vld [vmem:[#allocation8 + $0x478] sm:$0xff]
    %v4480 = vld [vmem:[#allocation8 + $0x480] sm:$0xff]
    %v4481 = vld [vmem:[#allocation8 + $0x488] sm:$0xff]
    %v4482 = vld [vmem:[#allocation8 + $0x490] sm:$0xff]
    %v4483 = vld [vmem:[#allocation8 + $0x498] sm:$0xff]
    %v4484 = vld [vmem:[#allocation8 + $0x4a0] sm:$0xff]
    %v4485 = vld [vmem:[#allocation8 + $0x4a8] sm:$0xff]
    %v4486 = vld [vmem:[#allocation8 + $0x4b0] sm:$0xff]
    %v4487 = vld [vmem:[#allocation8 + $0x4b8] sm:$0xff]
    %v4488 = vld [vmem:[#allocation8 + $0x4c0] sm:$0xff]
    %v4489 = vld [vmem:[#allocation8 + $0x4c8] sm:$0xff]
    %v4490 = vld [vmem:[#allocation8 + $0x4d0] sm:$0xff]
    %v4491 = vld [vmem:[#allocation8 + $0x4d8] sm:$0xff]
    %v4492 = vld [vmem:[#allocation8 + $0x4e0] sm:$0xff]
    %v4493 = vld [vmem:[#allocation8 + $0x4e8] sm:$0xff]
    %v4494 = vld [vmem:[#allocation8 + $0x4f0] sm:$0xff]
    %v4495 = vld [vmem:[#allocation8 + $0x4f8] sm:$0xff]
    %v4496 = vld [vmem:[#allocation8 + $0x500] sm:$0xff]
    %v4497 = vld [vmem:[#allocation8 + $0x508] sm:$0xff]
    %v4498 = vld [vmem:[#allocation8 + $0x510] sm:$0xff]
    %v4499 = vld [vmem:[#allocation8 + $0x518] sm:$0xff]
    %v4500 = vld [vmem:[#allocation8 + $0x520] sm:$0xff]
    %v4501 = vld [vmem:[#allocation8 + $0x528] sm:$0xff]
    %v4502 = vld [vmem:[#allocation8 + $0x530] sm:$0xff]
    %v4503 = vld [vmem:[#allocation8 + $0x538] sm:$0xff]
    %v4504 = vld [vmem:[#allocation8 + $0x540] sm:$0xff]
    %v4505 = vld [vmem:[#allocation8 + $0x548] sm:$0xff]
    %v4506 = vld [vmem:[#allocation8 + $0x550] sm:$0xff]
    %v4507 = vld [vmem:[#allocation8 + $0x558] sm:$0xff]
    %v4508 = vld [vmem:[#allocation8 + $0x560] sm:$0xff]
    %v4509 = vld [vmem:[#allocation8 + $0x568] sm:$0xff]
    %v4510 = vld [vmem:[#allocation8 + $0x570] sm:$0xff]
    %v4511 = vld [vmem:[#allocation8 + $0x578] sm:$0xff]
    %v4512 = vld [vmem:[#allocation8 + $0x580] sm:$0xff]
    %v4513 = vld [vmem:[#allocation8 + $0x588] sm:$0xff]
    %v4514 = vld [vmem:[#allocation8 + $0x590] sm:$0xff]
    %v4515 = vld [vmem:[#allocation8 + $0x598] sm:$0xff]
    %v4516 = vld [vmem:[#allocation8 + $0x5a0] sm:$0xff]
    %v4517 = vld [vmem:[#allocation8 + $0x5a8] sm:$0xff]
    %v4518 = vld [vmem:[#allocation8 + $0x5b0] sm:$0xff]
    %v4519 = vld [vmem:[#allocation8 + $0x5b8] sm:$0xff]
    %v4520 = vld [vmem:[#allocation8 + $0x5c0] sm:$0xff]
    %v4521 = vld [vmem:[#allocation8 + $0x5c8] sm:$0xff]
    %v4522 = vld [vmem:[#allocation8 + $0x5d0] sm:$0xff]
    %v4523 = vld [vmem:[#allocation8 + $0x5d8] sm:$0xff]
    %v4524 = vld [vmem:[#allocation8 + $0x5e0] sm:$0xff]
    %v4525 = vld [vmem:[#allocation8 + $0x5e8] sm:$0xff]
    %v4526 = vld [vmem:[#allocation8 + $0x5f0] sm:$0xff]
    %v4527 = vld [vmem:[#allocation8 + $0x5f8] sm:$0xff]
    %v4528 = vpack.c.bf16 %v4460, %v4460
    %v4529 = vpack.c.bf16 %v4461, %v4461
    %v4530 = vpack.c.bf16 %v4462, %v4462
    %v4531 = vpack.c.bf16 %v4463, %v4463
    %v4532 = vlaneseq
    %v4533 = vshrl.u32 %v4532, 7
    %v4534 = vsub.s32 4, %v4533
    %v4535 = vrot.slane %v129, %v4534
    %v4536 = vlaneseq
    %v4537 = vshrl.u32 %v4536, 7
    %v4538 = vsub.s32 4, %v4537
    %v4539 = vrot.slane %v130, %v4538
    %v4604 = vunpack.c.l.b16 %v4464
    %v4605 = vunpack.c.h.b16 %v4464
    %v4606 = vunpack.c.l.b16 %v4465
    %v4607 = vunpack.c.h.b16 %v4465
    %v4608 = vunpack.c.l.b16 %v4466
    %v4609 = vunpack.c.h.b16 %v4466
    %v4610 = vunpack.c.l.b16 %v4467
    %v4611 = vunpack.c.h.b16 %v4467
    %v4612 = vunpack.c.l.b16 %v4468
    %v4613 = vunpack.c.h.b16 %v4468
    %v4614 = vunpack.c.l.b16 %v4469
    %v4615 = vunpack.c.h.b16 %v4469
    %v4616 = vunpack.c.l.b16 %v4470
    %v4617 = vunpack.c.h.b16 %v4470
    %v4618 = vunpack.c.l.b16 %v4471
    %v4619 = vunpack.c.h.b16 %v4471
    %v4620 = vunpack.c.l.b16 %v4472
    %v4621 = vunpack.c.h.b16 %v4472
    %v4622 = vunpack.c.l.b16 %v4473
    %v4623 = vunpack.c.h.b16 %v4473
    %v4624 = vunpack.c.l.b16 %v4474
    %v4625 = vunpack.c.h.b16 %v4474
    %v4626 = vunpack.c.l.b16 %v4475
    %v4627 = vunpack.c.h.b16 %v4475
    %v4628 = vunpack.c.l.b16 %v4476
    %v4629 = vunpack.c.h.b16 %v4476
    %v4630 = vunpack.c.l.b16 %v4477
    %v4631 = vunpack.c.h.b16 %v4477
    %v4632 = vunpack.c.l.b16 %v4478
    %v4633 = vunpack.c.h.b16 %v4478
    %v4634 = vunpack.c.l.b16 %v4479
    %v4635 = vunpack.c.h.b16 %v4479
    %v4636 = vunpack.c.l.b16 %v4480
    %v4637 = vunpack.c.h.b16 %v4480
    %v4638 = vunpack.c.l.b16 %v4481
    %v4639 = vunpack.c.h.b16 %v4481
    %v4640 = vunpack.c.l.b16 %v4482
    %v4641 = vunpack.c.h.b16 %v4482
    %v4642 = vunpack.c.l.b16 %v4483
    %v4643 = vunpack.c.h.b16 %v4483
    %v4644 = vunpack.c.l.b16 %v4484
    %v4645 = vunpack.c.h.b16 %v4484
    %v4646 = vunpack.c.l.b16 %v4485
    %v4647 = vunpack.c.h.b16 %v4485
    %v4648 = vunpack.c.l.b16 %v4486
    %v4649 = vunpack.c.h.b16 %v4486
    %v4650 = vunpack.c.l.b16 %v4487
    %v4651 = vunpack.c.h.b16 %v4487
    %v4652 = vunpack.c.l.b16 %v4488
    %v4653 = vunpack.c.h.b16 %v4488
    %v4654 = vunpack.c.l.b16 %v4489
    %v4655 = vunpack.c.h.b16 %v4489
    %v4656 = vunpack.c.l.b16 %v4490
    %v4657 = vunpack.c.h.b16 %v4490
    %v4658 = vunpack.c.l.b16 %v4491
    %v4659 = vunpack.c.h.b16 %v4491
    %v4660 = vunpack.c.l.b16 %v4492
    %v4661 = vunpack.c.h.b16 %v4492
    %v4662 = vunpack.c.l.b16 %v4493
    %v4663 = vunpack.c.h.b16 %v4493
    %v4664 = vunpack.c.l.b16 %v4494
    %v4665 = vunpack.c.h.b16 %v4494
    %v4666 = vunpack.c.l.b16 %v4495
    %v4667 = vunpack.c.h.b16 %v4495
    %v4668 = vunpack.c.l.b16 %v4496
    %v4669 = vunpack.c.h.b16 %v4496
    %v4670 = vunpack.c.l.b16 %v4497
    %v4671 = vunpack.c.h.b16 %v4497
    %v4672 = vunpack.c.l.b16 %v4498
    %v4673 = vunpack.c.h.b16 %v4498
    %v4674 = vunpack.c.l.b16 %v4499
    %v4675 = vunpack.c.h.b16 %v4499
    %v4676 = vunpack.c.l.b16 %v4500
    %v4677 = vunpack.c.h.b16 %v4500
    %v4678 = vunpack.c.l.b16 %v4501
    %v4679 = vunpack.c.h.b16 %v4501
    %v4680 = vunpack.c.l.b16 %v4502
    %v4681 = vunpack.c.h.b16 %v4502
    %v4682 = vunpack.c.l.b16 %v4503
    %v4683 = vunpack.c.h.b16 %v4503
    %v4684 = vunpack.c.l.b16 %v4504
    %v4685 = vunpack.c.h.b16 %v4504
    %v4686 = vunpack.c.l.b16 %v4505
    %v4687 = vunpack.c.h.b16 %v4505
    %v4688 = vunpack.c.l.b16 %v4506
    %v4689 = vunpack.c.h.b16 %v4506
    %v4690 = vunpack.c.l.b16 %v4507
    %v4691 = vunpack.c.h.b16 %v4507
    %v4692 = vunpack.c.l.b16 %v4508
    %v4693 = vunpack.c.h.b16 %v4508
    %v4694 = vunpack.c.l.b16 %v4509
    %v4695 = vunpack.c.h.b16 %v4509
    %v4696 = vunpack.c.l.b16 %v4510
    %v4697 = vunpack.c.h.b16 %v4510
    %v4698 = vunpack.c.l.b16 %v4511
    %v4699 = vunpack.c.h.b16 %v4511
    %v4700 = vunpack.c.l.b16 %v4512
    %v4701 = vunpack.c.h.b16 %v4512
    %v4702 = vunpack.c.l.b16 %v4513
    %v4703 = vunpack.c.h.b16 %v4513
    %v4704 = vunpack.c.l.b16 %v4514
    %v4705 = vunpack.c.h.b16 %v4514
    %v4706 = vunpack.c.l.b16 %v4515
    %v4707 = vunpack.c.h.b16 %v4515
    %v4708 = vunpack.c.l.b16 %v4516
    %v4709 = vunpack.c.h.b16 %v4516
    %v4710 = vunpack.c.l.b16 %v4517
    %v4711 = vunpack.c.h.b16 %v4517
    %v4712 = vunpack.c.l.b16 %v4518
    %v4713 = vunpack.c.h.b16 %v4518
    %v4714 = vunpack.c.l.b16 %v4519
    %v4715 = vunpack.c.h.b16 %v4519
    %v4716 = vunpack.c.l.b16 %v4520
    %v4717 = vunpack.c.h.b16 %v4520
    %v4718 = vunpack.c.l.b16 %v4521
    %v4719 = vunpack.c.h.b16 %v4521
    %v4720 = vunpack.c.l.b16 %v4522
    %v4721 = vunpack.c.h.b16 %v4522
    %v4722 = vunpack.c.l.b16 %v4523
    %v4723 = vunpack.c.h.b16 %v4523
    %v4724 = vunpack.c.l.b16 %v4524
    %v4725 = vunpack.c.h.b16 %v4524
    %v4726 = vunpack.c.l.b16 %v4525
    %v4727 = vunpack.c.h.b16 %v4525
    %v4728 = vunpack.c.l.b16 %v4526
    %v4729 = vunpack.c.h.b16 %v4526
    %v4730 = vunpack.c.l.b16 %v4527
    %v4731 = vunpack.c.h.b16 %v4527
    %v4732 = vpack.c.b16 %v4606, %v4604
    %v4733 = vpack.c.b16 %v4607, %v4605
    %v4734 = vpack.c.b16 %v4610, %v4608
    %v4735 = vpack.c.b16 %v4611, %v4609
    %v4736 = vpack.c.b16 %v4614, %v4612
    %v4737 = vpack.c.b16 %v4615, %v4613
    %v4738 = vpack.c.b16 %v4618, %v4616
    %v4739 = vpack.c.b16 %v4619, %v4617
    %v4740 = vpack.c.b16 %v4622, %v4620
    %v4741 = vpack.c.b16 %v4623, %v4621
    %v4742 = vpack.c.b16 %v4626, %v4624
    %v4743 = vpack.c.b16 %v4627, %v4625
    %v4744 = vpack.c.b16 %v4630, %v4628
    %v4745 = vpack.c.b16 %v4631, %v4629
    %v4746 = vpack.c.b16 %v4634, %v4632
    %v4747 = vpack.c.b16 %v4635, %v4633
    %v4748 = vpack.c.b16 %v4638, %v4636
    %v4749 = vpack.c.b16 %v4639, %v4637
    %v4750 = vpack.c.b16 %v4642, %v4640
    %v4751 = vpack.c.b16 %v4643, %v4641
    %v4752 = vpack.c.b16 %v4646, %v4644
    %v4753 = vpack.c.b16 %v4647, %v4645
    %v4754 = vpack.c.b16 %v4650, %v4648
    %v4755 = vpack.c.b16 %v4651, %v4649
    %v4756 = vpack.c.b16 %v4654, %v4652
    %v4757 = vpack.c.b16 %v4655, %v4653
    %v4758 = vpack.c.b16 %v4658, %v4656
    %v4759 = vpack.c.b16 %v4659, %v4657
    %v4760 = vpack.c.b16 %v4662, %v4660
    %v4761 = vpack.c.b16 %v4663, %v4661
    %v4762 = vpack.c.b16 %v4666, %v4664
    %v4763 = vpack.c.b16 %v4667, %v4665
    %v4764 = vpack.c.b16 %v4670, %v4668
    %v4765 = vpack.c.b16 %v4671, %v4669
    %v4766 = vpack.c.b16 %v4674, %v4672
    %v4767 = vpack.c.b16 %v4675, %v4673
    %v4768 = vpack.c.b16 %v4678, %v4676
    %v4769 = vpack.c.b16 %v4679, %v4677
    %v4770 = vpack.c.b16 %v4682, %v4680
    %v4771 = vpack.c.b16 %v4683, %v4681
    %v4772 = vpack.c.b16 %v4686, %v4684
    %v4773 = vpack.c.b16 %v4687, %v4685
    %v4774 = vpack.c.b16 %v4690, %v4688
    %v4775 = vpack.c.b16 %v4691, %v4689
    %v4776 = vpack.c.b16 %v4694, %v4692
    %v4777 = vpack.c.b16 %v4695, %v4693
    %v4778 = vpack.c.b16 %v4698, %v4696
    %v4779 = vpack.c.b16 %v4699, %v4697
    %v4780 = vpack.c.b16 %v4702, %v4700
    %v4781 = vpack.c.b16 %v4703, %v4701
    %v4782 = vpack.c.b16 %v4706, %v4704
    %v4783 = vpack.c.b16 %v4707, %v4705
    %v4784 = vpack.c.b16 %v4710, %v4708
    %v4785 = vpack.c.b16 %v4711, %v4709
    %v4786 = vpack.c.b16 %v4714, %v4712
    %v4787 = vpack.c.b16 %v4715, %v4713
    %v4788 = vpack.c.b16 %v4718, %v4716
    %v4789 = vpack.c.b16 %v4719, %v4717
    %v4790 = vpack.c.b16 %v4722, %v4720
    %v4791 = vpack.c.b16 %v4723, %v4721
    %v4792 = vpack.c.b16 %v4726, %v4724
    %v4793 = vpack.c.b16 %v4727, %v4725
    %v4794 = vpack.c.b16 %v4730, %v4728
    %v4795 = vpack.c.b16 %v4731, %v4729
    %4860 = vmatprep.subr.bf16.mxu0 %v4733
    %4861 = vmatpush1.bf16.msra.mxu0 %v4732
    %4862 = vmatprep.subr.bf16.mxu0 %v4735
    %4863 = vmatpush1.bf16.msra.mxu0 %v4734
    %4864 = vmatprep.subr.bf16.mxu0 %v4737
    %4865 = vmatpush1.bf16.msra.mxu0 %v4736
    %4866 = vmatprep.subr.bf16.mxu0 %v4739
    %4867 = vmatpush1.bf16.msra.mxu0 %v4738
    %4868 = vmatprep.subr.bf16.mxu0 %v4741
    %4869 = vmatpush1.bf16.msra.mxu0 %v4740
    %4870 = vmatprep.subr.bf16.mxu0 %v4743
    %4871 = vmatpush1.bf16.msra.mxu0 %v4742
    %4872 = vmatprep.subr.bf16.mxu0 %v4745
    %4873 = vmatpush1.bf16.msra.mxu0 %v4744
    %4874 = vmatprep.subr.bf16.mxu0 %v4747
    %4875 = vmatpush1.bf16.msra.mxu0 %v4746
    %4876 = vmatprep.subr.bf16.mxu0 %v4749
    %4877 = vmatpush1.bf16.msra.mxu0 %v4748
    %4878 = vmatprep.subr.bf16.mxu0 %v4751
    %4879 = vmatpush1.bf16.msra.mxu0 %v4750
    %4880 = vmatprep.subr.bf16.mxu0 %v4753
    %4881 = vmatpush1.bf16.msra.mxu0 %v4752
    %4882 = vmatprep.subr.bf16.mxu0 %v4755
    %4883 = vmatpush1.bf16.msra.mxu0 %v4754
    %4884 = vmatprep.subr.bf16.mxu0 %v4757
    %4885 = vmatpush1.bf16.msra.mxu0 %v4756
    %4886 = vmatprep.subr.bf16.mxu0 %v4759
    %4887 = vmatpush1.bf16.msra.mxu0 %v4758
    %4888 = vmatprep.subr.bf16.mxu0 %v4761
    %4889 = vmatpush1.bf16.msra.mxu0 %v4760
    %4890 = vmatprep.subr.bf16.mxu0 %v4763
    %4891 = vmatpush1.bf16.msra.mxu0 %v4762
    %4892 = vmatprep.mubr.bf16.mxu0 %v4529
    %4893 = vmatmul.mubr.bf16.gmra.mrb[0].mxu0 %v4528
    %v4894 = vpop.f32.mrb[0].mxu0
    %v4895 = vadd.f32 %v4535, %v4894
    %v4896 = vpop.f32.mrb[0].mxu0
    %v4897 = vadd.f32 %v4539, %v4896
    %v4898 = vpop.f32.mrb[0].mxu0
    %v4899 = vpop.f32.mrb[0].mxu0
    %4900 = vdwg.mxu0
    %4901 = vmatprep.subr.bf16.mxu0 %v4765
    %4902 = vmatpush1.bf16.msra.mxu0 %v4764
    %4903 = vmatprep.subr.bf16.mxu0 %v4767
    %4904 = vmatpush1.bf16.msra.mxu0 %v4766
    %4905 = vmatprep.subr.bf16.mxu0 %v4769
    %4906 = vmatpush1.bf16.msra.mxu0 %v4768
    %4907 = vmatprep.subr.bf16.mxu0 %v4771
    %4908 = vmatpush1.bf16.msra.mxu0 %v4770
    %4909 = vmatprep.subr.bf16.mxu0 %v4773
    %4910 = vmatpush1.bf16.msra.mxu0 %v4772
    %4911 = vmatprep.subr.bf16.mxu0 %v4775
    %4912 = vmatpush1.bf16.msra.mxu0 %v4774
    %4913 = vmatprep.subr.bf16.mxu0 %v4777
    %4914 = vmatpush1.bf16.msra.mxu0 %v4776
    %4915 = vmatprep.subr.bf16.mxu0 %v4779
    %4916 = vmatpush1.bf16.msra.mxu0 %v4778
    %4917 = vmatprep.subr.bf16.mxu0 %v4781
    %4918 = vmatpush1.bf16.msra.mxu0 %v4780
    %4919 = vmatprep.subr.bf16.mxu0 %v4783
    %4920 = vmatpush1.bf16.msra.mxu0 %v4782
    %4921 = vmatprep.subr.bf16.mxu0 %v4785
    %4922 = vmatpush1.bf16.msra.mxu0 %v4784
    %4923 = vmatprep.subr.bf16.mxu0 %v4787
    %4924 = vmatpush1.bf16.msra.mxu0 %v4786
    %4925 = vmatprep.subr.bf16.mxu0 %v4789
    %4926 = vmatpush1.bf16.msra.mxu0 %v4788
    %4927 = vmatprep.subr.bf16.mxu0 %v4791
    %4928 = vmatpush1.bf16.msra.mxu0 %v4790
    %4929 = vmatprep.subr.bf16.mxu0 %v4793
    %4930 = vmatpush1.bf16.msra.mxu0 %v4792
    %4931 = vmatprep.subr.bf16.mxu0 %v4795
    %4932 = vmatpush1.bf16.msra.mxu0 %v4794
    %4933 = vmatprep.mubr.bf16.mxu0 %v4531
    %4934 = vmatmul.mubr.bf16.gmra.mrb[0].mxu0 %v4530
    %v4935 = vpop.f32.mrb[0].mxu0
    %v4936 = vadd.f32 %v4895, %v4935
    %v4937 = vpop.f32.mrb[0].mxu0
    %v4938 = vadd.f32 %v4897, %v4937
    %v4939 = vpop.f32.mrb[0].mxu0
    %v4940 = vpop.f32.mrb[0].mxu0
    %4941 = vdwg.mxu0
    %v4942 = vadd.f32 %v4936, %v3954
    %v4943 = vadd.f32 %v4938, %v3955
    %v4944 = vmax.f32 %v4942, 0.0
    %v4945 = vmax.f32 %v4943, 0.0
    %v4946 = vld [vmem:[#allocation8 + $0x600] sm:$0xff]
    %v4947 = vld [vmem:[#allocation8 + $0x608] sm:$0xff]
    %v4948 = vld [vmem:[#allocation8 + $0x610] sm:$0xff]
    %v4949 = vld [vmem:[#allocation8 + $0x618] sm:$0xff]
    %v4950 = vld [vmem:[#allocation8 + $0x620] sm:$0xff]
    %v4951 = vld [vmem:[#allocation8 + $0x628] sm:$0xff]
    %v4952 = vld [vmem:[#allocation8 + $0x630] sm:$0xff]
    %v4953 = vld [vmem:[#allocation8 + $0x638] sm:$0xff]
    %v4954 = vld [vmem:[#allocation8 + $0x640] sm:$0xff]
    %v4955 = vld [vmem:[#allocation8 + $0x648] sm:$0xff]
    %v4956 = vld [vmem:[#allocation8 + $0x650] sm:$0xff]
    %v4957 = vld [vmem:[#allocation8 + $0x658] sm:$0xff]
    %v4958 = vld [vmem:[#allocation8 + $0x660] sm:$0xff]
    %v4959 = vld [vmem:[#allocation8 + $0x668] sm:$0xff]
    %v4960 = vld [vmem:[#allocation8 + $0x670] sm:$0xff]
    %v4961 = vld [vmem:[#allocation8 + $0x678] sm:$0xff]
    %v4962 = vld [vmem:[#allocation8 + $0x680] sm:$0xff]
    %v4963 = vld [vmem:[#allocation8 + $0x688] sm:$0xff]
    %v4964 = vld [vmem:[#allocation8 + $0x690] sm:$0xff]
    %v4965 = vld [vmem:[#allocation8 + $0x698] sm:$0xff]
    %v4966 = vld [vmem:[#allocation8 + $0x6a0] sm:$0xff]
    %v4967 = vld [vmem:[#allocation8 + $0x6a8] sm:$0xff]
    %v4968 = vld [vmem:[#allocation8 + $0x6b0] sm:$0xff]
    %v4969 = vld [vmem:[#allocation8 + $0x6b8] sm:$0xff]
    %v4970 = vld [vmem:[#allocation8 + $0x6c0] sm:$0xff]
    %v4971 = vld [vmem:[#allocation8 + $0x6c8] sm:$0xff]
    %v4972 = vld [vmem:[#allocation8 + $0x6d0] sm:$0xff]
    %v4973 = vld [vmem:[#allocation8 + $0x6d8] sm:$0xff]
    %v4974 = vld [vmem:[#allocation8 + $0x6e0] sm:$0xff]
    %v4975 = vld [vmem:[#allocation8 + $0x6e8] sm:$0xff]
    %v4976 = vld [vmem:[#allocation8 + $0x6f0] sm:$0xff]
    %v4977 = vld [vmem:[#allocation8 + $0x6f8] sm:$0xff]
    %v4978 = vpack.c.bf16 %v4944, %v4944
    %v4979 = vpack.c.bf16 %v4945, %v4945
    %v4980 = vlaneseq
    %v4981 = vshrl.u32 %v4980, 7
    %v4982 = vsub.s32 5, %v4981
    %v4983 = vrot.slane %v129, %v4982
    %v4984 = vlaneseq
    %v4985 = vshrl.u32 %v4984, 7
    %v4986 = vsub.s32 5, %v4985
    %v4987 = vrot.slane %v130, %v4986
    %v5020 = vunpack.c.l.b16 %v4946
    %v5021 = vunpack.c.h.b16 %v4946
    %v5022 = vunpack.c.l.b16 %v4947
    %v5023 = vunpack.c.h.b16 %v4947
    %v5024 = vunpack.c.l.b16 %v4948
    %v5025 = vunpack.c.h.b16 %v4948
    %v5026 = vunpack.c.l.b16 %v4949
    %v5027 = vunpack.c.h.b16 %v4949
    %v5028 = vunpack.c.l.b16 %v4950
    %v5029 = vunpack.c.h.b16 %v4950
    %v5030 = vunpack.c.l.b16 %v4951
    %v5031 = vunpack.c.h.b16 %v4951
    %v5032 = vunpack.c.l.b16 %v4952
    %v5033 = vunpack.c.h.b16 %v4952
    %v5034 = vunpack.c.l.b16 %v4953
    %v5035 = vunpack.c.h.b16 %v4953
    %v5036 = vunpack.c.l.b16 %v4954
    %v5037 = vunpack.c.h.b16 %v4954
    %v5038 = vunpack.c.l.b16 %v4955
    %v5039 = vunpack.c.h.b16 %v4955
    %v5040 = vunpack.c.l.b16 %v4956
    %v5041 = vunpack.c.h.b16 %v4956
    %v5042 = vunpack.c.l.b16 %v4957
    %v5043 = vunpack.c.h.b16 %v4957
    %v5044 = vunpack.c.l.b16 %v4958
    %v5045 = vunpack.c.h.b16 %v4958
    %v5046 = vunpack.c.l.b16 %v4959
    %v5047 = vunpack.c.h.b16 %v4959
    %v5048 = vunpack.c.l.b16 %v4960
    %v5049 = vunpack.c.h.b16 %v4960
    %v5050 = vunpack.c.l.b16 %v4961
    %v5051 = vunpack.c.h.b16 %v4961
    %v5052 = vunpack.c.l.b16 %v4962
    %v5053 = vunpack.c.h.b16 %v4962
    %v5054 = vunpack.c.l.b16 %v4963
    %v5055 = vunpack.c.h.b16 %v4963
    %v5056 = vunpack.c.l.b16 %v4964
    %v5057 = vunpack.c.h.b16 %v4964
    %v5058 = vunpack.c.l.b16 %v4965
    %v5059 = vunpack.c.h.b16 %v4965
    %v5060 = vunpack.c.l.b16 %v4966
    %v5061 = vunpack.c.h.b16 %v4966
    %v5062 = vunpack.c.l.b16 %v4967
    %v5063 = vunpack.c.h.b16 %v4967
    %v5064 = vunpack.c.l.b16 %v4968
    %v5065 = vunpack.c.h.b16 %v4968
    %v5066 = vunpack.c.l.b16 %v4969
    %v5067 = vunpack.c.h.b16 %v4969
    %v5068 = vunpack.c.l.b16 %v4970
    %v5069 = vunpack.c.h.b16 %v4970
    %v5070 = vunpack.c.l.b16 %v4971
    %v5071 = vunpack.c.h.b16 %v4971
    %v5072 = vunpack.c.l.b16 %v4972
    %v5073 = vunpack.c.h.b16 %v4972
    %v5074 = vunpack.c.l.b16 %v4973
    %v5075 = vunpack.c.h.b16 %v4973
    %v5076 = vunpack.c.l.b16 %v4974
    %v5077 = vunpack.c.h.b16 %v4974
    %v5078 = vunpack.c.l.b16 %v4975
    %v5079 = vunpack.c.h.b16 %v4975
    %v5080 = vunpack.c.l.b16 %v4976
    %v5081 = vunpack.c.h.b16 %v4976
    %v5082 = vunpack.c.l.b16 %v4977
    %v5083 = vunpack.c.h.b16 %v4977
    %v5084 = vpack.c.b16 %v5022, %v5020
    %v5085 = vpack.c.b16 %v5023, %v5021
    %v5086 = vpack.c.b16 %v5026, %v5024
    %v5087 = vpack.c.b16 %v5027, %v5025
    %v5088 = vpack.c.b16 %v5030, %v5028
    %v5089 = vpack.c.b16 %v5031, %v5029
    %v5090 = vpack.c.b16 %v5034, %v5032
    %v5091 = vpack.c.b16 %v5035, %v5033
    %v5092 = vpack.c.b16 %v5038, %v5036
    %v5093 = vpack.c.b16 %v5039, %v5037
    %v5094 = vpack.c.b16 %v5042, %v5040
    %v5095 = vpack.c.b16 %v5043, %v5041
    %v5096 = vpack.c.b16 %v5046, %v5044
    %v5097 = vpack.c.b16 %v5047, %v5045
    %v5098 = vpack.c.b16 %v5050, %v5048
    %v5099 = vpack.c.b16 %v5051, %v5049
    %v5100 = vpack.c.b16 %v5054, %v5052
    %v5101 = vpack.c.b16 %v5055, %v5053
    %v5102 = vpack.c.b16 %v5058, %v5056
    %v5103 = vpack.c.b16 %v5059, %v5057
    %v5104 = vpack.c.b16 %v5062, %v5060
    %v5105 = vpack.c.b16 %v5063, %v5061
    %v5106 = vpack.c.b16 %v5066, %v5064
    %v5107 = vpack.c.b16 %v5067, %v5065
    %v5108 = vpack.c.b16 %v5070, %v5068
    %v5109 = vpack.c.b16 %v5071, %v5069
    %v5110 = vpack.c.b16 %v5074, %v5072
    %v5111 = vpack.c.b16 %v5075, %v5073
    %v5112 = vpack.c.b16 %v5078, %v5076
    %v5113 = vpack.c.b16 %v5079, %v5077
    %v5114 = vpack.c.b16 %v5082, %v5080
    %v5115 = vpack.c.b16 %v5083, %v5081
    %5148 = vmatprep.subr.bf16.mxu0 %v5085
    %5149 = vmatpush1.bf16.msra.mxu0 %v5084
    %5150 = vmatprep.subr.bf16.mxu0 %v5087
    %5151 = vmatpush1.bf16.msra.mxu0 %v5086
    %5152 = vmatprep.subr.bf16.mxu0 %v5089
    %5153 = vmatpush1.bf16.msra.mxu0 %v5088
    %5154 = vmatprep.subr.bf16.mxu0 %v5091
    %5155 = vmatpush1.bf16.msra.mxu0 %v5090
    %5156 = vmatprep.subr.bf16.mxu0 %v5093
    %5157 = vmatpush1.bf16.msra.mxu0 %v5092
    %5158 = vmatprep.subr.bf16.mxu0 %v5095
    %5159 = vmatpush1.bf16.msra.mxu0 %v5094
    %5160 = vmatprep.subr.bf16.mxu0 %v5097
    %5161 = vmatpush1.bf16.msra.mxu0 %v5096
    %5162 = vmatprep.subr.bf16.mxu0 %v5099
    %5163 = vmatpush1.bf16.msra.mxu0 %v5098
    %5164 = vmatprep.subr.bf16.mxu0 %v5101
    %5165 = vmatpush1.bf16.msra.mxu0 %v5100
    %5166 = vmatprep.subr.bf16.mxu0 %v5103
    %5167 = vmatpush1.bf16.msra.mxu0 %v5102
    %5168 = vmatprep.subr.bf16.mxu0 %v5105
    %5169 = vmatpush1.bf16.msra.mxu0 %v5104
    %5170 = vmatprep.subr.bf16.mxu0 %v5107
    %5171 = vmatpush1.bf16.msra.mxu0 %v5106
    %5172 = vmatprep.subr.bf16.mxu0 %v5109
    %5173 = vmatpush1.bf16.msra.mxu0 %v5108
    %5174 = vmatprep.subr.bf16.mxu0 %v5111
    %5175 = vmatpush1.bf16.msra.mxu0 %v5110
    %5176 = vmatprep.subr.bf16.mxu0 %v5113
    %5177 = vmatpush1.bf16.msra.mxu0 %v5112
    %5178 = vmatprep.subr.bf16.mxu0 %v5115
    %5179 = vmatpush1.bf16.msra.mxu0 %v5114
    %5180 = vmatprep.mubr.bf16.mxu0 %v4979
    %5181 = vmatmul.mubr.bf16.gmra.mrb[0].mxu0 %v4978
    %v5182 = vpop.f32.mrb[0].mxu0
    %v5183 = vadd.f32 %v4983, %v5182
    %v5184 = vpop.f32.mrb[0].mxu0
    %v5185 = vadd.f32 %v4987, %v5184
    %v5186 = vpop.f32.mrb[0].mxu0
    %v5187 = vpop.f32.mrb[0].mxu0
    %5188 = vdwg.mxu0
    %v5189 = vmax.f32 %v5183, 0.0
    %v5190 = vmax.f32 %v5185, 0.0
    %v5191 = vld [vmem:[#allocation8 + $0x700] sm:$0xff]
    %v5192 = vld [vmem:[#allocation8 + $0x708] sm:$0xff]
    %v5193 = vld [vmem:[#allocation8 + $0x710] sm:$0xff]
    %v5194 = vld [vmem:[#allocation8 + $0x718] sm:$0xff]
    %v5195 = vld [vmem:[#allocation8 + $0x720] sm:$0xff]
    %v5196 = vld [vmem:[#allocation8 + $0x728] sm:$0xff]
    %v5197 = vld [vmem:[#allocation8 + $0x730] sm:$0xff]
    %v5198 = vld [vmem:[#allocation8 + $0x738] sm:$0xff]
    %v5199 = vld [vmem:[#allocation8 + $0x740] sm:$0xff]
    %v5200 = vld [vmem:[#allocation8 + $0x748] sm:$0xff]
    %v5201 = vld [vmem:[#allocation8 + $0x750] sm:$0xff]
    %v5202 = vld [vmem:[#allocation8 + $0x758] sm:$0xff]
    %v5203 = vld [vmem:[#allocation8 + $0x760] sm:$0xff]
    %v5204 = vld [vmem:[#allocation8 + $0x768] sm:$0xff]
    %v5205 = vld [vmem:[#allocation8 + $0x770] sm:$0xff]
    %v5206 = vld [vmem:[#allocation8 + $0x778] sm:$0xff]
    %v5207 = vld [vmem:[#allocation8 + $0x780] sm:$0xff]
    %v5208 = vld [vmem:[#allocation8 + $0x788] sm:$0xff]
    %v5209 = vld [vmem:[#allocation8 + $0x790] sm:$0xff]
    %v5210 = vld [vmem:[#allocation8 + $0x798] sm:$0xff]
    %v5211 = vld [vmem:[#allocation8 + $0x7a0] sm:$0xff]
    %v5212 = vld [vmem:[#allocation8 + $0x7a8] sm:$0xff]
    %v5213 = vld [vmem:[#allocation8 + $0x7b0] sm:$0xff]
    %v5214 = vld [vmem:[#allocation8 + $0x7b8] sm:$0xff]
    %v5215 = vld [vmem:[#allocation8 + $0x7c0] sm:$0xff]
    %v5216 = vld [vmem:[#allocation8 + $0x7c8] sm:$0xff]
    %v5217 = vld [vmem:[#allocation8 + $0x7d0] sm:$0xff]
    %v5218 = vld [vmem:[#allocation8 + $0x7d8] sm:$0xff]
    %v5219 = vld [vmem:[#allocation8 + $0x7e0] sm:$0xff]
    %v5220 = vld [vmem:[#allocation8 + $0x7e8] sm:$0xff]
    %v5221 = vld [vmem:[#allocation8 + $0x7f0] sm:$0xff]
    %v5222 = vld [vmem:[#allocation8 + $0x7f8] sm:$0xff]
    %v5223 = vpack.c.bf16 %v5189, %v5189
    %v5224 = vpack.c.bf16 %v5190, %v5190
    %v5257 = vunpack.c.l.b16 %v5191
    %v5258 = vunpack.c.h.b16 %v5191
    %v5259 = vunpack.c.l.b16 %v5192
    %v5260 = vunpack.c.h.b16 %v5192
    %v5261 = vunpack.c.l.b16 %v5193
    %v5262 = vunpack.c.h.b16 %v5193
    %v5263 = vunpack.c.l.b16 %v5194
    %v5264 = vunpack.c.h.b16 %v5194
    %v5265 = vunpack.c.l.b16 %v5195
    %v5266 = vunpack.c.h.b16 %v5195
    %v5267 = vunpack.c.l.b16 %v5196
    %v5268 = vunpack.c.h.b16 %v5196
    %v5269 = vunpack.c.l.b16 %v5197
    %v5270 = vunpack.c.h.b16 %v5197
    %v5271 = vunpack.c.l.b16 %v5198
    %v5272 = vunpack.c.h.b16 %v5198
    %v5273 = vunpack.c.l.b16 %v5199
    %v5274 = vunpack.c.h.b16 %v5199
    %v5275 = vunpack.c.l.b16 %v5200
    %v5276 = vunpack.c.h.b16 %v5200
    %v5277 = vunpack.c.l.b16 %v5201
    %v5278 = vunpack.c.h.b16 %v5201
    %v5279 = vunpack.c.l.b16 %v5202
    %v5280 = vunpack.c.h.b16 %v5202
    %v5281 = vunpack.c.l.b16 %v5203
    %v5282 = vunpack.c.h.b16 %v5203
    %v5283 = vunpack.c.l.b16 %v5204
    %v5284 = vunpack.c.h.b16 %v5204
    %v5285 = vunpack.c.l.b16 %v5205
    %v5286 = vunpack.c.h.b16 %v5205
    %v5287 = vunpack.c.l.b16 %v5206
    %v5288 = vunpack.c.h.b16 %v5206
    %v5289 = vunpack.c.l.b16 %v5207
    %v5290 = vunpack.c.h.b16 %v5207
    %v5291 = vunpack.c.l.b16 %v5208
    %v5292 = vunpack.c.h.b16 %v5208
    %v5293 = vunpack.c.l.b16 %v5209
    %v5294 = vunpack.c.h.b16 %v5209
    %v5295 = vunpack.c.l.b16 %v5210
    %v5296 = vunpack.c.h.b16 %v5210
    %v5297 = vunpack.c.l.b16 %v5211
    %v5298 = vunpack.c.h.b16 %v5211
    %v5299 = vunpack.c.l.b16 %v5212
    %v5300 = vunpack.c.h.b16 %v5212
    %v5301 = vunpack.c.l.b16 %v5213
    %v5302 = vunpack.c.h.b16 %v5213
    %v5303 = vunpack.c.l.b16 %v5214
    %v5304 = vunpack.c.h.b16 %v5214
    %v5305 = vunpack.c.l.b16 %v5215
    %v5306 = vunpack.c.h.b16 %v5215
    %v5307 = vunpack.c.l.b16 %v5216
    %v5308 = vunpack.c.h.b16 %v5216
    %v5309 = vunpack.c.l.b16 %v5217
    %v5310 = vunpack.c.h.b16 %v5217
    %v5311 = vunpack.c.l.b16 %v5218
    %v5312 = vunpack.c.h.b16 %v5218
    %v5313 = vunpack.c.l.b16 %v5219
    %v5314 = vunpack.c.h.b16 %v5219
    %v5315 = vunpack.c.l.b16 %v5220
    %v5316 = vunpack.c.h.b16 %v5220
    %v5317 = vunpack.c.l.b16 %v5221
    %v5318 = vunpack.c.h.b16 %v5221
    %v5319 = vunpack.c.l.b16 %v5222
    %v5320 = vunpack.c.h.b16 %v5222
    %v5321 = vpack.c.b16 %v5259, %v5257
    %v5322 = vpack.c.b16 %v5260, %v5258
    %v5323 = vpack.c.b16 %v5263, %v5261
    %v5324 = vpack.c.b16 %v5264, %v5262
    %v5325 = vpack.c.b16 %v5267, %v5265
    %v5326 = vpack.c.b16 %v5268, %v5266
    %v5327 = vpack.c.b16 %v5271, %v5269
    %v5328 = vpack.c.b16 %v5272, %v5270
    %v5329 = vpack.c.b16 %v5275, %v5273
    %v5330 = vpack.c.b16 %v5276, %v5274
    %v5331 = vpack.c.b16 %v5279, %v5277
    %v5332 = vpack.c.b16 %v5280, %v5278
    %v5333 = vpack.c.b16 %v5283, %v5281
    %v5334 = vpack.c.b16 %v5284, %v5282
    %v5335 = vpack.c.b16 %v5287, %v5285
    %v5336 = vpack.c.b16 %v5288, %v5286
    %v5337 = vpack.c.b16 %v5291, %v5289
    %v5338 = vpack.c.b16 %v5292, %v5290
    %v5339 = vpack.c.b16 %v5295, %v5293
    %v5340 = vpack.c.b16 %v5296, %v5294
    %v5341 = vpack.c.b16 %v5299, %v5297
    %v5342 = vpack.c.b16 %v5300, %v5298
    %v5343 = vpack.c.b16 %v5303, %v5301
    %v5344 = vpack.c.b16 %v5304, %v5302
    %v5345 = vpack.c.b16 %v5307, %v5305
    %v5346 = vpack.c.b16 %v5308, %v5306
    %v5347 = vpack.c.b16 %v5311, %v5309
    %v5348 = vpack.c.b16 %v5312, %v5310
    %v5349 = vpack.c.b16 %v5315, %v5313
    %v5350 = vpack.c.b16 %v5316, %v5314
    %v5351 = vpack.c.b16 %v5319, %v5317
    %v5352 = vpack.c.b16 %v5320, %v5318
    %5385 = vmatprep.subr.bf16.mxu0 %v5322
    %5386 = vmatpush1.bf16.msra.mxu0 %v5321
    %5387 = vmatprep.subr.bf16.mxu0 %v5324
    %5388 = vmatpush1.bf16.msra.mxu0 %v5323
    %5389 = vmatprep.subr.bf16.mxu0 %v5326
    %5390 = vmatpush1.bf16.msra.mxu0 %v5325
    %5391 = vmatprep.subr.bf16.mxu0 %v5328
    %5392 = vmatpush1.bf16.msra.mxu0 %v5327
    %5393 = vmatprep.subr.bf16.mxu0 %v5330
    %5394 = vmatpush1.bf16.msra.mxu0 %v5329
    %5395 = vmatprep.subr.bf16.mxu0 %v5332
    %5396 = vmatpush1.bf16.msra.mxu0 %v5331
    %5397 = vmatprep.subr.bf16.mxu0 %v5334
    %5398 = vmatpush1.bf16.msra.mxu0 %v5333
    %5399 = vmatprep.subr.bf16.mxu0 %v5336
    %5400 = vmatpush1.bf16.msra.mxu0 %v5335
    %5401 = vmatprep.subr.bf16.mxu0 %v5338
    %5402 = vmatpush1.bf16.msra.mxu0 %v5337
    %5403 = vmatprep.subr.bf16.mxu0 %v5340
    %5404 = vmatpush1.bf16.msra.mxu0 %v5339
    %5405 = vmatprep.subr.bf16.mxu0 %v5342
    %5406 = vmatpush1.bf16.msra.mxu0 %v5341
    %5407 = vmatprep.subr.bf16.mxu0 %v5344
    %5408 = vmatpush1.bf16.msra.mxu0 %v5343
    %5409 = vmatprep.subr.bf16.mxu0 %v5346
    %5410 = vmatpush1.bf16.msra.mxu0 %v5345
    %5411 = vmatprep.subr.bf16.mxu0 %v5348
    %5412 = vmatpush1.bf16.msra.mxu0 %v5347
    %5413 = vmatprep.subr.bf16.mxu0 %v5350
    %5414 = vmatpush1.bf16.msra.mxu0 %v5349
    %5415 = vmatprep.subr.bf16.mxu0 %v5352
    %5416 = vmatpush1.bf16.msra.mxu0 %v5351
    %5417 = vmatprep.mubr.bf16.mxu0 %v5224
    %5418 = vmatmul.mubr.bf16.gmra.mrb[0].mxu0 %v5223
    %v5419 = vpop.f32.mrb[0].mxu0
    %v5420 = vadd.f32 %v212, %v5419
    %v5421 = vpop.f32.mrb[0].mxu0
    %v5422 = vadd.f32 %v213, %v5421
    %v5423 = vpop.f32.mrb[0].mxu0
    %v5424 = vpop.f32.mrb[0].mxu0
    %5425 = vdwg.mxu0
    %v5426 = vlaneseq
    %v5427 = vshrl.u32 %v5426, 7
    %v5428 = vsub.s32 6, %v5427
    %v5429 = vrot.slane %v129, %v5428
    %v5430 = vlaneseq
    %v5431 = vshrl.u32 %v5430, 7
    %v5432 = vsub.s32 6, %v5431
    %v5433 = vrot.slane %v130, %v5432
    %v5434 = vadd.f32 %v5420, %v5429
    %v5435 = vadd.f32 %v5422, %v5433
    %v5436 = vmax.f32 %v5434, 0.0
    %v5437 = vmax.f32 %v5435, 0.0
    %v5440 = vcombine.low %v5436, %v5437
    %v5442 = vunpack.c.l.s4 1983009808
    %v5443 = vunpack.c.0.s8 %v5442
    %v5444 = vlaneseq
    %v5445 = vshrl.u32 %v5444, 7
    %v5446 = vsub.s32 %v5443, %v5445
    %v5447 = vrot.slane %v5440, %v5446
    %5449 = vst [vmem:[#allocation16] sm:$0xf] %v5447
    // Predicated region
    $region66: #{tpu_custom_call.1} parent=1 // pred_check
      _
    $region67: #{tpu_custom_call.1} parent=1 // pred_check_branch
      %5451 = sbr.rel (0) target = $region69
    $region68: #{tpu_custom_call.1} parent=1 // pred_region
      %s5453 = ssub.s32 64, 64
      %5454 = vsyncadd [#allocation4], %s5453
      %s5456 = sshll.u32 [#allocation16], 4
      %s5457 = int_to_ptr.vmem [resolvable:$true] %s5456
      %5459 = dma.vmem_to_hbm [thread:$0]  %s5457, 64, %s8, [#allocation4]
    $region69: #{tpu_custom_call.1} parent=1 // pred_fallthru
      _
    // Predicated region
    $region70: #{tpu_custom_call.1} parent=1 // pred_check
      _
    $region71: #{tpu_custom_call.1} parent=1 // pred_check_branch
      %5461 = sbr.rel (0) target = $region73
    $region72: #{tpu_custom_call.1} parent=1 // pred_region
      %5462 = dma.done [#allocation4], 64
    $region73: #{tpu_custom_call.1} parent=1 // pred_fallthru
      _
    %5463 = vsyncpa [#allocation3], 1
    %5464 = vsyncpa [#allocation6], 1
    %5465 = vsyncpa [#allocation9], 1
    %5466 = vsyncpa [#allocation12], 1
    %5467 = vsyncpa [#allocation15], 1
    %5468 = vsyncpa [#allocation4], 1

</llo_original>
